<compile_context>
chip_gen: v7x
topology: tpu7x:2x2x1
jax: 0.10.0
libtpu: 0.0.40
codegen_flags: <defaults>
</compile_context>

<pallas_src>
import functools

import jax
import jax.numpy as jnp
from jax.experimental import pallas as pl
from jax.experimental.pallas import tpu as pltpu

IN_F = 784     # flattened MNIST input
HID = 500      # logical hidden width
HID_P = 512    # padded hidden width  (500 -> 512)
OUT = 10       # logical logits
OUT_P = 128    # padded logits        (10 -> 128, lane-dense output)


def _mlp_kernel(x_ref, w1_ref, b1_ref, w2_ref, b2_ref, w3_ref, b3_ref, o_ref):
    # x arrives f32 from HBM; cast to bf16 here (avoids a separate XLA cast pass).
    x = x_ref[...].astype(jnp.bfloat16)
    # Layer 1: Linear(784 -> 512p) + ReLU (bf16 MXU, f32 accumulate)
    h1 = jnp.dot(x, w1_ref[...], preferred_element_type=jnp.float32)
    h1 = jnp.maximum(h1 + b1_ref[...], 0.0).astype(jnp.bfloat16)
    # Layer 2: Linear(512p -> 512p) + ReLU
    h2 = jnp.dot(h1, w2_ref[...], preferred_element_type=jnp.float32)
    h2 = jnp.maximum(h2 + b2_ref[...], 0.0).astype(jnp.bfloat16)
    # Layer 3: Linear(512p -> 128p), logits (padded cols are exactly 0)
    out = jnp.dot(h2, w3_ref[...], preferred_element_type=jnp.float32)
    o_ref[...] = (out + b3_ref[...]).astype(o_ref.dtype)  # bf16 store, lane-dense


def _pad2(a, rows, cols):
    return jnp.pad(a, ((0, rows - a.shape[0]), (0, cols - a.shape[1])))


def prepare_params(w1, b1, w2, b2, w3, b3):
    """One-time padding (500->512, 10->128) + bf16 cast of the weights."""
    w1p = _pad2(w1, IN_F, HID_P).astype(jnp.bfloat16)
    w2p = _pad2(w2, HID_P, HID_P).astype(jnp.bfloat16)
    w3p = _pad2(w3, HID_P, OUT_P).astype(jnp.bfloat16)
    b1p = _pad2(b1, 1, HID_P).astype(jnp.float32)
    b2p = _pad2(b2, 1, HID_P).astype(jnp.float32)
    b3p = _pad2(b3, 1, OUT_P).astype(jnp.float32)
    return w1p, b1p, w2p, b2p, w3p, b3p


def _round_up(n, m):
    return ((n + m - 1) // m) * m


def _pick_tile_b(batch):
    """128-aligned batch tile, capped at 512 rows, >=2 grid steps when batch allows
    (so both v7x TensorCores get work via the parallel batch axis)."""
    half = -(-batch // 2)  # ceil(batch / 2)
    return max(128, min(512, _round_up(half, 128)))


@jax.jit
def ann_forward(x, w1p, b1p, w2p, b2p, w3p, b3p):
    """Forward pass. x: (batch, 784) float32. Returns (batch, 10) float32 logits."""
    batch = x.shape[0]
    tile_b = _pick_tile_b(batch)
    n_tiles = pl.cdiv(batch, tile_b)
    pb = n_tiles * tile_b
    if pb != batch:  # pad only the batch remainder (no full-array copy)
        x = jnp.pad(x, ((0, pb - batch), (0, 0)))

    cost = pl.CostEstimate(
        flops=2 * pb * (IN_F * HID_P + HID_P * HID_P + HID_P * OUT_P),
        transcendentals=0,
        bytes_accessed=(
            (IN_F * HID_P + HID_P * HID_P + HID_P * OUT_P) * 2  # bf16 weights
            + (HID_P + HID_P + OUT_P) * 4                        # f32 biases
            + pb * IN_F * 4                                      # f32 activations in
            + pb * OUT_P * 2                                     # bf16 logits out
        ),
    )

    resident = lambda i: (0, 0)  # weights/biases: same block every step (stay in VMEM)

    out_p = pl.pallas_call(
        _mlp_kernel,
        out_shape=jax.ShapeDtypeStruct((pb, OUT_P), jnp.bfloat16),
        grid=(n_tiles,),
        in_specs=[
            pl.BlockSpec((tile_b, IN_F), lambda i: (i, 0)),   # x tile (pipelined)
            pl.BlockSpec((IN_F, HID_P), resident),            # W1
            pl.BlockSpec((1, HID_P), resident),               # b1
            pl.BlockSpec((HID_P, HID_P), resident),           # W2
            pl.BlockSpec((1, HID_P), resident),               # b2
            pl.BlockSpec((HID_P, OUT_P), resident),           # W3
            pl.BlockSpec((1, OUT_P), resident),               # b3
        ],
        out_specs=pl.BlockSpec((tile_b, OUT_P), lambda i: (i, 0)),
        compiler_params=pltpu.CompilerParams(
            dimension_semantics=("parallel",),   # batch axis shardable across v7x TCs
            vmem_limit_bytes=32 << 20,           # explicit (v5e default is 16 MiB)
        ),
        cost_estimate=cost,
    )(x, w1p, b1p, w2p, b2p, w3p, b3p)

    return out_p[:batch, :OUT].astype(jnp.float32)


def init_params(key):
    """Deterministic parameter init (Kaiming-uniform-ish like torch defaults)."""
    k1, k2, k3, k4, k5, k6 = jax.random.split(key, 6)

    def linear(kw, kb, fan_in, fan_out):
        bound = 1.0 / jnp.sqrt(fan_in)
        # stored as (in, out) so the kernel does x @ W + b  (== x @ W_t.T + b in torch)
        w = jax.random.uniform(kw, (fan_in, fan_out), jnp.float32, -bound, bound)
        b = jax.random.uniform(kb, (1, fan_out), jnp.float32, -bound, bound)
        return w, b

    w1, b1 = linear(k1, k2, IN_F, HID)
    w2, b2 = linear(k3, k4, HID, HID)
    w3, b3 = linear(k5, k6, HID, OUT)
    return w1, b1, w2, b2, w3, b3


def reference_forward(x, w1, b1, w2, b2, w3, b3):
    h1 = jnp.maximum(x @ w1 + b1, 0.0)
    h2 = jnp.maximum(h1 @ w2 + b2, 0.0)
    return h2 @ w3 + b3


if __name__ == "__main__":
    key = jax.random.PRNGKey(0)
    kx, kp = jax.random.split(key)

    batch = 2
    x = jax.random.normal(kx, (batch, IN_F), jnp.float32)  # flattened MNIST-like input
    params = init_params(kp)
    padded = prepare_params(*params)

    out = ann_forward(x, *padded)
    out = jax.block_until_ready(out)

    ref = reference_forward(x, *params)  # f32 reference on unpadded weights
    assert out.shape == (batch, OUT), out.shape
    # bf16 matmul inputs + bf16 logit store with f32 accumulation -> loosened tolerance
    assert jnp.allclose(out, ref, atol=1e-1, rtol=5e-2), "mismatch vs reference"

    print("KERNEL_OK")
</pallas_src>

<mosaic_0001>
module attributes {stable_mosaic.version = 11 : i64} {
  func.func @_mlp_kernel(%arg0: i32, %arg1: memref<128x784xf32, #tpu.memory_space<vmem>>, %arg2: memref<784x512xbf16, #tpu.memory_space<vmem>>, %arg3: memref<1x512xf32, #tpu.memory_space<vmem>>, %arg4: memref<512x512xbf16, #tpu.memory_space<vmem>>, %arg5: memref<1x512xf32, #tpu.memory_space<vmem>>, %arg6: memref<512x128xbf16, #tpu.memory_space<vmem>>, %arg7: memref<1x128xf32, #tpu.memory_space<vmem>>, %arg8: memref<128x128xbf16, #tpu.memory_space<vmem>>) attributes {dimension_semantics = [#tpu.dimension_semantics<parallel>], iteration_bounds = array<i64: 1>, scalar_prefetch = 0 : i64, scratch_operands = 0 : i64, tpu.core_type = #tpu.core_type<tc>, window_params = [{transform_indices = @transform_0, window_bounds = array<i64: 128, 784>}, {pipeline_mode = #tpu.pipeline_mode<synchronous>, transform_indices = @transform_1, window_bounds = array<i64: 784, 512>}, {pipeline_mode = #tpu.pipeline_mode<synchronous>, transform_indices = @transform_2, window_bounds = array<i64: 1, 512>}, {pipeline_mode = #tpu.pipeline_mode<synchronous>, transform_indices = @transform_3, window_bounds = array<i64: 512, 512>}, {pipeline_mode = #tpu.pipeline_mode<synchronous>, transform_indices = @transform_4, window_bounds = array<i64: 1, 512>}, {pipeline_mode = #tpu.pipeline_mode<synchronous>, transform_indices = @transform_5, window_bounds = array<i64: 512, 128>}, {pipeline_mode = #tpu.pipeline_mode<synchronous>, transform_indices = @transform_6, window_bounds = array<i64: 1, 128>}, {transform_indices = @transform_7, window_bounds = array<i64: 128, 128>}]} {
    %c0 = arith.constant 0 : index
    %c0_0 = arith.constant 0 : index
    %0 = vector.load %arg1[%c0, %c0_0] : memref<128x784xf32, #tpu.memory_space<vmem>>, vector<128x784xf32>
    %1 = arith.truncf %0 : vector<128x784xf32> to vector<128x784xbf16>
    %c0_1 = arith.constant 0 : index
    %c0_2 = arith.constant 0 : index
    %2 = vector.load %arg2[%c0_1, %c0_2] : memref<784x512xbf16, #tpu.memory_space<vmem>>, vector<784x512xbf16>
    %cst = arith.constant dense<0.000000e+00> : vector<128x512xf32>
    %3 = tpu.matmul %1, %2, %cst {dimension_numbers = #tpu.dot_dimension_numbers<[1], [0], [0], [1], [0, 0, 1, 1], [], []>} : vector<128x784xbf16>, vector<784x512xbf16>, vector<128x512xf32> -> vector<128x512xf32>
    %c0_3 = arith.constant 0 : index
    %c0_4 = arith.constant 0 : index
    %4 = vector.load %arg3[%c0_3, %c0_4] : memref<1x512xf32, #tpu.memory_space<vmem>>, vector<1x512xf32>
    %5 = vector.broadcast %4 : vector<1x512xf32> to vector<128x512xf32>
    %6 = arith.addf %3, %5 : vector<128x512xf32>
    %cst_5 = arith.constant 0.000000e+00 : f32
    %7 = vector.broadcast %cst_5 : f32 to vector<128x512xf32>
    %8 = arith.maximumf %6, %7 : vector<128x512xf32>
    %9 = arith.truncf %8 : vector<128x512xf32> to vector<128x512xbf16>
    %c0_6 = arith.constant 0 : index
    %c0_7 = arith.constant 0 : index
    %10 = vector.load %arg4[%c0_6, %c0_7] : memref<512x512xbf16, #tpu.memory_space<vmem>>, vector<512x512xbf16>
    %cst_8 = arith.constant dense<0.000000e+00> : vector<128x512xf32>
    %11 = tpu.matmul %9, %10, %cst_8 {dimension_numbers = #tpu.dot_dimension_numbers<[1], [0], [0], [1], [0, 0, 1, 1], [], []>} : vector<128x512xbf16>, vector<512x512xbf16>, vector<128x512xf32> -> vector<128x512xf32>
    %c0_9 = arith.constant 0 : index
    %c0_10 = arith.constant 0 : index
    %12 = vector.load %arg5[%c0_9, %c0_10] : memref<1x512xf32, #tpu.memory_space<vmem>>, vector<1x512xf32>
    %13 = vector.broadcast %12 : vector<1x512xf32> to vector<128x512xf32>
    %14 = arith.addf %11, %13 : vector<128x512xf32>
    %cst_11 = arith.constant 0.000000e+00 : f32
    %15 = vector.broadcast %cst_11 : f32 to vector<128x512xf32>
    %16 = arith.maximumf %14, %15 : vector<128x512xf32>
    %17 = arith.truncf %16 : vector<128x512xf32> to vector<128x512xbf16>
    %c0_12 = arith.constant 0 : index
    %c0_13 = arith.constant 0 : index
    %18 = vector.load %arg6[%c0_12, %c0_13] : memref<512x128xbf16, #tpu.memory_space<vmem>>, vector<512x128xbf16>
    %cst_14 = arith.constant dense<0.000000e+00> : vector<128x128xf32>
    %19 = tpu.matmul %17, %18, %cst_14 {dimension_numbers = #tpu.dot_dimension_numbers<[1], [0], [0], [1], [0, 0, 1, 1], [], []>} : vector<128x512xbf16>, vector<512x128xbf16>, vector<128x128xf32> -> vector<128x128xf32>
    %c0_15 = arith.constant 0 : index
    %c0_16 = arith.constant 0 : index
    %20 = vector.load %arg7[%c0_15, %c0_16] : memref<1x128xf32, #tpu.memory_space<vmem>>, vector<1x128xf32>
    %21 = vector.broadcast %20 : vector<1x128xf32> to vector<128x128xf32>
    %22 = arith.addf %19, %21 : vector<128x128xf32>
    %23 = arith.truncf %22 : vector<128x128xf32> to vector<128x128xbf16>
    %c0_17 = arith.constant 0 : index
    %c0_18 = arith.constant 0 : index
    %24 = vector.load %arg8[%c0_17, %c0_18] : memref<128x128xbf16, #tpu.memory_space<vmem>>, vector<128x128xbf16>
    tpu.vector_store %arg8[%c0_17, %c0_18], %23 {strides = array<i32>} : memref<128x128xbf16, #tpu.memory_space<vmem>>, vector<128x128xbf16>,
    return
  }
  func.func @transform_0(%arg0: i32) -> (i32, i32) {
    %c0_i32 = arith.constant 0 : i32
    %c0_i32_0 = arith.constant 0 : i32
    return %arg0, %c0_i32 : i32, i32
  }
  func.func @transform_1(%arg0: i32) -> (i32, i32) {
    %c0_i32 = arith.constant 0 : i32
    %c0_i32_0 = arith.constant 0 : i32
    %c0_i32_1 = arith.constant 0 : i32
    return %c0_i32, %c0_i32_0 : i32, i32
  }
  func.func @transform_2(%arg0: i32) -> (i32, i32) {
    %c0_i32 = arith.constant 0 : i32
    %c0_i32_0 = arith.constant 0 : i32
    %c0_i32_1 = arith.constant 0 : i32
    return %c0_i32, %c0_i32_0 : i32, i32
  }
  func.func @transform_3(%arg0: i32) -> (i32, i32) {
    %c0_i32 = arith.constant 0 : i32
    %c0_i32_0 = arith.constant 0 : i32
    %c0_i32_1 = arith.constant 0 : i32
    return %c0_i32, %c0_i32_0 : i32, i32
  }
  func.func @transform_4(%arg0: i32) -> (i32, i32) {
    %c0_i32 = arith.constant 0 : i32
    %c0_i32_0 = arith.constant 0 : i32
    %c0_i32_1 = arith.constant 0 : i32
    return %c0_i32, %c0_i32_0 : i32, i32
  }
  func.func @transform_5(%arg0: i32) -> (i32, i32) {
    %c0_i32 = arith.constant 0 : i32
    %c0_i32_0 = arith.constant 0 : i32
    %c0_i32_1 = arith.constant 0 : i32
    return %c0_i32, %c0_i32_0 : i32, i32
  }
  func.func @transform_6(%arg0: i32) -> (i32, i32) {
    %c0_i32 = arith.constant 0 : i32
    %c0_i32_0 = arith.constant 0 : i32
    %c0_i32_1 = arith.constant 0 : i32
    return %c0_i32, %c0_i32_0 : i32, i32
  }
  func.func @transform_7(%arg0: i32) -> (i32, i32) {
    %c0_i32 = arith.constant 0 : i32
    %c0_i32_0 = arith.constant 0 : i32
    return %arg0, %c0_i32 : i32, i32
  }
}

</mosaic_0001>

<llo_original>
// kernel: ann_forward.1
$region0: #{ann_forward.1}
  #allocation0 [shape = 'u32[]', space=smem, size = 0x4, offset = 0x4, fixed_abs, tag = 'smem constant byte address 0x4 - core index']
  #allocation1 [shape = 'u32[144,128]{1,0:T(1,128)}', space=vmem, size = 0x12000, scoped, tag = 'internal scratch']
  %s0 = inlined_call_operand.vmem [shape: f32[128,784], index: 0, kind: input, shape index: {}]
  %s1 = inlined_call_operand.hbm [shape: bf16[784,512], index: 1, kind: input, shape index: {}]
  %s2 = inlined_call_operand.vmem [shape: f32[1,512], index: 2, kind: input, shape index: {}]
  %s3 = inlined_call_operand.hbm [shape: bf16[512,512], index: 3, kind: input, shape index: {}]
  %s4 = inlined_call_operand.vmem [shape: f32[1,512], index: 4, kind: input, shape index: {}]
  %s5 = inlined_call_operand.vmem [shape: bf16[512,128], index: 5, kind: input, shape index: {}]
  %s6 = inlined_call_operand.vmem [shape: f32[1,128], index: 6, kind: input, shape index: {}]
  %s7 = inlined_call_operand.vmem [shape: bf16[128,128], index: 7, kind: output, shape index: {}]
  %s8 = sld [smem:[#allocation0]]
  $region46: #{ann_forward.1} parent=0
    _
  %s10 = ssub.s32 1, %s8
  %s11 = scalar_select 0, %s10, %s8
  $region1: #{ann_forward.1} parent=0
    #allocation2 [shape = 'u8[802816]{0}', space=vmem, size = 0xc4000, scoped, tag = 'input window, operand 1, single buffered']
    #allocation3 [shape = 's32[1]{0}', space=sflag, size = 0x4, scoped, tag = 'scoped memory for ann_forward.1']
    #allocation4 [shape = 'u8[524288]{0}', space=vmem, size = 0x80000, scoped, tag = 'input window, operand 3, single buffered']
    #allocation5 [shape = 's32[1]{0}', space=sflag, size = 0x4, scoped, tag = 'scoped memory for ann_forward.1']
    %12 = vsyncpa [#allocation3], 0
    %13 = vsyncpa [#allocation5], 0
    // Predicated region
    $region2: #{ann_forward.1} parent=1 // pred_check
      _
    $region3: #{ann_forward.1} parent=1 // pred_check_branch
      %15 = sbr.rel (0) target = $region5
    $region4: #{ann_forward.1} parent=1 // pred_region
      _
    $region5: #{ann_forward.1} parent=1 // pred_fallthru
      _
    // Predicated region
    $region6: #{ann_forward.1} parent=1 // pred_check
      _
    $region7: #{ann_forward.1} parent=1 // pred_check_branch
      %17 = sbr.rel (0) target = $region9
    $region8: #{ann_forward.1} parent=1 // pred_region
      %s19 = ssub.s32 25088, 25088
      %20 = vsyncadd [#allocation3], %s19
      %s21 = sshll.u32 [#allocation2], 4
      %s22 = int_to_ptr.vmem [resolvable:$true] %s21
      %27 = dma.hbm_to_vmem [thread:$0]  %s1, 25088, %s22, [#allocation3], 256, 256, 16
    $region9: #{ann_forward.1} parent=1 // pred_fallthru
      _
    // Predicated region
    $region10: #{ann_forward.1} parent=1 // pred_check
      _
    $region11: #{ann_forward.1} parent=1 // pred_check_branch
      %29 = sbr.rel (0) target = $region13
    $region12: #{ann_forward.1} parent=1 // pred_region
      _
    $region13: #{ann_forward.1} parent=1 // pred_fallthru
      _
    // Predicated region
    $region14: #{ann_forward.1} parent=1 // pred_check
      _
    $region15: #{ann_forward.1} parent=1 // pred_check_branch
      %31 = sbr.rel (0) target = $region17
    $region16: #{ann_forward.1} parent=1 // pred_region
      %s33 = ssub.s32 16384, 16384
      %34 = vsyncadd [#allocation5], %s33
      %s35 = sshll.u32 [#allocation4], 4
      %s36 = int_to_ptr.vmem [resolvable:$true] %s35
      %41 = dma.hbm_to_vmem [thread:$0]  %s3, 16384, %s36, [#allocation5], 256, 256, 16
    $region17: #{ann_forward.1} parent=1 // pred_fallthru
      _
    // Predicated region
    $region18: #{ann_forward.1} parent=1 // pred_check
      _
    $region19: #{ann_forward.1} parent=1 // pred_check_branch
      %43 = sbr.rel (0) target = $region21
    $region20: #{ann_forward.1} parent=1 // pred_region
      _
    $region21: #{ann_forward.1} parent=1 // pred_fallthru
      _
    // Predicated region
    $region22: #{ann_forward.1} parent=1 // pred_check
      _
    $region23: #{ann_forward.1} parent=1 // pred_check_branch
      %45 = sbr.rel (0) target = $region25
    $region24: #{ann_forward.1} parent=1 // pred_region
      _
    $region25: #{ann_forward.1} parent=1 // pred_fallthru
      _
    // Predicated region
    $region26: #{ann_forward.1} parent=1 // pred_check
      _
    $region27: #{ann_forward.1} parent=1 // pred_check_branch
      %47 = sbr.rel (0) target = $region29
    $region28: #{ann_forward.1} parent=1 // pred_region
      _
    $region29: #{ann_forward.1} parent=1 // pred_fallthru
      _
    // Predicated region
    $region30: #{ann_forward.1} parent=1 // pred_check
      _
    $region31: #{ann_forward.1} parent=1 // pred_check_branch
      %49 = sbr.rel (0) target = $region33
    $region32: #{ann_forward.1} parent=1 // pred_region
      %50 = dma.done [#allocation3], 25088
    $region33: #{ann_forward.1} parent=1 // pred_fallthru
      _
    // Predicated region
    $region34: #{ann_forward.1} parent=1 // pred_check
      _
    $region35: #{ann_forward.1} parent=1 // pred_check_branch
      %52 = sbr.rel (0) target = $region37
    $region36: #{ann_forward.1} parent=1 // pred_region
      %53 = dma.done [#allocation5], 16384
    $region37: #{ann_forward.1} parent=1 // pred_fallthru
      _
    %v55 = vld [vmem:[%s0] sm:$0xff]
    %v56 = vld [vmem:[%s0 + $0x8] sm:$0xff]
    %v57 = vld [vmem:[%s0 + $0x10] sm:$0xff]
    %v58 = vld [vmem:[%s0 + $0x18] sm:$0xff]
    %v59 = vld [vmem:[%s0 + $0x20] sm:$0xff]
    %v60 = vld [vmem:[%s0 + $0x28] sm:$0xff]
    %v61 = vld [vmem:[%s0 + $0x30] sm:$0xff]
    %v62 = vld [vmem:[%s0 + $0x38] sm:$0xff]
    %v63 = vld [vmem:[%s0 + $0x40] sm:$0xff]
    %v64 = vld [vmem:[%s0 + $0x48] sm:$0xff]
    %v65 = vld [vmem:[%s0 + $0x50] sm:$0xff]
    %v66 = vld [vmem:[%s0 + $0x58] sm:$0xff]
    %v67 = vld [vmem:[%s0 + $0x60] sm:$0xff]
    %v68 = vld [vmem:[%s0 + $0x68] sm:$0xff]
    %v69 = vld [vmem:[%s0 + $0x70] sm:$0xff]
    %v70 = vld [vmem:[%s0 + $0x78] sm:$0xff]
    %v71 = vld [vmem:[%s0 + $0x80] sm:$0xff]
    %v72 = vld [vmem:[%s0 + $0x88] sm:$0xff]
    %v73 = vld [vmem:[%s0 + $0x90] sm:$0xff]
    %v74 = vld [vmem:[%s0 + $0x98] sm:$0xff]
    %v75 = vld [vmem:[%s0 + $0xa0] sm:$0xff]
    %v76 = vld [vmem:[%s0 + $0xa8] sm:$0xff]
    %v77 = vld [vmem:[%s0 + $0xb0] sm:$0xff]
    %v78 = vld [vmem:[%s0 + $0xb8] sm:$0xff]
    %v79 = vld [vmem:[%s0 + $0xc0] sm:$0xff]
    %v80 = vld [vmem:[%s0 + $0xc8] sm:$0xff]
    %v81 = vld [vmem:[%s0 + $0xd0] sm:$0xff]
    %v82 = vld [vmem:[%s0 + $0xd8] sm:$0xff]
    %v83 = vld [vmem:[%s0 + $0xe0] sm:$0xff]
    %v84 = vld [vmem:[%s0 + $0xe8] sm:$0xff]
    %v85 = vld [vmem:[%s0 + $0xf0] sm:$0xff]
    %v86 = vld [vmem:[%s0 + $0xf8] sm:$0xff]
    %v87 = vld [vmem:[%s0 + $0x100] sm:$0xff]
    %v88 = vld [vmem:[%s0 + $0x108] sm:$0xff]
    %v89 = vld [vmem:[%s0 + $0x110] sm:$0xff]
    %v90 = vld [vmem:[%s0 + $0x118] sm:$0xff]
    %v91 = vld [vmem:[%s0 + $0x120] sm:$0xff]
    %v92 = vld [vmem:[%s0 + $0x128] sm:$0xff]
    %v93 = vld [vmem:[%s0 + $0x130] sm:$0xff]
    %v94 = vld [vmem:[%s0 + $0x138] sm:$0xff]
    %v95 = vld [vmem:[%s0 + $0x140] sm:$0xff]
    %v96 = vld [vmem:[%s0 + $0x148] sm:$0xff]
    %v97 = vld [vmem:[%s0 + $0x150] sm:$0xff]
    %v98 = vld [vmem:[%s0 + $0x158] sm:$0xff]
    %v99 = vld [vmem:[%s0 + $0x160] sm:$0xff]
    %v100 = vld [vmem:[%s0 + $0x168] sm:$0xff]
    %v101 = vld [vmem:[%s0 + $0x170] sm:$0xff]
    %v102 = vld [vmem:[%s0 + $0x178] sm:$0xff]
    %v103 = vld [vmem:[%s0 + $0x180] sm:$0xff]
    %v104 = vld [vmem:[%s0 + $0x188] sm:$0xff]
    %v105 = vld [vmem:[%s0 + $0x190] sm:$0xff]
    %v106 = vld [vmem:[%s0 + $0x198] sm:$0xff]
    %v107 = vld [vmem:[%s0 + $0x1a0] sm:$0xff]
    %v108 = vld [vmem:[%s0 + $0x1a8] sm:$0xff]
    %v109 = vld [vmem:[%s0 + $0x1b0] sm:$0xff]
    %v110 = vld [vmem:[%s0 + $0x1b8] sm:$0xff]
    %v111 = vld [vmem:[%s0 + $0x1c0] sm:$0xff]
    %v112 = vld [vmem:[%s0 + $0x1c8] sm:$0xff]
    %v113 = vld [vmem:[%s0 + $0x1d0] sm:$0xff]
    %v114 = vld [vmem:[%s0 + $0x1d8] sm:$0xff]
    %v115 = vld [vmem:[%s0 + $0x1e0] sm:$0xff]
    %v116 = vld [vmem:[%s0 + $0x1e8] sm:$0xff]
    %v117 = vld [vmem:[%s0 + $0x1f0] sm:$0xff]
    %v118 = vld [vmem:[%s0 + $0x1f8] sm:$0xff]
    %v119 = vld [vmem:[%s0 + $0x200] sm:$0xff]
    %v120 = vld [vmem:[%s0 + $0x208] sm:$0xff]
    %v121 = vld [vmem:[%s0 + $0x210] sm:$0xff]
    %v122 = vld [vmem:[%s0 + $0x218] sm:$0xff]
    %v123 = vld [vmem:[%s0 + $0x220] sm:$0xff]
    %v124 = vld [vmem:[%s0 + $0x228] sm:$0xff]
    %v125 = vld [vmem:[%s0 + $0x230] sm:$0xff]
    %v126 = vld [vmem:[%s0 + $0x238] sm:$0xff]
    %v127 = vld [vmem:[%s0 + $0x240] sm:$0xff]
    %v128 = vld [vmem:[%s0 + $0x248] sm:$0xff]
    %v129 = vld [vmem:[%s0 + $0x250] sm:$0xff]
    %v130 = vld [vmem:[%s0 + $0x258] sm:$0xff]
    %v131 = vld [vmem:[%s0 + $0x260] sm:$0xff]
    %v132 = vld [vmem:[%s0 + $0x268] sm:$0xff]
    %v133 = vld [vmem:[%s0 + $0x270] sm:$0xff]
    %v134 = vld [vmem:[%s0 + $0x278] sm:$0xff]
    %v135 = vld [vmem:[%s0 + $0x280] sm:$0xff]
    %v136 = vld [vmem:[%s0 + $0x288] sm:$0xff]
    %v137 = vld [vmem:[%s0 + $0x290] sm:$0xff]
    %v138 = vld [vmem:[%s0 + $0x298] sm:$0xff]
    %v139 = vld [vmem:[%s0 + $0x2a0] sm:$0xff]
    %v140 = vld [vmem:[%s0 + $0x2a8] sm:$0xff]
    %v141 = vld [vmem:[%s0 + $0x2b0] sm:$0xff]
    %v142 = vld [vmem:[%s0 + $0x2b8] sm:$0xff]
    %v143 = vld [vmem:[%s0 + $0x2c0] sm:$0xff]
    %v144 = vld [vmem:[%s0 + $0x2c8] sm:$0xff]
    %v145 = vld [vmem:[%s0 + $0x2d0] sm:$0xff]
    %v146 = vld [vmem:[%s0 + $0x2d8] sm:$0xff]
    %v147 = vld [vmem:[%s0 + $0x2e0] sm:$0xff]
    %v148 = vld [vmem:[%s0 + $0x2e8] sm:$0xff]
    %v149 = vld [vmem:[%s0 + $0x2f0] sm:$0xff]
    %v150 = vld [vmem:[%s0 + $0x2f8] sm:$0xff]
    %v151 = vld [vmem:[%s0 + $0x300] sm:$0xff]
    %v152 = vld [vmem:[%s0 + $0x308] sm:$0xff]
    %v153 = vld [vmem:[%s0 + $0x310] sm:$0xff]
    %v154 = vld [vmem:[%s0 + $0x318] sm:$0xff]
    %v155 = vld [vmem:[%s0 + $0x320] sm:$0xff]
    %v156 = vld [vmem:[%s0 + $0x328] sm:$0xff]
    %v157 = vld [vmem:[%s0 + $0x330] sm:$0xff]
    %v158 = vld [vmem:[%s0 + $0x338] sm:$0xff]
    %v159 = vld [vmem:[%s0 + $0x340] sm:$0xff]
    %v160 = vld [vmem:[%s0 + $0x348] sm:$0xff]
    %v161 = vld [vmem:[%s0 + $0x350] sm:$0xff]
    %v162 = vld [vmem:[%s0 + $0x358] sm:$0xff]
    %v163 = vld [vmem:[%s0 + $0x360] sm:$0xff]
    %v164 = vld [vmem:[%s0 + $0x368] sm:$0xff]
    %v165 = vld [vmem:[%s0 + $0x370] sm:$0xff]
    %v166 = vld [vmem:[%s0 + $0x378] sm:$0xff]
    %v167 = vpack.c.bf16 %v62, %v55
    %v168 = vpack.c.bf16 %v63, %v56
    %v169 = vpack.c.bf16 %v64, %v57
    %v170 = vpack.c.bf16 %v65, %v58
    %v171 = vpack.c.bf16 %v66, %v59
    %v172 = vpack.c.bf16 %v67, %v60
    %v173 = vpack.c.bf16 %v68, %v61
    %v174 = vpack.c.bf16 %v76, %v69
    %v175 = vpack.c.bf16 %v77, %v70
    %v176 = vpack.c.bf16 %v78, %v71
    %v177 = vpack.c.bf16 %v79, %v72
    %v178 = vpack.c.bf16 %v80, %v73
    %v179 = vpack.c.bf16 %v81, %v74
    %v180 = vpack.c.bf16 %v82, %v75
    %v181 = vpack.c.bf16 %v90, %v83
    %v182 = vpack.c.bf16 %v91, %v84
    %v183 = vpack.c.bf16 %v92, %v85
    %v184 = vpack.c.bf16 %v93, %v86
    %v185 = vpack.c.bf16 %v94, %v87
    %v186 = vpack.c.bf16 %v95, %v88
    %v187 = vpack.c.bf16 %v96, %v89
    %v188 = vpack.c.bf16 %v104, %v97
    %v189 = vpack.c.bf16 %v105, %v98
    %v190 = vpack.c.bf16 %v106, %v99
    %v191 = vpack.c.bf16 %v107, %v100
    %v192 = vpack.c.bf16 %v108, %v101
    %v193 = vpack.c.bf16 %v109, %v102
    %v194 = vpack.c.bf16 %v110, %v103
    %v195 = vpack.c.bf16 %v118, %v111
    %v196 = vpack.c.bf16 %v119, %v112
    %v197 = vpack.c.bf16 %v120, %v113
    %v198 = vpack.c.bf16 %v121, %v114
    %v199 = vpack.c.bf16 %v122, %v115
    %v200 = vpack.c.bf16 %v123, %v116
    %v201 = vpack.c.bf16 %v124, %v117
    %v202 = vpack.c.bf16 %v132, %v125
    %v203 = vpack.c.bf16 %v133, %v126
    %v204 = vpack.c.bf16 %v134, %v127
    %v205 = vpack.c.bf16 %v135, %v128
    %v206 = vpack.c.bf16 %v136, %v129
    %v207 = vpack.c.bf16 %v137, %v130
    %v208 = vpack.c.bf16 %v138, %v131
    %v209 = vpack.c.bf16 %v146, %v139
    %v210 = vpack.c.bf16 %v147, %v140
    %v211 = vpack.c.bf16 %v148, %v141
    %v212 = vpack.c.bf16 %v149, %v142
    %v213 = vpack.c.bf16 %v150, %v143
    %v214 = vpack.c.bf16 %v151, %v144
    %v215 = vpack.c.bf16 %v152, %v145
    %v216 = vpack.c.bf16 %v160, %v153
    %v217 = vpack.c.bf16 %v161, %v154
    %v218 = vpack.c.bf16 %v162, %v155
    %v219 = vpack.c.bf16 %v163, %v156
    %v220 = vpack.c.bf16 %v164, %v157
    %v221 = vpack.c.bf16 %v165, %v158
    %v222 = vpack.c.bf16 %v166, %v159
    %v223 = vld [vmem:[#allocation2] sm:$0xff]
    %v224 = vld [vmem:[#allocation2 + $0x8] sm:$0xff]
    %v225 = vld [vmem:[#allocation2 + $0x10] sm:$0xff]
    %v226 = vld [vmem:[#allocation2 + $0x18] sm:$0xff]
    %v227 = vld [vmem:[#allocation2 + $0x20] sm:$0xff]
    %v228 = vld [vmem:[#allocation2 + $0x28] sm:$0xff]
    %v229 = vld [vmem:[#allocation2 + $0x30] sm:$0xff]
    %v230 = vld [vmem:[#allocation2 + $0x38] sm:$0xff]
    %v231 = vld [vmem:[#allocation2 + $0x40] sm:$0xff]
    %v232 = vld [vmem:[#allocation2 + $0x48] sm:$0xff]
    %v233 = vld [vmem:[#allocation2 + $0x50] sm:$0xff]
    %v234 = vld [vmem:[#allocation2 + $0x58] sm:$0xff]
    %v235 = vld [vmem:[#allocation2 + $0x60] sm:$0xff]
    %v236 = vld [vmem:[#allocation2 + $0x68] sm:$0xff]
    %v237 = vld [vmem:[#allocation2 + $0x70] sm:$0xff]
    %v238 = vld [vmem:[#allocation2 + $0x78] sm:$0xff]
    %v239 = vld [vmem:[#allocation2 + $0x80] sm:$0xff]
    %v240 = vld [vmem:[#allocation2 + $0x88] sm:$0xff]
    %v241 = vld [vmem:[#allocation2 + $0x90] sm:$0xff]
    %v242 = vld [vmem:[#allocation2 + $0x98] sm:$0xff]
    %v243 = vld [vmem:[#allocation2 + $0xa0] sm:$0xff]
    %v244 = vld [vmem:[#allocation2 + $0xa8] sm:$0xff]
    %v245 = vld [vmem:[#allocation2 + $0xb0] sm:$0xff]
    %v246 = vld [vmem:[#allocation2 + $0xb8] sm:$0xff]
    %v247 = vld [vmem:[#allocation2 + $0xc0] sm:$0xff]
    %v248 = vld [vmem:[#allocation2 + $0xc8] sm:$0xff]
    %v249 = vld [vmem:[#allocation2 + $0xd0] sm:$0xff]
    %v250 = vld [vmem:[#allocation2 + $0xd8] sm:$0xff]
    %v251 = vld [vmem:[#allocation2 + $0xe0] sm:$0xff]
    %v252 = vld [vmem:[#allocation2 + $0xe8] sm:$0xff]
    %v253 = vld [vmem:[#allocation2 + $0xf0] sm:$0xff]
    %v254 = vld [vmem:[#allocation2 + $0xf8] sm:$0xff]
    %v255 = vld [vmem:[#allocation2 + $0x100] sm:$0xff]
    %v256 = vld [vmem:[#allocation2 + $0x108] sm:$0xff]
    %v257 = vld [vmem:[#allocation2 + $0x110] sm:$0xff]
    %v258 = vld [vmem:[#allocation2 + $0x118] sm:$0xff]
    %v259 = vld [vmem:[#allocation2 + $0x120] sm:$0xff]
    %v260 = vld [vmem:[#allocation2 + $0x128] sm:$0xff]
    %v261 = vld [vmem:[#allocation2 + $0x130] sm:$0xff]
    %v262 = vld [vmem:[#allocation2 + $0x138] sm:$0xff]
    %v263 = vld [vmem:[#allocation2 + $0x140] sm:$0xff]
    %v264 = vld [vmem:[#allocation2 + $0x148] sm:$0xff]
    %v265 = vld [vmem:[#allocation2 + $0x150] sm:$0xff]
    %v266 = vld [vmem:[#allocation2 + $0x158] sm:$0xff]
    %v267 = vld [vmem:[#allocation2 + $0x160] sm:$0xff]
    %v268 = vld [vmem:[#allocation2 + $0x168] sm:$0xff]
    %v269 = vld [vmem:[#allocation2 + $0x170] sm:$0xff]
    %v270 = vld [vmem:[#allocation2 + $0x178] sm:$0xff]
    %v271 = vld [vmem:[#allocation2 + $0x180] sm:$0xff]
    %v272 = vld [vmem:[#allocation2 + $0x188] sm:$0xff]
    %v273 = vld [vmem:[#allocation2 + $0x190] sm:$0xff]
    %v274 = vld [vmem:[#allocation2 + $0x198] sm:$0xff]
    %v275 = vld [vmem:[#allocation2 + $0x1a0] sm:$0xff]
    %v276 = vld [vmem:[#allocation2 + $0x1a8] sm:$0xff]
    %v277 = vld [vmem:[#allocation2 + $0x1b0] sm:$0xff]
    %v278 = vld [vmem:[#allocation2 + $0x1b8] sm:$0xff]
    %v279 = vld [vmem:[#allocation2 + $0x1c0] sm:$0xff]
    %v280 = vld [vmem:[#allocation2 + $0x1c8] sm:$0xff]
    %v281 = vld [vmem:[#allocation2 + $0x1d0] sm:$0xff]
    %v282 = vld [vmem:[#allocation2 + $0x1d8] sm:$0xff]
    %v283 = vld [vmem:[#allocation2 + $0x1e0] sm:$0xff]
    %v284 = vld [vmem:[#allocation2 + $0x1e8] sm:$0xff]
    %v285 = vld [vmem:[#allocation2 + $0x1f0] sm:$0xff]
    %v286 = vld [vmem:[#allocation2 + $0x1f8] sm:$0xff]
    %v287 = vld [vmem:[#allocation2 + $0x200] sm:$0xff]
    %v288 = vld [vmem:[#allocation2 + $0x208] sm:$0xff]
    %v289 = vld [vmem:[#allocation2 + $0x210] sm:$0xff]
    %v290 = vld [vmem:[#allocation2 + $0x218] sm:$0xff]
    %v291 = vld [vmem:[#allocation2 + $0x220] sm:$0xff]
    %v292 = vld [vmem:[#allocation2 + $0x228] sm:$0xff]
    %v293 = vld [vmem:[#allocation2 + $0x230] sm:$0xff]
    %v294 = vld [vmem:[#allocation2 + $0x238] sm:$0xff]
    %v295 = vld [vmem:[#allocation2 + $0x240] sm:$0xff]
    %v296 = vld [vmem:[#allocation2 + $0x248] sm:$0xff]
    %v297 = vld [vmem:[#allocation2 + $0x250] sm:$0xff]
    %v298 = vld [vmem:[#allocation2 + $0x258] sm:$0xff]
    %v299 = vld [vmem:[#allocation2 + $0x260] sm:$0xff]
    %v300 = vld [vmem:[#allocation2 + $0x268] sm:$0xff]
    %v301 = vld [vmem:[#allocation2 + $0x270] sm:$0xff]
    %v302 = vld [vmem:[#allocation2 + $0x278] sm:$0xff]
    %v303 = vld [vmem:[#allocation2 + $0x280] sm:$0xff]
    %v304 = vld [vmem:[#allocation2 + $0x288] sm:$0xff]
    %v305 = vld [vmem:[#allocation2 + $0x290] sm:$0xff]
    %v306 = vld [vmem:[#allocation2 + $0x298] sm:$0xff]
    %v307 = vld [vmem:[#allocation2 + $0x2a0] sm:$0xff]
    %v308 = vld [vmem:[#allocation2 + $0x2a8] sm:$0xff]
    %v309 = vld [vmem:[#allocation2 + $0x2b0] sm:$0xff]
    %v310 = vld [vmem:[#allocation2 + $0x2b8] sm:$0xff]
    %v311 = vld [vmem:[#allocation2 + $0x2c0] sm:$0xff]
    %v312 = vld [vmem:[#allocation2 + $0x2c8] sm:$0xff]
    %v313 = vld [vmem:[#allocation2 + $0x2d0] sm:$0xff]
    %v314 = vld [vmem:[#allocation2 + $0x2d8] sm:$0xff]
    %v315 = vld [vmem:[#allocation2 + $0x2e0] sm:$0xff]
    %v316 = vld [vmem:[#allocation2 + $0x2e8] sm:$0xff]
    %v317 = vld [vmem:[#allocation2 + $0x2f0] sm:$0xff]
    %v318 = vld [vmem:[#allocation2 + $0x2f8] sm:$0xff]
    %v319 = vld [vmem:[#allocation2 + $0x300] sm:$0xff]
    %v320 = vld [vmem:[#allocation2 + $0x308] sm:$0xff]
    %v321 = vld [vmem:[#allocation2 + $0x310] sm:$0xff]
    %v322 = vld [vmem:[#allocation2 + $0x318] sm:$0xff]
    %v323 = vld [vmem:[#allocation2 + $0x320] sm:$0xff]
    %v324 = vld [vmem:[#allocation2 + $0x328] sm:$0xff]
    %v325 = vld [vmem:[#allocation2 + $0x330] sm:$0xff]
    %v326 = vld [vmem:[#allocation2 + $0x338] sm:$0xff]
    %v327 = vld [vmem:[#allocation2 + $0x340] sm:$0xff]
    %v328 = vld [vmem:[#allocation2 + $0x348] sm:$0xff]
    %v329 = vld [vmem:[#allocation2 + $0x350] sm:$0xff]
    %v330 = vld [vmem:[#allocation2 + $0x358] sm:$0xff]
    %v331 = vld [vmem:[#allocation2 + $0x360] sm:$0xff]
    %v332 = vld [vmem:[#allocation2 + $0x368] sm:$0xff]
    %v333 = vld [vmem:[#allocation2 + $0x370] sm:$0xff]
    %v334 = vld [vmem:[#allocation2 + $0x378] sm:$0xff]
    %v335 = vld [vmem:[#allocation2 + $0x380] sm:$0xff]
    %v336 = vld [vmem:[#allocation2 + $0x388] sm:$0xff]
    %v337 = vld [vmem:[#allocation2 + $0x390] sm:$0xff]
    %v338 = vld [vmem:[#allocation2 + $0x398] sm:$0xff]
    %v339 = vld [vmem:[#allocation2 + $0x3a0] sm:$0xff]
    %v340 = vld [vmem:[#allocation2 + $0x3a8] sm:$0xff]
    %v341 = vld [vmem:[#allocation2 + $0x3b0] sm:$0xff]
    %v342 = vld [vmem:[#allocation2 + $0x3b8] sm:$0xff]
    %v343 = vld [vmem:[#allocation2 + $0x3c0] sm:$0xff]
    %v344 = vld [vmem:[#allocation2 + $0x3c8] sm:$0xff]
    %v345 = vld [vmem:[#allocation2 + $0x3d0] sm:$0xff]
    %v346 = vld [vmem:[#allocation2 + $0x3d8] sm:$0xff]
    %v347 = vld [vmem:[#allocation2 + $0x3e0] sm:$0xff]
    %v348 = vld [vmem:[#allocation2 + $0x3e8] sm:$0xff]
    %v349 = vld [vmem:[#allocation2 + $0x3f0] sm:$0xff]
    %v350 = vld [vmem:[#allocation2 + $0x3f8] sm:$0xff]
    %v351 = vld [vmem:[#allocation2 + $0x400] sm:$0xff]
    %v352 = vld [vmem:[#allocation2 + $0x408] sm:$0xff]
    %v353 = vld [vmem:[#allocation2 + $0x410] sm:$0xff]
    %v354 = vld [vmem:[#allocation2 + $0x418] sm:$0xff]
    %v355 = vld [vmem:[#allocation2 + $0x420] sm:$0xff]
    %v356 = vld [vmem:[#allocation2 + $0x428] sm:$0xff]
    %v357 = vld [vmem:[#allocation2 + $0x430] sm:$0xff]
    %v358 = vld [vmem:[#allocation2 + $0x438] sm:$0xff]
    %v359 = vld [vmem:[#allocation2 + $0x440] sm:$0xff]
    %v360 = vld [vmem:[#allocation2 + $0x448] sm:$0xff]
    %v361 = vld [vmem:[#allocation2 + $0x450] sm:$0xff]
    %v362 = vld [vmem:[#allocation2 + $0x458] sm:$0xff]
    %v363 = vld [vmem:[#allocation2 + $0x460] sm:$0xff]
    %v364 = vld [vmem:[#allocation2 + $0x468] sm:$0xff]
    %v365 = vld [vmem:[#allocation2 + $0x470] sm:$0xff]
    %v366 = vld [vmem:[#allocation2 + $0x478] sm:$0xff]
    %v367 = vld [vmem:[#allocation2 + $0x480] sm:$0xff]
    %v368 = vld [vmem:[#allocation2 + $0x488] sm:$0xff]
    %v369 = vld [vmem:[#allocation2 + $0x490] sm:$0xff]
    %v370 = vld [vmem:[#allocation2 + $0x498] sm:$0xff]
    %v371 = vld [vmem:[#allocation2 + $0x4a0] sm:$0xff]
    %v372 = vld [vmem:[#allocation2 + $0x4a8] sm:$0xff]
    %v373 = vld [vmem:[#allocation2 + $0x4b0] sm:$0xff]
    %v374 = vld [vmem:[#allocation2 + $0x4b8] sm:$0xff]
    %v375 = vld [vmem:[#allocation2 + $0x4c0] sm:$0xff]
    %v376 = vld [vmem:[#allocation2 + $0x4c8] sm:$0xff]
    %v377 = vld [vmem:[#allocation2 + $0x4d0] sm:$0xff]
    %v378 = vld [vmem:[#allocation2 + $0x4d8] sm:$0xff]
    %v379 = vld [vmem:[#allocation2 + $0x4e0] sm:$0xff]
    %v380 = vld [vmem:[#allocation2 + $0x4e8] sm:$0xff]
    %v381 = vld [vmem:[#allocation2 + $0x4f0] sm:$0xff]
    %v382 = vld [vmem:[#allocation2 + $0x4f8] sm:$0xff]
    %v383 = vld [vmem:[#allocation2 + $0x500] sm:$0xff]
    %v384 = vld [vmem:[#allocation2 + $0x508] sm:$0xff]
    %v385 = vld [vmem:[#allocation2 + $0x510] sm:$0xff]
    %v386 = vld [vmem:[#allocation2 + $0x518] sm:$0xff]
    %v387 = vld [vmem:[#allocation2 + $0x520] sm:$0xff]
    %v388 = vld [vmem:[#allocation2 + $0x528] sm:$0xff]
    %v389 = vld [vmem:[#allocation2 + $0x530] sm:$0xff]
    %v390 = vld [vmem:[#allocation2 + $0x538] sm:$0xff]
    %v391 = vld [vmem:[#allocation2 + $0x540] sm:$0xff]
    %v392 = vld [vmem:[#allocation2 + $0x548] sm:$0xff]
    %v393 = vld [vmem:[#allocation2 + $0x550] sm:$0xff]
    %v394 = vld [vmem:[#allocation2 + $0x558] sm:$0xff]
    %v395 = vld [vmem:[#allocation2 + $0x560] sm:$0xff]
    %v396 = vld [vmem:[#allocation2 + $0x568] sm:$0xff]
    %v397 = vld [vmem:[#allocation2 + $0x570] sm:$0xff]
    %v398 = vld [vmem:[#allocation2 + $0x578] sm:$0xff]
    %v399 = vld [vmem:[#allocation2 + $0x580] sm:$0xff]
    %v400 = vld [vmem:[#allocation2 + $0x588] sm:$0xff]
    %v401 = vld [vmem:[#allocation2 + $0x590] sm:$0xff]
    %v402 = vld [vmem:[#allocation2 + $0x598] sm:$0xff]
    %v403 = vld [vmem:[#allocation2 + $0x5a0] sm:$0xff]
    %v404 = vld [vmem:[#allocation2 + $0x5a8] sm:$0xff]
    %v405 = vld [vmem:[#allocation2 + $0x5b0] sm:$0xff]
    %v406 = vld [vmem:[#allocation2 + $0x5b8] sm:$0xff]
    %v407 = vld [vmem:[#allocation2 + $0x5c0] sm:$0xff]
    %v408 = vld [vmem:[#allocation2 + $0x5c8] sm:$0xff]
    %v409 = vld [vmem:[#allocation2 + $0x5d0] sm:$0xff]
    %v410 = vld [vmem:[#allocation2 + $0x5d8] sm:$0xff]
    %v411 = vld [vmem:[#allocation2 + $0x5e0] sm:$0xff]
    %v412 = vld [vmem:[#allocation2 + $0x5e8] sm:$0xff]
    %v413 = vld [vmem:[#allocation2 + $0x5f0] sm:$0xff]
    %v414 = vld [vmem:[#allocation2 + $0x5f8] sm:$0xff]
    %v415 = vld [vmem:[#allocation2 + $0x600] sm:$0xff]
    %v416 = vld [vmem:[#allocation2 + $0x608] sm:$0xff]
    %v417 = vld [vmem:[#allocation2 + $0x610] sm:$0xff]
    %v418 = vld [vmem:[#allocation2 + $0x618] sm:$0xff]
    %v419 = vld [vmem:[%s2] sm:$0xf]
    %v421 = vlaneseq
    %v422 = vshrl.u32 %v421, 7
    %v423 = vsub.s32 0, %v422
    %v424 = vrot.slane %v419, %v423
    %v425 = vlaneseq
    %v426 = vshrl.u32 %v425, 7
    %v427 = vsub.s32 1, %v426
    %v428 = vrot.slane %v419, %v427
    %v429 = vlaneseq
    %v430 = vshrl.u32 %v429, 7
    %v431 = vsub.s32 2, %v430
    %v432 = vrot.slane %v419, %v431
    %v433 = vlaneseq
    %v434 = vshrl.u32 %v433, 7
    %v435 = vsub.s32 3, %v434
    %v436 = vrot.slane %v419, %v435
    %v637 = vunpack.c.l.b16 %v223
    %v638 = vunpack.c.h.b16 %v223
    %v639 = vunpack.c.l.b16 %v224
    %v640 = vunpack.c.h.b16 %v224
    %v641 = vunpack.c.l.b16 %v225
    %v642 = vunpack.c.h.b16 %v225
    %v643 = vunpack.c.l.b16 %v226
    %v644 = vunpack.c.h.b16 %v226
    %v645 = vunpack.c.l.b16 %v227
    %v646 = vunpack.c.h.b16 %v227
    %v647 = vunpack.c.l.b16 %v228
    %v648 = vunpack.c.h.b16 %v228
    %v649 = vunpack.c.l.b16 %v229
    %v650 = vunpack.c.h.b16 %v229
    %v651 = vunpack.c.l.b16 %v230
    %v652 = vunpack.c.h.b16 %v230
    %v653 = vunpack.c.l.b16 %v231
    %v654 = vunpack.c.h.b16 %v231
    %v655 = vunpack.c.l.b16 %v232
    %v656 = vunpack.c.h.b16 %v232
    %v657 = vunpack.c.l.b16 %v233
    %v658 = vunpack.c.h.b16 %v233
    %v659 = vunpack.c.l.b16 %v234
    %v660 = vunpack.c.h.b16 %v234
    %v661 = vunpack.c.l.b16 %v235
    %v662 = vunpack.c.h.b16 %v235
    %v663 = vunpack.c.l.b16 %v236
    %v664 = vunpack.c.h.b16 %v236
    %v665 = vunpack.c.l.b16 %v237
    %v666 = vunpack.c.h.b16 %v237
    %v667 = vunpack.c.l.b16 %v238
    %v668 = vunpack.c.h.b16 %v238
    %v669 = vunpack.c.l.b16 %v239
    %v670 = vunpack.c.h.b16 %v239
    %v671 = vunpack.c.l.b16 %v240
    %v672 = vunpack.c.h.b16 %v240
    %v673 = vunpack.c.l.b16 %v241
    %v674 = vunpack.c.h.b16 %v241
    %v675 = vunpack.c.l.b16 %v242
    %v676 = vunpack.c.h.b16 %v242
    %v677 = vunpack.c.l.b16 %v243
    %v678 = vunpack.c.h.b16 %v243
    %v679 = vunpack.c.l.b16 %v244
    %v680 = vunpack.c.h.b16 %v244
    %v681 = vunpack.c.l.b16 %v245
    %v682 = vunpack.c.h.b16 %v245
    %v683 = vunpack.c.l.b16 %v246
    %v684 = vunpack.c.h.b16 %v246
    %v685 = vunpack.c.l.b16 %v247
    %v686 = vunpack.c.h.b16 %v247
    %v687 = vunpack.c.l.b16 %v248
    %v688 = vunpack.c.h.b16 %v248
    %v689 = vunpack.c.l.b16 %v249
    %v690 = vunpack.c.h.b16 %v249
    %v691 = vunpack.c.l.b16 %v250
    %v692 = vunpack.c.h.b16 %v250
    %v693 = vunpack.c.l.b16 %v251
    %v694 = vunpack.c.h.b16 %v251
    %v695 = vunpack.c.l.b16 %v252
    %v696 = vunpack.c.h.b16 %v252
    %v697 = vunpack.c.l.b16 %v253
    %v698 = vunpack.c.h.b16 %v253
    %v699 = vunpack.c.l.b16 %v254
    %v700 = vunpack.c.h.b16 %v254
    %v701 = vunpack.c.l.b16 %v255
    %v702 = vunpack.c.h.b16 %v255
    %v703 = vunpack.c.l.b16 %v256
    %v704 = vunpack.c.h.b16 %v256
    %v705 = vunpack.c.l.b16 %v257
    %v706 = vunpack.c.h.b16 %v257
    %v707 = vunpack.c.l.b16 %v258
    %v708 = vunpack.c.h.b16 %v258
    %v709 = vunpack.c.l.b16 %v259
    %v710 = vunpack.c.h.b16 %v259
    %v711 = vunpack.c.l.b16 %v260
    %v712 = vunpack.c.h.b16 %v260
    %v713 = vunpack.c.l.b16 %v261
    %v714 = vunpack.c.h.b16 %v261
    %v715 = vunpack.c.l.b16 %v262
    %v716 = vunpack.c.h.b16 %v262
    %v717 = vunpack.c.l.b16 %v263
    %v718 = vunpack.c.h.b16 %v263
    %v719 = vunpack.c.l.b16 %v264
    %v720 = vunpack.c.h.b16 %v264
    %v721 = vunpack.c.l.b16 %v265
    %v722 = vunpack.c.h.b16 %v265
    %v723 = vunpack.c.l.b16 %v266
    %v724 = vunpack.c.h.b16 %v266
    %v725 = vunpack.c.l.b16 %v267
    %v726 = vunpack.c.h.b16 %v267
    %v727 = vunpack.c.l.b16 %v268
    %v728 = vunpack.c.h.b16 %v268
    %v729 = vunpack.c.l.b16 %v269
    %v730 = vunpack.c.h.b16 %v269
    %v731 = vunpack.c.l.b16 %v270
    %v732 = vunpack.c.h.b16 %v270
    %v733 = vunpack.c.l.b16 %v271
    %v734 = vunpack.c.h.b16 %v271
    %v735 = vunpack.c.l.b16 %v272
    %v736 = vunpack.c.h.b16 %v272
    %v737 = vunpack.c.l.b16 %v273
    %v738 = vunpack.c.h.b16 %v273
    %v739 = vunpack.c.l.b16 %v274
    %v740 = vunpack.c.h.b16 %v274
    %v741 = vunpack.c.l.b16 %v275
    %v742 = vunpack.c.h.b16 %v275
    %v743 = vunpack.c.l.b16 %v276
    %v744 = vunpack.c.h.b16 %v276
    %v745 = vunpack.c.l.b16 %v277
    %v746 = vunpack.c.h.b16 %v277
    %v747 = vunpack.c.l.b16 %v278
    %v748 = vunpack.c.h.b16 %v278
    %v749 = vunpack.c.l.b16 %v279
    %v750 = vunpack.c.h.b16 %v279
    %v751 = vunpack.c.l.b16 %v280
    %v752 = vunpack.c.h.b16 %v280
    %v753 = vunpack.c.l.b16 %v281
    %v754 = vunpack.c.h.b16 %v281
    %v755 = vunpack.c.l.b16 %v282
    %v756 = vunpack.c.h.b16 %v282
    %v757 = vunpack.c.l.b16 %v283
    %v758 = vunpack.c.h.b16 %v283
    %v759 = vunpack.c.l.b16 %v284
    %v760 = vunpack.c.h.b16 %v284
    %v761 = vunpack.c.l.b16 %v285
    %v762 = vunpack.c.h.b16 %v285
    %v763 = vunpack.c.l.b16 %v286
    %v764 = vunpack.c.h.b16 %v286
    %v765 = vunpack.c.l.b16 %v287
    %v766 = vunpack.c.h.b16 %v287
    %v767 = vunpack.c.l.b16 %v288
    %v768 = vunpack.c.h.b16 %v288
    %v769 = vunpack.c.l.b16 %v289
    %v770 = vunpack.c.h.b16 %v289
    %v771 = vunpack.c.l.b16 %v290
    %v772 = vunpack.c.h.b16 %v290
    %v773 = vunpack.c.l.b16 %v291
    %v774 = vunpack.c.h.b16 %v291
    %v775 = vunpack.c.l.b16 %v292
    %v776 = vunpack.c.h.b16 %v292
    %v777 = vunpack.c.l.b16 %v293
    %v778 = vunpack.c.h.b16 %v293
    %v779 = vunpack.c.l.b16 %v294
    %v780 = vunpack.c.h.b16 %v294
    %v781 = vunpack.c.l.b16 %v295
    %v782 = vunpack.c.h.b16 %v295
    %v783 = vunpack.c.l.b16 %v296
    %v784 = vunpack.c.h.b16 %v296
    %v785 = vunpack.c.l.b16 %v297
    %v786 = vunpack.c.h.b16 %v297
    %v787 = vunpack.c.l.b16 %v298
    %v788 = vunpack.c.h.b16 %v298
    %v789 = vunpack.c.l.b16 %v299
    %v790 = vunpack.c.h.b16 %v299
    %v791 = vunpack.c.l.b16 %v300
    %v792 = vunpack.c.h.b16 %v300
    %v793 = vunpack.c.l.b16 %v301
    %v794 = vunpack.c.h.b16 %v301
    %v795 = vunpack.c.l.b16 %v302
    %v796 = vunpack.c.h.b16 %v302
    %v797 = vunpack.c.l.b16 %v303
    %v798 = vunpack.c.h.b16 %v303
    %v799 = vunpack.c.l.b16 %v304
    %v800 = vunpack.c.h.b16 %v304
    %v801 = vunpack.c.l.b16 %v305
    %v802 = vunpack.c.h.b16 %v305
    %v803 = vunpack.c.l.b16 %v306
    %v804 = vunpack.c.h.b16 %v306
    %v805 = vunpack.c.l.b16 %v307
    %v806 = vunpack.c.h.b16 %v307
    %v807 = vunpack.c.l.b16 %v308
    %v808 = vunpack.c.h.b16 %v308
    %v809 = vunpack.c.l.b16 %v309
    %v810 = vunpack.c.h.b16 %v309
    %v811 = vunpack.c.l.b16 %v310
    %v812 = vunpack.c.h.b16 %v310
    %v813 = vunpack.c.l.b16 %v311
    %v814 = vunpack.c.h.b16 %v311
    %v815 = vunpack.c.l.b16 %v312
    %v816 = vunpack.c.h.b16 %v312
    %v817 = vunpack.c.l.b16 %v313
    %v818 = vunpack.c.h.b16 %v313
    %v819 = vunpack.c.l.b16 %v314
    %v820 = vunpack.c.h.b16 %v314
    %v821 = vunpack.c.l.b16 %v315
    %v822 = vunpack.c.h.b16 %v315
    %v823 = vunpack.c.l.b16 %v316
    %v824 = vunpack.c.h.b16 %v316
    %v825 = vunpack.c.l.b16 %v317
    %v826 = vunpack.c.h.b16 %v317
    %v827 = vunpack.c.l.b16 %v318
    %v828 = vunpack.c.h.b16 %v318
    %v829 = vunpack.c.l.b16 %v319
    %v830 = vunpack.c.h.b16 %v319
    %v831 = vunpack.c.l.b16 %v320
    %v832 = vunpack.c.h.b16 %v320
    %v833 = vunpack.c.l.b16 %v321
    %v834 = vunpack.c.h.b16 %v321
    %v835 = vunpack.c.l.b16 %v322
    %v836 = vunpack.c.h.b16 %v322
    %v837 = vunpack.c.l.b16 %v323
    %v838 = vunpack.c.h.b16 %v323
    %v839 = vunpack.c.l.b16 %v324
    %v840 = vunpack.c.h.b16 %v324
    %v841 = vunpack.c.l.b16 %v325
    %v842 = vunpack.c.h.b16 %v325
    %v843 = vunpack.c.l.b16 %v326
    %v844 = vunpack.c.h.b16 %v326
    %v845 = vunpack.c.l.b16 %v327
    %v846 = vunpack.c.h.b16 %v327
    %v847 = vunpack.c.l.b16 %v328
    %v848 = vunpack.c.h.b16 %v328
    %v849 = vunpack.c.l.b16 %v329
    %v850 = vunpack.c.h.b16 %v329
    %v851 = vunpack.c.l.b16 %v330
    %v852 = vunpack.c.h.b16 %v330
    %v853 = vunpack.c.l.b16 %v331
    %v854 = vunpack.c.h.b16 %v331
    %v855 = vunpack.c.l.b16 %v332
    %v856 = vunpack.c.h.b16 %v332
    %v857 = vunpack.c.l.b16 %v333
    %v858 = vunpack.c.h.b16 %v333
    %v859 = vunpack.c.l.b16 %v334
    %v860 = vunpack.c.h.b16 %v334
    %v861 = vunpack.c.l.b16 %v335
    %v862 = vunpack.c.h.b16 %v335
    %v863 = vunpack.c.l.b16 %v336
    %v864 = vunpack.c.h.b16 %v336
    %v865 = vunpack.c.l.b16 %v337
    %v866 = vunpack.c.h.b16 %v337
    %v867 = vunpack.c.l.b16 %v338
    %v868 = vunpack.c.h.b16 %v338
    %v869 = vunpack.c.l.b16 %v339
    %v870 = vunpack.c.h.b16 %v339
    %v871 = vunpack.c.l.b16 %v340
    %v872 = vunpack.c.h.b16 %v340
    %v873 = vunpack.c.l.b16 %v341
    %v874 = vunpack.c.h.b16 %v341
    %v875 = vunpack.c.l.b16 %v342
    %v876 = vunpack.c.h.b16 %v342
    %v877 = vunpack.c.l.b16 %v343
    %v878 = vunpack.c.h.b16 %v343
    %v879 = vunpack.c.l.b16 %v344
    %v880 = vunpack.c.h.b16 %v344
    %v881 = vunpack.c.l.b16 %v345
    %v882 = vunpack.c.h.b16 %v345
    %v883 = vunpack.c.l.b16 %v346
    %v884 = vunpack.c.h.b16 %v346
    %v885 = vunpack.c.l.b16 %v347
    %v886 = vunpack.c.h.b16 %v347
    %v887 = vunpack.c.l.b16 %v348
    %v888 = vunpack.c.h.b16 %v348
    %v889 = vunpack.c.l.b16 %v349
    %v890 = vunpack.c.h.b16 %v349
    %v891 = vunpack.c.l.b16 %v350
    %v892 = vunpack.c.h.b16 %v350
    %v893 = vunpack.c.l.b16 %v351
    %v894 = vunpack.c.h.b16 %v351
    %v895 = vunpack.c.l.b16 %v352
    %v896 = vunpack.c.h.b16 %v352
    %v897 = vunpack.c.l.b16 %v353
    %v898 = vunpack.c.h.b16 %v353
    %v899 = vunpack.c.l.b16 %v354
    %v900 = vunpack.c.h.b16 %v354
    %v901 = vunpack.c.l.b16 %v355
    %v902 = vunpack.c.h.b16 %v355
    %v903 = vunpack.c.l.b16 %v356
    %v904 = vunpack.c.h.b16 %v356
    %v905 = vunpack.c.l.b16 %v357
    %v906 = vunpack.c.h.b16 %v357
    %v907 = vunpack.c.l.b16 %v358
    %v908 = vunpack.c.h.b16 %v358
    %v909 = vunpack.c.l.b16 %v359
    %v910 = vunpack.c.h.b16 %v359
    %v911 = vunpack.c.l.b16 %v360
    %v912 = vunpack.c.h.b16 %v360
    %v913 = vunpack.c.l.b16 %v361
    %v914 = vunpack.c.h.b16 %v361
    %v915 = vunpack.c.l.b16 %v362
    %v916 = vunpack.c.h.b16 %v362
    %v917 = vunpack.c.l.b16 %v363
    %v918 = vunpack.c.h.b16 %v363
    %v919 = vunpack.c.l.b16 %v364
    %v920 = vunpack.c.h.b16 %v364
    %v921 = vunpack.c.l.b16 %v365
    %v922 = vunpack.c.h.b16 %v365
    %v923 = vunpack.c.l.b16 %v366
    %v924 = vunpack.c.h.b16 %v366
    %v925 = vunpack.c.l.b16 %v367
    %v926 = vunpack.c.h.b16 %v367
    %v927 = vunpack.c.l.b16 %v368
    %v928 = vunpack.c.h.b16 %v368
    %v929 = vunpack.c.l.b16 %v369
    %v930 = vunpack.c.h.b16 %v369
    %v931 = vunpack.c.l.b16 %v370
    %v932 = vunpack.c.h.b16 %v370
    %v933 = vunpack.c.l.b16 %v371
    %v934 = vunpack.c.h.b16 %v371
    %v935 = vunpack.c.l.b16 %v372
    %v936 = vunpack.c.h.b16 %v372
    %v937 = vunpack.c.l.b16 %v373
    %v938 = vunpack.c.h.b16 %v373
    %v939 = vunpack.c.l.b16 %v374
    %v940 = vunpack.c.h.b16 %v374
    %v941 = vunpack.c.l.b16 %v375
    %v942 = vunpack.c.h.b16 %v375
    %v943 = vunpack.c.l.b16 %v376
    %v944 = vunpack.c.h.b16 %v376
    %v945 = vunpack.c.l.b16 %v377
    %v946 = vunpack.c.h.b16 %v377
    %v947 = vunpack.c.l.b16 %v378
    %v948 = vunpack.c.h.b16 %v378
    %v949 = vunpack.c.l.b16 %v379
    %v950 = vunpack.c.h.b16 %v379
    %v951 = vunpack.c.l.b16 %v380
    %v952 = vunpack.c.h.b16 %v380
    %v953 = vunpack.c.l.b16 %v381
    %v954 = vunpack.c.h.b16 %v381
    %v955 = vunpack.c.l.b16 %v382
    %v956 = vunpack.c.h.b16 %v382
    %v957 = vunpack.c.l.b16 %v383
    %v958 = vunpack.c.h.b16 %v383
    %v959 = vunpack.c.l.b16 %v384
    %v960 = vunpack.c.h.b16 %v384
    %v961 = vunpack.c.l.b16 %v385
    %v962 = vunpack.c.h.b16 %v385
    %v963 = vunpack.c.l.b16 %v386
    %v964 = vunpack.c.h.b16 %v386
    %v965 = vunpack.c.l.b16 %v387
    %v966 = vunpack.c.h.b16 %v387
    %v967 = vunpack.c.l.b16 %v388
    %v968 = vunpack.c.h.b16 %v388
    %v969 = vunpack.c.l.b16 %v389
    %v970 = vunpack.c.h.b16 %v389
    %v971 = vunpack.c.l.b16 %v390
    %v972 = vunpack.c.h.b16 %v390
    %v973 = vunpack.c.l.b16 %v391
    %v974 = vunpack.c.h.b16 %v391
    %v975 = vunpack.c.l.b16 %v392
    %v976 = vunpack.c.h.b16 %v392
    %v977 = vunpack.c.l.b16 %v393
    %v978 = vunpack.c.h.b16 %v393
    %v979 = vunpack.c.l.b16 %v394
    %v980 = vunpack.c.h.b16 %v394
    %v981 = vunpack.c.l.b16 %v395
    %v982 = vunpack.c.h.b16 %v395
    %v983 = vunpack.c.l.b16 %v396
    %v984 = vunpack.c.h.b16 %v396
    %v985 = vunpack.c.l.b16 %v397
    %v986 = vunpack.c.h.b16 %v397
    %v987 = vunpack.c.l.b16 %v398
    %v988 = vunpack.c.h.b16 %v398
    %v989 = vunpack.c.l.b16 %v399
    %v990 = vunpack.c.h.b16 %v399
    %v991 = vunpack.c.l.b16 %v400
    %v992 = vunpack.c.h.b16 %v400
    %v993 = vunpack.c.l.b16 %v401
    %v994 = vunpack.c.h.b16 %v401
    %v995 = vunpack.c.l.b16 %v402
    %v996 = vunpack.c.h.b16 %v402
    %v997 = vunpack.c.l.b16 %v403
    %v998 = vunpack.c.h.b16 %v403
    %v999 = vunpack.c.l.b16 %v404
    %v1000 = vunpack.c.h.b16 %v404
    %v1001 = vunpack.c.l.b16 %v405
    %v1002 = vunpack.c.h.b16 %v405
    %v1003 = vunpack.c.l.b16 %v406
    %v1004 = vunpack.c.h.b16 %v406
    %v1005 = vunpack.c.l.b16 %v407
    %v1006 = vunpack.c.h.b16 %v407
    %v1007 = vunpack.c.l.b16 %v408
    %v1008 = vunpack.c.h.b16 %v408
    %v1009 = vunpack.c.l.b16 %v409
    %v1010 = vunpack.c.h.b16 %v409
    %v1011 = vunpack.c.l.b16 %v410
    %v1012 = vunpack.c.h.b16 %v410
    %v1013 = vunpack.c.l.b16 %v411
    %v1014 = vunpack.c.h.b16 %v411
    %v1015 = vunpack.c.l.b16 %v412
    %v1016 = vunpack.c.h.b16 %v412
    %v1017 = vunpack.c.l.b16 %v413
    %v1018 = vunpack.c.h.b16 %v413
    %v1019 = vunpack.c.l.b16 %v414
    %v1020 = vunpack.c.h.b16 %v414
    %v1021 = vunpack.c.l.b16 %v415
    %v1022 = vunpack.c.h.b16 %v415
    %v1023 = vunpack.c.l.b16 %v416
    %v1024 = vunpack.c.h.b16 %v416
    %v1025 = vunpack.c.l.b16 %v417
    %v1026 = vunpack.c.h.b16 %v417
    %v1027 = vunpack.c.l.b16 %v418
    %v1028 = vunpack.c.h.b16 %v418
    %v1029 = vpack.c.b16 %v641, %v637
    %v1030 = vpack.c.b16 %v642, %v638
    %v1031 = vpack.c.b16 %v643, %v639
    %v1032 = vpack.c.b16 %v644, %v640
    %v1033 = vpack.c.b16 %v649, %v645
    %v1034 = vpack.c.b16 %v650, %v646
    %v1035 = vpack.c.b16 %v651, %v647
    %v1036 = vpack.c.b16 %v652, %v648
    %v1037 = vpack.c.b16 %v657, %v653
    %v1038 = vpack.c.b16 %v658, %v654
    %v1039 = vpack.c.b16 %v659, %v655
    %v1040 = vpack.c.b16 %v660, %v656
    %v1041 = vpack.c.b16 %v665, %v661
    %v1042 = vpack.c.b16 %v666, %v662
    %v1043 = vpack.c.b16 %v667, %v663
    %v1044 = vpack.c.b16 %v668, %v664
    %v1045 = vpack.c.b16 %v673, %v669
    %v1046 = vpack.c.b16 %v674, %v670
    %v1047 = vpack.c.b16 %v675, %v671
    %v1048 = vpack.c.b16 %v676, %v672
    %v1049 = vpack.c.b16 %v681, %v677
    %v1050 = vpack.c.b16 %v682, %v678
    %v1051 = vpack.c.b16 %v683, %v679
    %v1052 = vpack.c.b16 %v684, %v680
    %v1053 = vpack.c.b16 %v689, %v685
    %v1054 = vpack.c.b16 %v690, %v686
    %v1055 = vpack.c.b16 %v691, %v687
    %v1056 = vpack.c.b16 %v692, %v688
    %v1057 = vpack.c.b16 %v697, %v693
    %v1058 = vpack.c.b16 %v698, %v694
    %v1059 = vpack.c.b16 %v699, %v695
    %v1060 = vpack.c.b16 %v700, %v696
    %v1061 = vpack.c.b16 %v705, %v701
    %v1062 = vpack.c.b16 %v706, %v702
    %v1063 = vpack.c.b16 %v707, %v703
    %v1064 = vpack.c.b16 %v708, %v704
    %v1065 = vpack.c.b16 %v713, %v709
    %v1066 = vpack.c.b16 %v714, %v710
    %v1067 = vpack.c.b16 %v715, %v711
    %v1068 = vpack.c.b16 %v716, %v712
    %v1069 = vpack.c.b16 %v721, %v717
    %v1070 = vpack.c.b16 %v722, %v718
    %v1071 = vpack.c.b16 %v723, %v719
    %v1072 = vpack.c.b16 %v724, %v720
    %v1073 = vpack.c.b16 %v729, %v725
    %v1074 = vpack.c.b16 %v730, %v726
    %v1075 = vpack.c.b16 %v731, %v727
    %v1076 = vpack.c.b16 %v732, %v728
    %v1077 = vpack.c.b16 %v737, %v733
    %v1078 = vpack.c.b16 %v738, %v734
    %v1079 = vpack.c.b16 %v739, %v735
    %v1080 = vpack.c.b16 %v740, %v736
    %v1081 = vpack.c.b16 %v745, %v741
    %v1082 = vpack.c.b16 %v746, %v742
    %v1083 = vpack.c.b16 %v747, %v743
    %v1084 = vpack.c.b16 %v748, %v744
    %v1085 = vpack.c.b16 %v753, %v749
    %v1086 = vpack.c.b16 %v754, %v750
    %v1087 = vpack.c.b16 %v755, %v751
    %v1088 = vpack.c.b16 %v756, %v752
    %v1089 = vpack.c.b16 %v761, %v757
    %v1090 = vpack.c.b16 %v762, %v758
    %v1091 = vpack.c.b16 %v763, %v759
    %v1092 = vpack.c.b16 %v764, %v760
    %v1093 = vpack.c.b16 %v769, %v765
    %v1094 = vpack.c.b16 %v770, %v766
    %v1095 = vpack.c.b16 %v771, %v767
    %v1096 = vpack.c.b16 %v772, %v768
    %v1097 = vpack.c.b16 %v777, %v773
    %v1098 = vpack.c.b16 %v778, %v774
    %v1099 = vpack.c.b16 %v779, %v775
    %v1100 = vpack.c.b16 %v780, %v776
    %v1101 = vpack.c.b16 %v785, %v781
    %v1102 = vpack.c.b16 %v786, %v782
    %v1103 = vpack.c.b16 %v787, %v783
    %v1104 = vpack.c.b16 %v788, %v784
    %v1105 = vpack.c.b16 %v793, %v789
    %v1106 = vpack.c.b16 %v794, %v790
    %v1107 = vpack.c.b16 %v795, %v791
    %v1108 = vpack.c.b16 %v796, %v792
    %v1109 = vpack.c.b16 %v801, %v797
    %v1110 = vpack.c.b16 %v802, %v798
    %v1111 = vpack.c.b16 %v803, %v799
    %v1112 = vpack.c.b16 %v804, %v800
    %v1113 = vpack.c.b16 %v809, %v805
    %v1114 = vpack.c.b16 %v810, %v806
    %v1115 = vpack.c.b16 %v811, %v807
    %v1116 = vpack.c.b16 %v812, %v808
    %v1117 = vpack.c.b16 %v817, %v813
    %v1118 = vpack.c.b16 %v818, %v814
    %v1119 = vpack.c.b16 %v819, %v815
    %v1120 = vpack.c.b16 %v820, %v816
    %v1121 = vpack.c.b16 %v825, %v821
    %v1122 = vpack.c.b16 %v826, %v822
    %v1123 = vpack.c.b16 %v827, %v823
    %v1124 = vpack.c.b16 %v828, %v824
    %v1125 = vpack.c.b16 %v833, %v829
    %v1126 = vpack.c.b16 %v834, %v830
    %v1127 = vpack.c.b16 %v835, %v831
    %v1128 = vpack.c.b16 %v836, %v832
    %v1129 = vpack.c.b16 %v841, %v837
    %v1130 = vpack.c.b16 %v842, %v838
    %v1131 = vpack.c.b16 %v843, %v839
    %v1132 = vpack.c.b16 %v844, %v840
    %v1133 = vpack.c.b16 %v849, %v845
    %v1134 = vpack.c.b16 %v850, %v846
    %v1135 = vpack.c.b16 %v851, %v847
    %v1136 = vpack.c.b16 %v852, %v848
    %v1137 = vpack.c.b16 %v857, %v853
    %v1138 = vpack.c.b16 %v858, %v854
    %v1139 = vpack.c.b16 %v859, %v855
    %v1140 = vpack.c.b16 %v860, %v856
    %v1141 = vpack.c.b16 %v865, %v861
    %v1142 = vpack.c.b16 %v866, %v862
    %v1143 = vpack.c.b16 %v867, %v863
    %v1144 = vpack.c.b16 %v868, %v864
    %v1145 = vpack.c.b16 %v873, %v869
    %v1146 = vpack.c.b16 %v874, %v870
    %v1147 = vpack.c.b16 %v875, %v871
    %v1148 = vpack.c.b16 %v876, %v872
    %v1149 = vpack.c.b16 %v881, %v877
    %v1150 = vpack.c.b16 %v882, %v878
    %v1151 = vpack.c.b16 %v883, %v879
    %v1152 = vpack.c.b16 %v884, %v880
    %v1153 = vpack.c.b16 %v889, %v885
    %v1154 = vpack.c.b16 %v890, %v886
    %v1155 = vpack.c.b16 %v891, %v887
    %v1156 = vpack.c.b16 %v892, %v888
    %v1157 = vpack.c.b16 %v897, %v893
    %v1158 = vpack.c.b16 %v898, %v894
    %v1159 = vpack.c.b16 %v899, %v895
    %v1160 = vpack.c.b16 %v900, %v896
    %v1161 = vpack.c.b16 %v905, %v901
    %v1162 = vpack.c.b16 %v906, %v902
    %v1163 = vpack.c.b16 %v907, %v903
    %v1164 = vpack.c.b16 %v908, %v904
    %v1165 = vpack.c.b16 %v913, %v909
    %v1166 = vpack.c.b16 %v914, %v910
    %v1167 = vpack.c.b16 %v915, %v911
    %v1168 = vpack.c.b16 %v916, %v912
    %v1169 = vpack.c.b16 %v921, %v917
    %v1170 = vpack.c.b16 %v922, %v918
    %v1171 = vpack.c.b16 %v923, %v919
    %v1172 = vpack.c.b16 %v924, %v920
    %v1173 = vpack.c.b16 %v929, %v925
    %v1174 = vpack.c.b16 %v930, %v926
    %v1175 = vpack.c.b16 %v931, %v927
    %v1176 = vpack.c.b16 %v932, %v928
    %v1177 = vpack.c.b16 %v937, %v933
    %v1178 = vpack.c.b16 %v938, %v934
    %v1179 = vpack.c.b16 %v939, %v935
    %v1180 = vpack.c.b16 %v940, %v936
    %v1181 = vpack.c.b16 %v945, %v941
    %v1182 = vpack.c.b16 %v946, %v942
    %v1183 = vpack.c.b16 %v947, %v943
    %v1184 = vpack.c.b16 %v948, %v944
    %v1185 = vpack.c.b16 %v953, %v949
    %v1186 = vpack.c.b16 %v954, %v950
    %v1187 = vpack.c.b16 %v955, %v951
    %v1188 = vpack.c.b16 %v956, %v952
    %v1189 = vpack.c.b16 %v961, %v957
    %v1190 = vpack.c.b16 %v962, %v958
    %v1191 = vpack.c.b16 %v963, %v959
    %v1192 = vpack.c.b16 %v964, %v960
    %v1193 = vpack.c.b16 %v969, %v965
    %v1194 = vpack.c.b16 %v970, %v966
    %v1195 = vpack.c.b16 %v971, %v967
    %v1196 = vpack.c.b16 %v972, %v968
    %v1197 = vpack.c.b16 %v977, %v973
    %v1198 = vpack.c.b16 %v978, %v974
    %v1199 = vpack.c.b16 %v979, %v975
    %v1200 = vpack.c.b16 %v980, %v976
    %v1201 = vpack.c.b16 %v985, %v981
    %v1202 = vpack.c.b16 %v986, %v982
    %v1203 = vpack.c.b16 %v987, %v983
    %v1204 = vpack.c.b16 %v988, %v984
    %v1205 = vpack.c.b16 %v993, %v989
    %v1206 = vpack.c.b16 %v994, %v990
    %v1207 = vpack.c.b16 %v995, %v991
    %v1208 = vpack.c.b16 %v996, %v992
    %v1209 = vpack.c.b16 %v1001, %v997
    %v1210 = vpack.c.b16 %v1002, %v998
    %v1211 = vpack.c.b16 %v1003, %v999
    %v1212 = vpack.c.b16 %v1004, %v1000
    %v1213 = vpack.c.b16 %v1009, %v1005
    %v1214 = vpack.c.b16 %v1010, %v1006
    %v1215 = vpack.c.b16 %v1011, %v1007
    %v1216 = vpack.c.b16 %v1012, %v1008
    %v1217 = vpack.c.b16 %v1017, %v1013
    %v1218 = vpack.c.b16 %v1018, %v1014
    %v1219 = vpack.c.b16 %v1019, %v1015
    %v1220 = vpack.c.b16 %v1020, %v1016
    %v1221 = vpack.c.b16 %v1025, %v1021
    %v1222 = vpack.c.b16 %v1026, %v1022
    %v1223 = vpack.c.b16 %v1027, %v1023
    %v1224 = vpack.c.b16 %v1028, %v1024
    %vm1421 = vcmask 130048
    %v1423 = vsel %vm1421, %v173, 0
    %v1426 = vsel %vm1421, %v180, 0
    %v1429 = vsel %vm1421, %v187, 0
    %v1432 = vsel %vm1421, %v194, 0
    %v1435 = vsel %vm1421, %v201, 0
    %v1438 = vsel %vm1421, %v208, 0
    %v1441 = vsel %vm1421, %v215, 0
    %v1444 = vsel %vm1421, %v222, 0
    %1446 = vmatprep.subr.bf16.mxu0 %v1030
    %1447 = vmatpush1.bf16.msra.mxu0 %v1029
    %1448 = vmatprep.subr.bf16.mxu0 %v1034
    %1449 = vmatpush1.bf16.msra.mxu0 %v1033
    %1450 = vmatprep.subr.bf16.mxu0 %v1038
    %1451 = vmatpush1.bf16.msra.mxu0 %v1037
    %1452 = vmatprep.subr.bf16.mxu0 %v1042
    %1453 = vmatpush1.bf16.msra.mxu0 %v1041
    %1454 = vmatprep.subr.bf16.mxu0 %v1046
    %1455 = vmatpush1.bf16.msra.mxu0 %v1045
    %1456 = vmatprep.subr.bf16.mxu0 %v1050
    %1457 = vmatpush1.bf16.msra.mxu0 %v1049
    %1458 = vmatprep.subr.bf16.mxu0 %v1054
    %1459 = vmatpush1.bf16.msra.mxu0 %v1053
    %1460 = vmatprep.subr.bf16.mxu0 %v1058
    %1461 = vmatpush1.bf16.msra.mxu0 %v1057
    %1462 = vmatprep.subr.bf16.mxu0 %v1062
    %1463 = vmatpush1.bf16.msra.mxu0 %v1061
    %1464 = vmatprep.subr.bf16.mxu0 %v1066
    %1465 = vmatpush1.bf16.msra.mxu0 %v1065
    %1466 = vmatprep.subr.bf16.mxu0 %v1070
    %1467 = vmatpush1.bf16.msra.mxu0 %v1069
    %1468 = vmatprep.subr.bf16.mxu0 %v1074
    %1469 = vmatpush1.bf16.msra.mxu0 %v1073
    %1470 = vmatprep.subr.bf16.mxu0 %v1078
    %1471 = vmatpush1.bf16.msra.mxu0 %v1077
    %1472 = vmatprep.subr.bf16.mxu0 %v1082
    %1473 = vmatpush1.bf16.msra.mxu0 %v1081
    %1474 = vmatprep.subr.bf16.mxu0 %v1086
    %1475 = vmatpush1.bf16.msra.mxu0 %v1085
    %1476 = vmatprep.subr.bf16.mxu0 %v1090
    %1477 = vmatpush1.bf16.msra.mxu0 %v1089
    %1478 = vmatprep.mubr.bf16.mxu0 %v168
    %1479 = vmatmul.mubr.bf16.gmra.mrb[0].mxu0 %v167
    %v1480 = vpop.f32.mrb[0].mxu0
    %v1481 = vadd.f32 %v424, %v1480
    %v1482 = vpop.f32.mrb[0].mxu0
    %v1483 = vadd.f32 %v428, %v1482
    %v1484 = vpop.f32.mrb[0].mxu0
    %v1485 = vadd.f32 %v424, %v1484
    %v1486 = vpop.f32.mrb[0].mxu0
    %v1487 = vadd.f32 %v428, %v1486
    %1488 = vmatprep.mubr.bf16.mxu0 %v175
    %1489 = vmatmul.mubr.bf16.gmra.mrb[0].mxu0 %v174
    %v1490 = vpop.f32.mrb[0].mxu0
    %v1491 = vadd.f32 %v424, %v1490
    %v1492 = vpop.f32.mrb[0].mxu0
    %v1493 = vadd.f32 %v428, %v1492
    %v1494 = vpop.f32.mrb[0].mxu0
    %v1495 = vadd.f32 %v424, %v1494
    %v1496 = vpop.f32.mrb[0].mxu0
    %v1497 = vadd.f32 %v428, %v1496
    %1498 = vmatprep.mubr.bf16.mxu0 %v182
    %1499 = vmatmul.mubr.bf16.gmra.mrb[0].mxu0 %v181
    %v1500 = vpop.f32.mrb[0].mxu0
    %v1501 = vadd.f32 %v424, %v1500
    %v1502 = vpop.f32.mrb[0].mxu0
    %v1503 = vadd.f32 %v428, %v1502
    %v1504 = vpop.f32.mrb[0].mxu0
    %v1505 = vadd.f32 %v424, %v1504
    %v1506 = vpop.f32.mrb[0].mxu0
    %v1507 = vadd.f32 %v428, %v1506
    %1508 = vmatprep.mubr.bf16.mxu0 %v189
    %1509 = vmatmul.mubr.bf16.gmra.mrb[0].mxu0 %v188
    %v1510 = vpop.f32.mrb[0].mxu0
    %v1511 = vadd.f32 %v424, %v1510
    %v1512 = vpop.f32.mrb[0].mxu0
    %v1513 = vadd.f32 %v428, %v1512
    %v1514 = vpop.f32.mrb[0].mxu0
    %v1515 = vadd.f32 %v424, %v1514
    %v1516 = vpop.f32.mrb[0].mxu0
    %v1517 = vadd.f32 %v428, %v1516
    %1518 = vmatprep.mubr.bf16.mxu0 %v196
    %1519 = vmatmul.mubr.bf16.gmra.mrb[0].mxu0 %v195
    %v1520 = vpop.f32.mrb[0].mxu0
    %v1521 = vadd.f32 %v424, %v1520
    %v1522 = vpop.f32.mrb[0].mxu0
    %v1523 = vadd.f32 %v428, %v1522
    %v1524 = vpop.f32.mrb[0].mxu0
    %v1525 = vadd.f32 %v424, %v1524
    %v1526 = vpop.f32.mrb[0].mxu0
    %v1527 = vadd.f32 %v428, %v1526
    %1528 = vmatprep.mubr.bf16.mxu0 %v203
    %1529 = vmatmul.mubr.bf16.gmra.mrb[0].mxu0 %v202
    %v1530 = vpop.f32.mrb[0].mxu0
    %v1531 = vadd.f32 %v424, %v1530
    %v1532 = vpop.f32.mrb[0].mxu0
    %v1533 = vadd.f32 %v428, %v1532
    %v1534 = vpop.f32.mrb[0].mxu0
    %v1535 = vadd.f32 %v424, %v1534
    %v1536 = vpop.f32.mrb[0].mxu0
    %v1537 = vadd.f32 %v428, %v1536
    %1538 = vmatprep.mubr.bf16.mxu0 %v210
    %1539 = vmatmul.mubr.bf16.gmra.mrb[0].mxu0 %v209
    %v1540 = vpop.f32.mrb[0].mxu0
    %v1541 = vadd.f32 %v424, %v1540
    %v1542 = vpop.f32.mrb[0].mxu0
    %v1543 = vadd.f32 %v428, %v1542
    %v1544 = vpop.f32.mrb[0].mxu0
    %v1545 = vadd.f32 %v424, %v1544
    %v1546 = vpop.f32.mrb[0].mxu0
    %v1547 = vadd.f32 %v428, %v1546
    %1548 = vmatprep.mubr.bf16.mxu0 %v217
    %1549 = vmatmul.mubr.bf16.gmra.mrb[0].mxu0 %v216
    %v1550 = vpop.f32.mrb[0].mxu0
    %v1551 = vadd.f32 %v424, %v1550
    %v1552 = vpop.f32.mrb[0].mxu0
    %v1553 = vadd.f32 %v428, %v1552
    %v1554 = vpop.f32.mrb[0].mxu0
    %v1555 = vadd.f32 %v424, %v1554
    %v1556 = vpop.f32.mrb[0].mxu0
    %v1557 = vadd.f32 %v428, %v1556
    %1558 = vdwg.mxu0
    %1559 = vmatprep.subr.bf16.mxu0 %v1094
    %1560 = vmatpush1.bf16.msra.mxu0 %v1093
    %1561 = vmatprep.subr.bf16.mxu0 %v1098
    %1562 = vmatpush1.bf16.msra.mxu0 %v1097
    %1563 = vmatprep.subr.bf16.mxu0 %v1102
    %1564 = vmatpush1.bf16.msra.mxu0 %v1101
    %1565 = vmatprep.subr.bf16.mxu0 %v1106
    %1566 = vmatpush1.bf16.msra.mxu0 %v1105
    %1567 = vmatprep.subr.bf16.mxu0 %v1110
    %1568 = vmatpush1.bf16.msra.mxu0 %v1109
    %1569 = vmatprep.subr.bf16.mxu0 %v1114
    %1570 = vmatpush1.bf16.msra.mxu0 %v1113
    %1571 = vmatprep.subr.bf16.mxu0 %v1118
    %1572 = vmatpush1.bf16.msra.mxu0 %v1117
    %1573 = vmatprep.subr.bf16.mxu0 %v1122
    %1574 = vmatpush1.bf16.msra.mxu0 %v1121
    %1575 = vmatprep.subr.bf16.mxu0 %v1126
    %1576 = vmatpush1.bf16.msra.mxu0 %v1125
    %1577 = vmatprep.subr.bf16.mxu0 %v1130
    %1578 = vmatpush1.bf16.msra.mxu0 %v1129
    %1579 = vmatprep.subr.bf16.mxu0 %v1134
    %1580 = vmatpush1.bf16.msra.mxu0 %v1133
    %1581 = vmatprep.subr.bf16.mxu0 %v1138
    %1582 = vmatpush1.bf16.msra.mxu0 %v1137
    %1583 = vmatprep.subr.bf16.mxu0 %v1142
    %1584 = vmatpush1.bf16.msra.mxu0 %v1141
    %1585 = vmatprep.subr.bf16.mxu0 %v1146
    %1586 = vmatpush1.bf16.msra.mxu0 %v1145
    %1587 = vmatprep.subr.bf16.mxu0 %v1150
    %1588 = vmatpush1.bf16.msra.mxu0 %v1149
    %1589 = vmatprep.subr.bf16.mxu0 %v1154
    %1590 = vmatpush1.bf16.msra.mxu0 %v1153
    %1591 = vmatprep.mubr.bf16.mxu0 %v170
    %1592 = vmatmul.mubr.bf16.gmra.mrb[0].mxu0 %v169
    %v1593 = vpop.f32.mrb[0].mxu0
    %v1594 = vadd.f32 %v1481, %v1593
    %v1595 = vpop.f32.mrb[0].mxu0
    %v1596 = vadd.f32 %v1483, %v1595
    %v1597 = vpop.f32.mrb[0].mxu0
    %v1598 = vadd.f32 %v1485, %v1597
    %v1599 = vpop.f32.mrb[0].mxu0
    %v1600 = vadd.f32 %v1487, %v1599
    %1601 = vmatprep.mubr.bf16.mxu0 %v177
    %1602 = vmatmul.mubr.bf16.gmra.mrb[0].mxu0 %v176
    %v1603 = vpop.f32.mrb[0].mxu0
    %v1604 = vadd.f32 %v1491, %v1603
    %v1605 = vpop.f32.mrb[0].mxu0
    %v1606 = vadd.f32 %v1493, %v1605
    %v1607 = vpop.f32.mrb[0].mxu0
    %v1608 = vadd.f32 %v1495, %v1607
    %v1609 = vpop.f32.mrb[0].mxu0
    %v1610 = vadd.f32 %v1497, %v1609
    %1611 = vmatprep.mubr.bf16.mxu0 %v184
    %1612 = vmatmul.mubr.bf16.gmra.mrb[0].mxu0 %v183
    %v1613 = vpop.f32.mrb[0].mxu0
    %v1614 = vadd.f32 %v1501, %v1613
    %v1615 = vpop.f32.mrb[0].mxu0
    %v1616 = vadd.f32 %v1503, %v1615
    %v1617 = vpop.f32.mrb[0].mxu0
    %v1618 = vadd.f32 %v1505, %v1617
    %v1619 = vpop.f32.mrb[0].mxu0
    %v1620 = vadd.f32 %v1507, %v1619
    %1621 = vmatprep.mubr.bf16.mxu0 %v191
    %1622 = vmatmul.mubr.bf16.gmra.mrb[0].mxu0 %v190
    %v1623 = vpop.f32.mrb[0].mxu0
    %v1624 = vadd.f32 %v1511, %v1623
    %v1625 = vpop.f32.mrb[0].mxu0
    %v1626 = vadd.f32 %v1513, %v1625
    %v1627 = vpop.f32.mrb[0].mxu0
    %v1628 = vadd.f32 %v1515, %v1627
    %v1629 = vpop.f32.mrb[0].mxu0
    %v1630 = vadd.f32 %v1517, %v1629
    %1631 = vmatprep.mubr.bf16.mxu0 %v198
    %1632 = vmatmul.mubr.bf16.gmra.mrb[0].mxu0 %v197
    %v1633 = vpop.f32.mrb[0].mxu0
    %v1634 = vadd.f32 %v1521, %v1633
    %v1635 = vpop.f32.mrb[0].mxu0
    %v1636 = vadd.f32 %v1523, %v1635
    %v1637 = vpop.f32.mrb[0].mxu0
    %v1638 = vadd.f32 %v1525, %v1637
    %v1639 = vpop.f32.mrb[0].mxu0
    %v1640 = vadd.f32 %v1527, %v1639
    %1641 = vmatprep.mubr.bf16.mxu0 %v205
    %1642 = vmatmul.mubr.bf16.gmra.mrb[0].mxu0 %v204
    %v1643 = vpop.f32.mrb[0].mxu0
    %v1644 = vadd.f32 %v1531, %v1643
    %v1645 = vpop.f32.mrb[0].mxu0
    %v1646 = vadd.f32 %v1533, %v1645
    %v1647 = vpop.f32.mrb[0].mxu0
    %v1648 = vadd.f32 %v1535, %v1647
    %v1649 = vpop.f32.mrb[0].mxu0
    %v1650 = vadd.f32 %v1537, %v1649
    %1651 = vmatprep.mubr.bf16.mxu0 %v212
    %1652 = vmatmul.mubr.bf16.gmra.mrb[0].mxu0 %v211
    %v1653 = vpop.f32.mrb[0].mxu0
    %v1654 = vadd.f32 %v1541, %v1653
    %v1655 = vpop.f32.mrb[0].mxu0
    %v1656 = vadd.f32 %v1543, %v1655
    %v1657 = vpop.f32.mrb[0].mxu0
    %v1658 = vadd.f32 %v1545, %v1657
    %v1659 = vpop.f32.mrb[0].mxu0
    %v1660 = vadd.f32 %v1547, %v1659
    %1661 = vmatprep.mubr.bf16.mxu0 %v219
    %1662 = vmatmul.mubr.bf16.gmra.mrb[0].mxu0 %v218
    %v1663 = vpop.f32.mrb[0].mxu0
    %v1664 = vadd.f32 %v1551, %v1663
    %v1665 = vpop.f32.mrb[0].mxu0
    %v1666 = vadd.f32 %v1553, %v1665
    %v1667 = vpop.f32.mrb[0].mxu0
    %v1668 = vadd.f32 %v1555, %v1667
    %v1669 = vpop.f32.mrb[0].mxu0
    %v1670 = vadd.f32 %v1557, %v1669
    %1671 = vdwg.mxu0
    %1672 = vmatprep.subr.bf16.mxu0 %v1158
    %1673 = vmatpush1.bf16.msra.mxu0 %v1157
    %1674 = vmatprep.subr.bf16.mxu0 %v1162
    %1675 = vmatpush1.bf16.msra.mxu0 %v1161
    %1676 = vmatprep.subr.bf16.mxu0 %v1166
    %1677 = vmatpush1.bf16.msra.mxu0 %v1165
    %1678 = vmatprep.subr.bf16.mxu0 %v1170
    %1679 = vmatpush1.bf16.msra.mxu0 %v1169
    %1680 = vmatprep.subr.bf16.mxu0 %v1174
    %1681 = vmatpush1.bf16.msra.mxu0 %v1173
    %1682 = vmatprep.subr.bf16.mxu0 %v1178
    %1683 = vmatpush1.bf16.msra.mxu0 %v1177
    %1684 = vmatprep.subr.bf16.mxu0 %v1182
    %1685 = vmatpush1.bf16.msra.mxu0 %v1181
    %1686 = vmatprep.subr.bf16.mxu0 %v1186
    %1687 = vmatpush1.bf16.msra.mxu0 %v1185
    %1688 = vmatprep.subr.bf16.mxu0 %v1190
    %1689 = vmatpush1.bf16.msra.mxu0 %v1189
    %1690 = vmatprep.subr.bf16.mxu0 %v1194
    %1691 = vmatpush1.bf16.msra.mxu0 %v1193
    %1692 = vmatprep.subr.bf16.mxu0 %v1198
    %1693 = vmatpush1.bf16.msra.mxu0 %v1197
    %1694 = vmatprep.subr.bf16.mxu0 %v1202
    %1695 = vmatpush1.bf16.msra.mxu0 %v1201
    %1696 = vmatprep.subr.bf16.mxu0 %v1206
    %1697 = vmatpush1.bf16.msra.mxu0 %v1205
    %1698 = vmatprep.subr.bf16.mxu0 %v1210
    %1699 = vmatpush1.bf16.msra.mxu0 %v1209
    %1700 = vmatprep.subr.bf16.mxu0 %v1214
    %1701 = vmatpush1.bf16.msra.mxu0 %v1213
    %1702 = vmatprep.subr.bf16.mxu0 %v1218
    %1703 = vmatpush1.bf16.msra.mxu0 %v1217
    %1704 = vmatprep.mubr.bf16.mxu0 %v172
    %1705 = vmatmul.mubr.bf16.gmra.mrb[0].mxu0 %v171
    %v1706 = vpop.f32.mrb[0].mxu0
    %v1707 = vadd.f32 %v1594, %v1706
    %v1708 = vpop.f32.mrb[0].mxu0
    %v1709 = vadd.f32 %v1596, %v1708
    %v1710 = vpop.f32.mrb[0].mxu0
    %v1711 = vadd.f32 %v1598, %v1710
    %v1712 = vpop.f32.mrb[0].mxu0
    %v1713 = vadd.f32 %v1600, %v1712
    %1714 = vmatprep.mubr.bf16.mxu0 %v179
    %1715 = vmatmul.mubr.bf16.gmra.mrb[0].mxu0 %v178
    %v1716 = vpop.f32.mrb[0].mxu0
    %v1717 = vadd.f32 %v1604, %v1716
    %v1718 = vpop.f32.mrb[0].mxu0
    %v1719 = vadd.f32 %v1606, %v1718
    %v1720 = vpop.f32.mrb[0].mxu0
    %v1721 = vadd.f32 %v1608, %v1720
    %v1722 = vpop.f32.mrb[0].mxu0
    %v1723 = vadd.f32 %v1610, %v1722
    %1724 = vmatprep.mubr.bf16.mxu0 %v186
    %1725 = vmatmul.mubr.bf16.gmra.mrb[0].mxu0 %v185
    %v1726 = vpop.f32.mrb[0].mxu0
    %v1727 = vadd.f32 %v1614, %v1726
    %v1728 = vpop.f32.mrb[0].mxu0
    %v1729 = vadd.f32 %v1616, %v1728
    %v1730 = vpop.f32.mrb[0].mxu0
    %v1731 = vadd.f32 %v1618, %v1730
    %v1732 = vpop.f32.mrb[0].mxu0
    %v1733 = vadd.f32 %v1620, %v1732
    %1734 = vmatprep.mubr.bf16.mxu0 %v193
    %1735 = vmatmul.mubr.bf16.gmra.mrb[0].mxu0 %v192
    %v1736 = vpop.f32.mrb[0].mxu0
    %v1737 = vadd.f32 %v1624, %v1736
    %v1738 = vpop.f32.mrb[0].mxu0
    %v1739 = vadd.f32 %v1626, %v1738
    %v1740 = vpop.f32.mrb[0].mxu0
    %v1741 = vadd.f32 %v1628, %v1740
    %v1742 = vpop.f32.mrb[0].mxu0
    %v1743 = vadd.f32 %v1630, %v1742
    %1744 = vmatprep.mubr.bf16.mxu0 %v200
    %1745 = vmatmul.mubr.bf16.gmra.mrb[0].mxu0 %v199
    %v1746 = vpop.f32.mrb[0].mxu0
    %v1747 = vadd.f32 %v1634, %v1746
    %v1748 = vpop.f32.mrb[0].mxu0
    %v1749 = vadd.f32 %v1636, %v1748
    %v1750 = vpop.f32.mrb[0].mxu0
    %v1751 = vadd.f32 %v1638, %v1750
    %v1752 = vpop.f32.mrb[0].mxu0
    %v1753 = vadd.f32 %v1640, %v1752
    %1754 = vmatprep.mubr.bf16.mxu0 %v207
    %1755 = vmatmul.mubr.bf16.gmra.mrb[0].mxu0 %v206
    %v1756 = vpop.f32.mrb[0].mxu0
    %v1757 = vadd.f32 %v1644, %v1756
    %v1758 = vpop.f32.mrb[0].mxu0
    %v1759 = vadd.f32 %v1646, %v1758
    %v1760 = vpop.f32.mrb[0].mxu0
    %v1761 = vadd.f32 %v1648, %v1760
    %v1762 = vpop.f32.mrb[0].mxu0
    %v1763 = vadd.f32 %v1650, %v1762
    %1764 = vmatprep.mubr.bf16.mxu0 %v214
    %1765 = vmatmul.mubr.bf16.gmra.mrb[0].mxu0 %v213
    %v1766 = vpop.f32.mrb[0].mxu0
    %v1767 = vadd.f32 %v1654, %v1766
    %v1768 = vpop.f32.mrb[0].mxu0
    %v1769 = vadd.f32 %v1656, %v1768
    %v1770 = vpop.f32.mrb[0].mxu0
    %v1771 = vadd.f32 %v1658, %v1770
    %v1772 = vpop.f32.mrb[0].mxu0
    %v1773 = vadd.f32 %v1660, %v1772
    %1774 = vmatprep.mubr.bf16.mxu0 %v221
    %1775 = vmatmul.mubr.bf16.gmra.mrb[0].mxu0 %v220
    %v1776 = vpop.f32.mrb[0].mxu0
    %v1777 = vadd.f32 %v1664, %v1776
    %v1778 = vpop.f32.mrb[0].mxu0
    %v1779 = vadd.f32 %v1666, %v1778
    %v1780 = vpop.f32.mrb[0].mxu0
    %v1781 = vadd.f32 %v1668, %v1780
    %v1782 = vpop.f32.mrb[0].mxu0
    %v1783 = vadd.f32 %v1670, %v1782
    %1784 = vdwg.mxu0
    %1785 = vmatprep.subr.bf16.mxu0 %v1222
    %1786 = vmatpush1.bf16.msra.mxu0 %v1221
    %1787 = vmatprep.subr.bf16.mxu0 0
    %1788 = vmatpush1.bf16.msra.mxu0 0
    %1789 = vmatprep.subr.bf16.mxu0 0
    %1790 = vmatpush1.bf16.msra.mxu0 0
    %1791 = vmatprep.subr.bf16.mxu0 0
    %1792 = vmatpush1.bf16.msra.mxu0 0
    %1793 = vmatprep.subr.bf16.mxu0 0
    %1794 = vmatpush1.bf16.msra.mxu0 0
    %1795 = vmatprep.subr.bf16.mxu0 0
    %1796 = vmatpush1.bf16.msra.mxu0 0
    %1797 = vmatprep.subr.bf16.mxu0 0
    %1798 = vmatpush1.bf16.msra.mxu0 0
    %1799 = vmatprep.subr.bf16.mxu0 0
    %1800 = vmatpush1.bf16.msra.mxu0 0
    %1801 = vmatprep.subr.bf16.mxu0 0
    %1802 = vmatpush1.bf16.msra.mxu0 0
    %1803 = vmatprep.subr.bf16.mxu0 0
    %1804 = vmatpush1.bf16.msra.mxu0 0
    %1805 = vmatprep.subr.bf16.mxu0 0
    %1806 = vmatpush1.bf16.msra.mxu0 0
    %1807 = vmatprep.subr.bf16.mxu0 0
    %1808 = vmatpush1.bf16.msra.mxu0 0
    %1809 = vmatprep.subr.bf16.mxu0 0
    %1810 = vmatpush1.bf16.msra.mxu0 0
    %1811 = vmatprep.subr.bf16.mxu0 0
    %1812 = vmatpush1.bf16.msra.mxu0 0
    %1813 = vmatprep.subr.bf16.mxu0 0
    %1814 = vmatpush1.bf16.msra.mxu0 0
    %1815 = vmatprep.subr.bf16.mxu0 0
    %1816 = vmatpush1.bf16.msra.mxu0 0
    %1817 = vmatprep.mubr.bf16.mxu0 0
    %1818 = vmatmul.mubr.bf16.gmra.mrb[0].mxu0 %v1423
    %v1819 = vpop.f32.mrb[0].mxu0
    %v1820 = vadd.f32 %v1707, %v1819
    %v1821 = vpop.f32.mrb[0].mxu0
    %v1822 = vadd.f32 %v1709, %v1821
    %v1823 = vpop.f32.mrb[0].mxu0
    %v1824 = vadd.f32 %v1711, %v1823
    %v1825 = vpop.f32.mrb[0].mxu0
    %v1826 = vadd.f32 %v1713, %v1825
    %1827 = vmatprep.mubr.bf16.mxu0 0
    %1828 = vmatmul.mubr.bf16.gmra.mrb[0].mxu0 %v1426
    %v1829 = vpop.f32.mrb[0].mxu0
    %v1830 = vadd.f32 %v1717, %v1829
    %v1831 = vpop.f32.mrb[0].mxu0
    %v1832 = vadd.f32 %v1719, %v1831
    %v1833 = vpop.f32.mrb[0].mxu0
    %v1834 = vadd.f32 %v1721, %v1833
    %v1835 = vpop.f32.mrb[0].mxu0
    %v1836 = vadd.f32 %v1723, %v1835
    %1837 = vmatprep.mubr.bf16.mxu0 0
    %1838 = vmatmul.mubr.bf16.gmra.mrb[0].mxu0 %v1429
    %v1839 = vpop.f32.mrb[0].mxu0
    %v1840 = vadd.f32 %v1727, %v1839
    %v1841 = vpop.f32.mrb[0].mxu0
    %v1842 = vadd.f32 %v1729, %v1841
    %v1843 = vpop.f32.mrb[0].mxu0
    %v1844 = vadd.f32 %v1731, %v1843
    %v1845 = vpop.f32.mrb[0].mxu0
    %v1846 = vadd.f32 %v1733, %v1845
    %1847 = vmatprep.mubr.bf16.mxu0 0
    %1848 = vmatmul.mubr.bf16.gmra.mrb[0].mxu0 %v1432
    %v1849 = vpop.f32.mrb[0].mxu0
    %v1850 = vadd.f32 %v1737, %v1849
    %v1851 = vpop.f32.mrb[0].mxu0
    %v1852 = vadd.f32 %v1739, %v1851
    %v1853 = vpop.f32.mrb[0].mxu0
    %v1854 = vadd.f32 %v1741, %v1853
    %v1855 = vpop.f32.mrb[0].mxu0
    %v1856 = vadd.f32 %v1743, %v1855
    %1857 = vmatprep.mubr.bf16.mxu0 0
    %1858 = vmatmul.mubr.bf16.gmra.mrb[0].mxu0 %v1435
    %v1859 = vpop.f32.mrb[0].mxu0
    %v1860 = vadd.f32 %v1747, %v1859
    %v1861 = vpop.f32.mrb[0].mxu0
    %v1862 = vadd.f32 %v1749, %v1861
    %v1863 = vpop.f32.mrb[0].mxu0
    %v1864 = vadd.f32 %v1751, %v1863
    %v1865 = vpop.f32.mrb[0].mxu0
    %v1866 = vadd.f32 %v1753, %v1865
    %1867 = vmatprep.mubr.bf16.mxu0 0
    %1868 = vmatmul.mubr.bf16.gmra.mrb[0].mxu0 %v1438
    %v1869 = vpop.f32.mrb[0].mxu0
    %v1870 = vadd.f32 %v1757, %v1869
    %v1871 = vpop.f32.mrb[0].mxu0
    %v1872 = vadd.f32 %v1759, %v1871
    %v1873 = vpop.f32.mrb[0].mxu0
    %v1874 = vadd.f32 %v1761, %v1873
    %v1875 = vpop.f32.mrb[0].mxu0
    %v1876 = vadd.f32 %v1763, %v1875
    %1877 = vmatprep.mubr.bf16.mxu0 0
    %1878 = vmatmul.mubr.bf16.gmra.mrb[0].mxu0 %v1441
    %v1879 = vpop.f32.mrb[0].mxu0
    %v1880 = vadd.f32 %v1767, %v1879
    %v1881 = vpop.f32.mrb[0].mxu0
    %v1882 = vadd.f32 %v1769, %v1881
    %v1883 = vpop.f32.mrb[0].mxu0
    %v1884 = vadd.f32 %v1771, %v1883
    %v1885 = vpop.f32.mrb[0].mxu0
    %v1886 = vadd.f32 %v1773, %v1885
    %1887 = vmatprep.mubr.bf16.mxu0 0
    %1888 = vmatmul.mubr.bf16.gmra.mrb[0].mxu0 %v1444
    %v1889 = vpop.f32.mrb[0].mxu0
    %v1890 = vadd.f32 %v1777, %v1889
    %v1891 = vpop.f32.mrb[0].mxu0
    %v1892 = vadd.f32 %v1779, %v1891
    %v1893 = vpop.f32.mrb[0].mxu0
    %v1894 = vadd.f32 %v1781, %v1893
    %v1895 = vpop.f32.mrb[0].mxu0
    %v1896 = vadd.f32 %v1783, %v1895
    %1897 = vdwg.mxu0
    %1898 = vmatprep.subr.bf16.mxu0 %v1032
    %1899 = vmatpush1.bf16.msra.mxu0 %v1031
    %1900 = vmatprep.subr.bf16.mxu0 %v1036
    %1901 = vmatpush1.bf16.msra.mxu0 %v1035
    %1902 = vmatprep.subr.bf16.mxu0 %v1040
    %1903 = vmatpush1.bf16.msra.mxu0 %v1039
    %1904 = vmatprep.subr.bf16.mxu0 %v1044
    %1905 = vmatpush1.bf16.msra.mxu0 %v1043
    %1906 = vmatprep.subr.bf16.mxu0 %v1048
    %1907 = vmatpush1.bf16.msra.mxu0 %v1047
    %1908 = vmatprep.subr.bf16.mxu0 %v1052
    %1909 = vmatpush1.bf16.msra.mxu0 %v1051
    %1910 = vmatprep.subr.bf16.mxu0 %v1056
    %1911 = vmatpush1.bf16.msra.mxu0 %v1055
    %1912 = vmatprep.subr.bf16.mxu0 %v1060
    %1913 = vmatpush1.bf16.msra.mxu0 %v1059
    %1914 = vmatprep.subr.bf16.mxu0 %v1064
    %1915 = vmatpush1.bf16.msra.mxu0 %v1063
    %1916 = vmatprep.subr.bf16.mxu0 %v1068
    %1917 = vmatpush1.bf16.msra.mxu0 %v1067
    %1918 = vmatprep.subr.bf16.mxu0 %v1072
    %1919 = vmatpush1.bf16.msra.mxu0 %v1071
    %1920 = vmatprep.subr.bf16.mxu0 %v1076
    %1921 = vmatpush1.bf16.msra.mxu0 %v1075
    %1922 = vmatprep.subr.bf16.mxu0 %v1080
    %1923 = vmatpush1.bf16.msra.mxu0 %v1079
    %1924 = vmatprep.subr.bf16.mxu0 %v1084
    %1925 = vmatpush1.bf16.msra.mxu0 %v1083
    %1926 = vmatprep.subr.bf16.mxu0 %v1088
    %1927 = vmatpush1.bf16.msra.mxu0 %v1087
    %1928 = vmatprep.subr.bf16.mxu0 %v1092
    %1929 = vmatpush1.bf16.msra.mxu0 %v1091
    %1930 = vmatprep.mubr.bf16.mxu0 %v168
    %1931 = vmatmul.mubr.bf16.gmra.mrb[0].mxu0 %v167
    %v1932 = vpop.f32.mrb[0].mxu0
    %v1933 = vadd.f32 %v432, %v1932
    %v1934 = vpop.f32.mrb[0].mxu0
    %v1935 = vadd.f32 %v436, %v1934
    %v1936 = vpop.f32.mrb[0].mxu0
    %v1937 = vadd.f32 %v432, %v1936
    %v1938 = vpop.f32.mrb[0].mxu0
    %v1939 = vadd.f32 %v436, %v1938
    %1940 = vmatprep.mubr.bf16.mxu0 %v175
    %1941 = vmatmul.mubr.bf16.gmra.mrb[0].mxu0 %v174
    %v1942 = vpop.f32.mrb[0].mxu0
    %v1943 = vadd.f32 %v432, %v1942
    %v1944 = vpop.f32.mrb[0].mxu0
    %v1945 = vadd.f32 %v436, %v1944
    %v1946 = vpop.f32.mrb[0].mxu0
    %v1947 = vadd.f32 %v432, %v1946
    %v1948 = vpop.f32.mrb[0].mxu0
    %v1949 = vadd.f32 %v436, %v1948
    %1950 = vmatprep.mubr.bf16.mxu0 %v182
    %1951 = vmatmul.mubr.bf16.gmra.mrb[0].mxu0 %v181
    %v1952 = vpop.f32.mrb[0].mxu0
    %v1953 = vadd.f32 %v432, %v1952
    %v1954 = vpop.f32.mrb[0].mxu0
    %v1955 = vadd.f32 %v436, %v1954
    %v1956 = vpop.f32.mrb[0].mxu0
    %v1957 = vadd.f32 %v432, %v1956
    %v1958 = vpop.f32.mrb[0].mxu0
    %v1959 = vadd.f32 %v436, %v1958
    %1960 = vmatprep.mubr.bf16.mxu0 %v189
    %1961 = vmatmul.mubr.bf16.gmra.mrb[0].mxu0 %v188
    %v1962 = vpop.f32.mrb[0].mxu0
    %v1963 = vadd.f32 %v432, %v1962
    %v1964 = vpop.f32.mrb[0].mxu0
    %v1965 = vadd.f32 %v436, %v1964
    %v1966 = vpop.f32.mrb[0].mxu0
    %v1967 = vadd.f32 %v432, %v1966
    %v1968 = vpop.f32.mrb[0].mxu0
    %v1969 = vadd.f32 %v436, %v1968
    %1970 = vmatprep.mubr.bf16.mxu0 %v196
    %1971 = vmatmul.mubr.bf16.gmra.mrb[0].mxu0 %v195
    %v1972 = vpop.f32.mrb[0].mxu0
    %v1973 = vadd.f32 %v432, %v1972
    %v1974 = vpop.f32.mrb[0].mxu0
    %v1975 = vadd.f32 %v436, %v1974
    %v1976 = vpop.f32.mrb[0].mxu0
    %v1977 = vadd.f32 %v432, %v1976
    %v1978 = vpop.f32.mrb[0].mxu0
    %v1979 = vadd.f32 %v436, %v1978
    %1980 = vmatprep.mubr.bf16.mxu0 %v203
    %1981 = vmatmul.mubr.bf16.gmra.mrb[0].mxu0 %v202
    %v1982 = vpop.f32.mrb[0].mxu0
    %v1983 = vadd.f32 %v432, %v1982
    %v1984 = vpop.f32.mrb[0].mxu0
    %v1985 = vadd.f32 %v436, %v1984
    %v1986 = vpop.f32.mrb[0].mxu0
    %v1987 = vadd.f32 %v432, %v1986
    %v1988 = vpop.f32.mrb[0].mxu0
    %v1989 = vadd.f32 %v436, %v1988
    %1990 = vmatprep.mubr.bf16.mxu0 %v210
    %1991 = vmatmul.mubr.bf16.gmra.mrb[0].mxu0 %v209
    %v1992 = vpop.f32.mrb[0].mxu0
    %v1993 = vadd.f32 %v432, %v1992
    %v1994 = vpop.f32.mrb[0].mxu0
    %v1995 = vadd.f32 %v436, %v1994
    %v1996 = vpop.f32.mrb[0].mxu0
    %v1997 = vadd.f32 %v432, %v1996
    %v1998 = vpop.f32.mrb[0].mxu0
    %v1999 = vadd.f32 %v436, %v1998
    %2000 = vmatprep.mubr.bf16.mxu0 %v217
    %2001 = vmatmul.mubr.bf16.gmra.mrb[0].mxu0 %v216
    %v2002 = vpop.f32.mrb[0].mxu0
    %v2003 = vadd.f32 %v432, %v2002
    %v2004 = vpop.f32.mrb[0].mxu0
    %v2005 = vadd.f32 %v436, %v2004
    %v2006 = vpop.f32.mrb[0].mxu0
    %v2007 = vadd.f32 %v432, %v2006
    %v2008 = vpop.f32.mrb[0].mxu0
    %v2009 = vadd.f32 %v436, %v2008
    %2010 = vdwg.mxu0
    %2011 = vmatprep.subr.bf16.mxu0 %v1096
    %2012 = vmatpush1.bf16.msra.mxu0 %v1095
    %2013 = vmatprep.subr.bf16.mxu0 %v1100
    %2014 = vmatpush1.bf16.msra.mxu0 %v1099
    %2015 = vmatprep.subr.bf16.mxu0 %v1104
    %2016 = vmatpush1.bf16.msra.mxu0 %v1103
    %2017 = vmatprep.subr.bf16.mxu0 %v1108
    %2018 = vmatpush1.bf16.msra.mxu0 %v1107
    %2019 = vmatprep.subr.bf16.mxu0 %v1112
    %2020 = vmatpush1.bf16.msra.mxu0 %v1111
    %2021 = vmatprep.subr.bf16.mxu0 %v1116
    %2022 = vmatpush1.bf16.msra.mxu0 %v1115
    %2023 = vmatprep.subr.bf16.mxu0 %v1120
    %2024 = vmatpush1.bf16.msra.mxu0 %v1119
    %2025 = vmatprep.subr.bf16.mxu0 %v1124
    %2026 = vmatpush1.bf16.msra.mxu0 %v1123
    %2027 = vmatprep.subr.bf16.mxu0 %v1128
    %2028 = vmatpush1.bf16.msra.mxu0 %v1127
    %2029 = vmatprep.subr.bf16.mxu0 %v1132
    %2030 = vmatpush1.bf16.msra.mxu0 %v1131
    %2031 = vmatprep.subr.bf16.mxu0 %v1136
    %2032 = vmatpush1.bf16.msra.mxu0 %v1135
    %2033 = vmatprep.subr.bf16.mxu0 %v1140
    %2034 = vmatpush1.bf16.msra.mxu0 %v1139
    %2035 = vmatprep.subr.bf16.mxu0 %v1144
    %2036 = vmatpush1.bf16.msra.mxu0 %v1143
    %2037 = vmatprep.subr.bf16.mxu0 %v1148
    %2038 = vmatpush1.bf16.msra.mxu0 %v1147
    %2039 = vmatprep.subr.bf16.mxu0 %v1152
    %2040 = vmatpush1.bf16.msra.mxu0 %v1151
    %2041 = vmatprep.subr.bf16.mxu0 %v1156
    %2042 = vmatpush1.bf16.msra.mxu0 %v1155
    %2043 = vmatprep.mubr.bf16.mxu0 %v170
    %2044 = vmatmul.mubr.bf16.gmra.mrb[0].mxu0 %v169
    %v2045 = vpop.f32.mrb[0].mxu0
    %v2046 = vadd.f32 %v1933, %v2045
    %v2047 = vpop.f32.mrb[0].mxu0
    %v2048 = vadd.f32 %v1935, %v2047
    %v2049 = vpop.f32.mrb[0].mxu0
    %v2050 = vadd.f32 %v1937, %v2049
    %v2051 = vpop.f32.mrb[0].mxu0
    %v2052 = vadd.f32 %v1939, %v2051
    %2053 = vmatprep.mubr.bf16.mxu0 %v177
    %2054 = vmatmul.mubr.bf16.gmra.mrb[0].mxu0 %v176
    %v2055 = vpop.f32.mrb[0].mxu0
    %v2056 = vadd.f32 %v1943, %v2055
    %v2057 = vpop.f32.mrb[0].mxu0
    %v2058 = vadd.f32 %v1945, %v2057
    %v2059 = vpop.f32.mrb[0].mxu0
    %v2060 = vadd.f32 %v1947, %v2059
    %v2061 = vpop.f32.mrb[0].mxu0
    %v2062 = vadd.f32 %v1949, %v2061
    %2063 = vmatprep.mubr.bf16.mxu0 %v184
    %2064 = vmatmul.mubr.bf16.gmra.mrb[0].mxu0 %v183
    %v2065 = vpop.f32.mrb[0].mxu0
    %v2066 = vadd.f32 %v1953, %v2065
    %v2067 = vpop.f32.mrb[0].mxu0
    %v2068 = vadd.f32 %v1955, %v2067
    %v2069 = vpop.f32.mrb[0].mxu0
    %v2070 = vadd.f32 %v1957, %v2069
    %v2071 = vpop.f32.mrb[0].mxu0
    %v2072 = vadd.f32 %v1959, %v2071
    %2073 = vmatprep.mubr.bf16.mxu0 %v191
    %2074 = vmatmul.mubr.bf16.gmra.mrb[0].mxu0 %v190
    %v2075 = vpop.f32.mrb[0].mxu0
    %v2076 = vadd.f32 %v1963, %v2075
    %v2077 = vpop.f32.mrb[0].mxu0
    %v2078 = vadd.f32 %v1965, %v2077
    %v2079 = vpop.f32.mrb[0].mxu0
    %v2080 = vadd.f32 %v1967, %v2079
    %v2081 = vpop.f32.mrb[0].mxu0
    %v2082 = vadd.f32 %v1969, %v2081
    %2083 = vmatprep.mubr.bf16.mxu0 %v198
    %2084 = vmatmul.mubr.bf16.gmra.mrb[0].mxu0 %v197
    %v2085 = vpop.f32.mrb[0].mxu0
    %v2086 = vadd.f32 %v1973, %v2085
    %v2087 = vpop.f32.mrb[0].mxu0
    %v2088 = vadd.f32 %v1975, %v2087
    %v2089 = vpop.f32.mrb[0].mxu0
    %v2090 = vadd.f32 %v1977, %v2089
    %v2091 = vpop.f32.mrb[0].mxu0
    %v2092 = vadd.f32 %v1979, %v2091
    %2093 = vmatprep.mubr.bf16.mxu0 %v205
    %2094 = vmatmul.mubr.bf16.gmra.mrb[0].mxu0 %v204
    %v2095 = vpop.f32.mrb[0].mxu0
    %v2096 = vadd.f32 %v1983, %v2095
    %v2097 = vpop.f32.mrb[0].mxu0
    %v2098 = vadd.f32 %v1985, %v2097
    %v2099 = vpop.f32.mrb[0].mxu0
    %v2100 = vadd.f32 %v1987, %v2099
    %v2101 = vpop.f32.mrb[0].mxu0
    %v2102 = vadd.f32 %v1989, %v2101
    %2103 = vmatprep.mubr.bf16.mxu0 %v212
    %2104 = vmatmul.mubr.bf16.gmra.mrb[0].mxu0 %v211
    %v2105 = vpop.f32.mrb[0].mxu0
    %v2106 = vadd.f32 %v1993, %v2105
    %v2107 = vpop.f32.mrb[0].mxu0
    %v2108 = vadd.f32 %v1995, %v2107
    %v2109 = vpop.f32.mrb[0].mxu0
    %v2110 = vadd.f32 %v1997, %v2109
    %v2111 = vpop.f32.mrb[0].mxu0
    %v2112 = vadd.f32 %v1999, %v2111
    %2113 = vmatprep.mubr.bf16.mxu0 %v219
    %2114 = vmatmul.mubr.bf16.gmra.mrb[0].mxu0 %v218
    %v2115 = vpop.f32.mrb[0].mxu0
    %v2116 = vadd.f32 %v2003, %v2115
    %v2117 = vpop.f32.mrb[0].mxu0
    %v2118 = vadd.f32 %v2005, %v2117
    %v2119 = vpop.f32.mrb[0].mxu0
    %v2120 = vadd.f32 %v2007, %v2119
    %v2121 = vpop.f32.mrb[0].mxu0
    %v2122 = vadd.f32 %v2009, %v2121
    %2123 = vdwg.mxu0
    %2124 = vmatprep.subr.bf16.mxu0 %v1160
    %2125 = vmatpush1.bf16.msra.mxu0 %v1159
    %2126 = vmatprep.subr.bf16.mxu0 %v1164
    %2127 = vmatpush1.bf16.msra.mxu0 %v1163
    %2128 = vmatprep.subr.bf16.mxu0 %v1168
    %2129 = vmatpush1.bf16.msra.mxu0 %v1167
    %2130 = vmatprep.subr.bf16.mxu0 %v1172
    %2131 = vmatpush1.bf16.msra.mxu0 %v1171
    %2132 = vmatprep.subr.bf16.mxu0 %v1176
    %2133 = vmatpush1.bf16.msra.mxu0 %v1175
    %2134 = vmatprep.subr.bf16.mxu0 %v1180
    %2135 = vmatpush1.bf16.msra.mxu0 %v1179
    %2136 = vmatprep.subr.bf16.mxu0 %v1184
    %2137 = vmatpush1.bf16.msra.mxu0 %v1183
    %2138 = vmatprep.subr.bf16.mxu0 %v1188
    %2139 = vmatpush1.bf16.msra.mxu0 %v1187
    %2140 = vmatprep.subr.bf16.mxu0 %v1192
    %2141 = vmatpush1.bf16.msra.mxu0 %v1191
    %2142 = vmatprep.subr.bf16.mxu0 %v1196
    %2143 = vmatpush1.bf16.msra.mxu0 %v1195
    %2144 = vmatprep.subr.bf16.mxu0 %v1200
    %2145 = vmatpush1.bf16.msra.mxu0 %v1199
    %2146 = vmatprep.subr.bf16.mxu0 %v1204
    %2147 = vmatpush1.bf16.msra.mxu0 %v1203
    %2148 = vmatprep.subr.bf16.mxu0 %v1208
    %2149 = vmatpush1.bf16.msra.mxu0 %v1207
    %2150 = vmatprep.subr.bf16.mxu0 %v1212
    %2151 = vmatpush1.bf16.msra.mxu0 %v1211
    %2152 = vmatprep.subr.bf16.mxu0 %v1216
    %2153 = vmatpush1.bf16.msra.mxu0 %v1215
    %2154 = vmatprep.subr.bf16.mxu0 %v1220
    %2155 = vmatpush1.bf16.msra.mxu0 %v1219
    %2156 = vmatprep.mubr.bf16.mxu0 %v172
    %2157 = vmatmul.mubr.bf16.gmra.mrb[0].mxu0 %v171
    %v2158 = vpop.f32.mrb[0].mxu0
    %v2159 = vadd.f32 %v2046, %v2158
    %v2160 = vpop.f32.mrb[0].mxu0
    %v2161 = vadd.f32 %v2048, %v2160
    %v2162 = vpop.f32.mrb[0].mxu0
    %v2163 = vadd.f32 %v2050, %v2162
    %v2164 = vpop.f32.mrb[0].mxu0
    %v2165 = vadd.f32 %v2052, %v2164
    %2166 = vmatprep.mubr.bf16.mxu0 %v179
    %2167 = vmatmul.mubr.bf16.gmra.mrb[0].mxu0 %v178
    %v2168 = vpop.f32.mrb[0].mxu0
    %v2169 = vadd.f32 %v2056, %v2168
    %v2170 = vpop.f32.mrb[0].mxu0
    %v2171 = vadd.f32 %v2058, %v2170
    %v2172 = vpop.f32.mrb[0].mxu0
    %v2173 = vadd.f32 %v2060, %v2172
    %v2174 = vpop.f32.mrb[0].mxu0
    %v2175 = vadd.f32 %v2062, %v2174
    %2176 = vmatprep.mubr.bf16.mxu0 %v186
    %2177 = vmatmul.mubr.bf16.gmra.mrb[0].mxu0 %v185
    %v2178 = vpop.f32.mrb[0].mxu0
    %v2179 = vadd.f32 %v2066, %v2178
    %v2180 = vpop.f32.mrb[0].mxu0
    %v2181 = vadd.f32 %v2068, %v2180
    %v2182 = vpop.f32.mrb[0].mxu0
    %v2183 = vadd.f32 %v2070, %v2182
    %v2184 = vpop.f32.mrb[0].mxu0
    %v2185 = vadd.f32 %v2072, %v2184
    %2186 = vmatprep.mubr.bf16.mxu0 %v193
    %2187 = vmatmul.mubr.bf16.gmra.mrb[0].mxu0 %v192
    %v2188 = vpop.f32.mrb[0].mxu0
    %v2189 = vadd.f32 %v2076, %v2188
    %v2190 = vpop.f32.mrb[0].mxu0
    %v2191 = vadd.f32 %v2078, %v2190
    %v2192 = vpop.f32.mrb[0].mxu0
    %v2193 = vadd.f32 %v2080, %v2192
    %v2194 = vpop.f32.mrb[0].mxu0
    %v2195 = vadd.f32 %v2082, %v2194
    %2196 = vmatprep.mubr.bf16.mxu0 %v200
    %2197 = vmatmul.mubr.bf16.gmra.mrb[0].mxu0 %v199
    %v2198 = vpop.f32.mrb[0].mxu0
    %v2199 = vadd.f32 %v2086, %v2198
    %v2200 = vpop.f32.mrb[0].mxu0
    %v2201 = vadd.f32 %v2088, %v2200
    %v2202 = vpop.f32.mrb[0].mxu0
    %v2203 = vadd.f32 %v2090, %v2202
    %v2204 = vpop.f32.mrb[0].mxu0
    %v2205 = vadd.f32 %v2092, %v2204
    %2206 = vmatprep.mubr.bf16.mxu0 %v207
    %2207 = vmatmul.mubr.bf16.gmra.mrb[0].mxu0 %v206
    %v2208 = vpop.f32.mrb[0].mxu0
    %v2209 = vadd.f32 %v2096, %v2208
    %v2210 = vpop.f32.mrb[0].mxu0
    %v2211 = vadd.f32 %v2098, %v2210
    %v2212 = vpop.f32.mrb[0].mxu0
    %v2213 = vadd.f32 %v2100, %v2212
    %v2214 = vpop.f32.mrb[0].mxu0
    %v2215 = vadd.f32 %v2102, %v2214
    %2216 = vmatprep.mubr.bf16.mxu0 %v214
    %2217 = vmatmul.mubr.bf16.gmra.mrb[0].mxu0 %v213
    %v2218 = vpop.f32.mrb[0].mxu0
    %v2219 = vadd.f32 %v2106, %v2218
    %v2220 = vpop.f32.mrb[0].mxu0
    %v2221 = vadd.f32 %v2108, %v2220
    %v2222 = vpop.f32.mrb[0].mxu0
    %v2223 = vadd.f32 %v2110, %v2222
    %v2224 = vpop.f32.mrb[0].mxu0
    %v2225 = vadd.f32 %v2112, %v2224
    %2226 = vmatprep.mubr.bf16.mxu0 %v221
    %2227 = vmatmul.mubr.bf16.gmra.mrb[0].mxu0 %v220
    %v2228 = vpop.f32.mrb[0].mxu0
    %v2229 = vadd.f32 %v2116, %v2228
    %v2230 = vpop.f32.mrb[0].mxu0
    %v2231 = vadd.f32 %v2118, %v2230
    %v2232 = vpop.f32.mrb[0].mxu0
    %v2233 = vadd.f32 %v2120, %v2232
    %v2234 = vpop.f32.mrb[0].mxu0
    %v2235 = vadd.f32 %v2122, %v2234
    %2236 = vdwg.mxu0
    %2237 = vmatprep.subr.bf16.mxu0 %v1224
    %2238 = vmatpush1.bf16.msra.mxu0 %v1223
    %2239 = vmatprep.subr.bf16.mxu0 0
    %2240 = vmatpush1.bf16.msra.mxu0 0
    %2241 = vmatprep.subr.bf16.mxu0 0
    %2242 = vmatpush1.bf16.msra.mxu0 0
    %2243 = vmatprep.subr.bf16.mxu0 0
    %2244 = vmatpush1.bf16.msra.mxu0 0
    %2245 = vmatprep.subr.bf16.mxu0 0
    %2246 = vmatpush1.bf16.msra.mxu0 0
    %2247 = vmatprep.subr.bf16.mxu0 0
    %2248 = vmatpush1.bf16.msra.mxu0 0
    %2249 = vmatprep.subr.bf16.mxu0 0
    %2250 = vmatpush1.bf16.msra.mxu0 0
    %2251 = vmatprep.subr.bf16.mxu0 0
    %2252 = vmatpush1.bf16.msra.mxu0 0
    %2253 = vmatprep.subr.bf16.mxu0 0
    %2254 = vmatpush1.bf16.msra.mxu0 0
    %2255 = vmatprep.subr.bf16.mxu0 0
    %2256 = vmatpush1.bf16.msra.mxu0 0
    %2257 = vmatprep.subr.bf16.mxu0 0
    %2258 = vmatpush1.bf16.msra.mxu0 0
    %2259 = vmatprep.subr.bf16.mxu0 0
    %2260 = vmatpush1.bf16.msra.mxu0 0
    %2261 = vmatprep.subr.bf16.mxu0 0
    %2262 = vmatpush1.bf16.msra.mxu0 0
    %2263 = vmatprep.subr.bf16.mxu0 0
    %2264 = vmatpush1.bf16.msra.mxu0 0
    %2265 = vmatprep.subr.bf16.mxu0 0
    %2266 = vmatpush1.bf16.msra.mxu0 0
    %2267 = vmatprep.subr.bf16.mxu0 0
    %2268 = vmatpush1.bf16.msra.mxu0 0
    %2269 = vmatprep.mubr.bf16.mxu0 0
    %2270 = vmatmul.mubr.bf16.gmra.mrb[0].mxu0 %v1423
    %v2271 = vpop.f32.mrb[0].mxu0
    %v2272 = vadd.f32 %v2159, %v2271
    %v2273 = vpop.f32.mrb[0].mxu0
    %v2274 = vadd.f32 %v2161, %v2273
    %v2275 = vpop.f32.mrb[0].mxu0
    %v2276 = vadd.f32 %v2163, %v2275
    %v2277 = vpop.f32.mrb[0].mxu0
    %v2278 = vadd.f32 %v2165, %v2277
    %2279 = vmatprep.mubr.bf16.mxu0 0
    %2280 = vmatmul.mubr.bf16.gmra.mrb[0].mxu0 %v1426
    %v2281 = vpop.f32.mrb[0].mxu0
    %v2282 = vadd.f32 %v2169, %v2281
    %v2283 = vpop.f32.mrb[0].mxu0
    %v2284 = vadd.f32 %v2171, %v2283
    %v2285 = vpop.f32.mrb[0].mxu0
    %v2286 = vadd.f32 %v2173, %v2285
    %v2287 = vpop.f32.mrb[0].mxu0
    %v2288 = vadd.f32 %v2175, %v2287
    %2289 = vmatprep.mubr.bf16.mxu0 0
    %2290 = vmatmul.mubr.bf16.gmra.mrb[0].mxu0 %v1429
    %v2291 = vpop.f32.mrb[0].mxu0
    %v2292 = vadd.f32 %v2179, %v2291
    %v2293 = vpop.f32.mrb[0].mxu0
    %v2294 = vadd.f32 %v2181, %v2293
    %v2295 = vpop.f32.mrb[0].mxu0
    %v2296 = vadd.f32 %v2183, %v2295
    %v2297 = vpop.f32.mrb[0].mxu0
    %v2298 = vadd.f32 %v2185, %v2297
    %2299 = vmatprep.mubr.bf16.mxu0 0
    %2300 = vmatmul.mubr.bf16.gmra.mrb[0].mxu0 %v1432
    %v2301 = vpop.f32.mrb[0].mxu0
    %v2302 = vadd.f32 %v2189, %v2301
    %v2303 = vpop.f32.mrb[0].mxu0
    %v2304 = vadd.f32 %v2191, %v2303
    %v2305 = vpop.f32.mrb[0].mxu0
    %v2306 = vadd.f32 %v2193, %v2305
    %v2307 = vpop.f32.mrb[0].mxu0
    %v2308 = vadd.f32 %v2195, %v2307
    %2309 = vmatprep.mubr.bf16.mxu0 0
    %2310 = vmatmul.mubr.bf16.gmra.mrb[0].mxu0 %v1435
    %v2311 = vpop.f32.mrb[0].mxu0
    %v2312 = vadd.f32 %v2199, %v2311
    %v2313 = vpop.f32.mrb[0].mxu0
    %v2314 = vadd.f32 %v2201, %v2313
    %v2315 = vpop.f32.mrb[0].mxu0
    %v2316 = vadd.f32 %v2203, %v2315
    %v2317 = vpop.f32.mrb[0].mxu0
    %v2318 = vadd.f32 %v2205, %v2317
    %2319 = vmatprep.mubr.bf16.mxu0 0
    %2320 = vmatmul.mubr.bf16.gmra.mrb[0].mxu0 %v1438
    %v2321 = vpop.f32.mrb[0].mxu0
    %v2322 = vadd.f32 %v2209, %v2321
    %v2323 = vpop.f32.mrb[0].mxu0
    %v2324 = vadd.f32 %v2211, %v2323
    %v2325 = vpop.f32.mrb[0].mxu0
    %v2326 = vadd.f32 %v2213, %v2325
    %v2327 = vpop.f32.mrb[0].mxu0
    %v2328 = vadd.f32 %v2215, %v2327
    %2329 = vmatprep.mubr.bf16.mxu0 0
    %2330 = vmatmul.mubr.bf16.gmra.mrb[0].mxu0 %v1441
    %v2331 = vpop.f32.mrb[0].mxu0
    %v2332 = vadd.f32 %v2219, %v2331
    %v2333 = vpop.f32.mrb[0].mxu0
    %v2334 = vadd.f32 %v2221, %v2333
    %v2335 = vpop.f32.mrb[0].mxu0
    %v2336 = vadd.f32 %v2223, %v2335
    %v2337 = vpop.f32.mrb[0].mxu0
    %v2338 = vadd.f32 %v2225, %v2337
    %2339 = vmatprep.mubr.bf16.mxu0 0
    %2340 = vmatmul.mubr.bf16.gmra.mrb[0].mxu0 %v1444
    %v2341 = vpop.f32.mrb[0].mxu0
    %v2342 = vadd.f32 %v2229, %v2341
    %v2343 = vpop.f32.mrb[0].mxu0
    %v2344 = vadd.f32 %v2231, %v2343
    %v2345 = vpop.f32.mrb[0].mxu0
    %v2346 = vadd.f32 %v2233, %v2345
    %v2347 = vpop.f32.mrb[0].mxu0
    %v2348 = vadd.f32 %v2235, %v2347
    %2349 = vdwg.mxu0
    %v2350 = vmax.f32 %v1820, 0.0
    %v2351 = vmax.f32 %v1822, 0.0
    %v2352 = vmax.f32 %v2272, 0.0
    %v2353 = vmax.f32 %v2274, 0.0
    %v2354 = vmax.f32 %v1824, 0.0
    %v2355 = vmax.f32 %v1826, 0.0
    %v2356 = vmax.f32 %v2276, 0.0
    %v2357 = vmax.f32 %v2278, 0.0
    %v2358 = vmax.f32 %v1830, 0.0
    %v2359 = vmax.f32 %v1832, 0.0
    %v2360 = vmax.f32 %v2282, 0.0
    %v2361 = vmax.f32 %v2284, 0.0
    %v2362 = vmax.f32 %v1834, 0.0
    %v2363 = vmax.f32 %v1836, 0.0
    %v2364 = vmax.f32 %v2286, 0.0
    %v2365 = vmax.f32 %v2288, 0.0
    %v2366 = vmax.f32 %v1840, 0.0
    %v2367 = vmax.f32 %v1842, 0.0
    %v2368 = vmax.f32 %v2292, 0.0
    %v2369 = vmax.f32 %v2294, 0.0
    %v2370 = vmax.f32 %v1844, 0.0
    %v2371 = vmax.f32 %v1846, 0.0
    %v2372 = vmax.f32 %v2296, 0.0
    %v2373 = vmax.f32 %v2298, 0.0
    %v2374 = vmax.f32 %v1850, 0.0
    %v2375 = vmax.f32 %v1852, 0.0
    %v2376 = vmax.f32 %v2302, 0.0
    %v2377 = vmax.f32 %v2304, 0.0
    %v2378 = vmax.f32 %v1854, 0.0
    %v2379 = vmax.f32 %v1856, 0.0
    %v2380 = vmax.f32 %v2306, 0.0
    %v2381 = vmax.f32 %v2308, 0.0
    %v2382 = vmax.f32 %v1860, 0.0
    %v2383 = vmax.f32 %v1862, 0.0
    %v2384 = vmax.f32 %v2312, 0.0
    %v2385 = vmax.f32 %v2314, 0.0
    %v2386 = vmax.f32 %v1864, 0.0
    %v2387 = vmax.f32 %v1866, 0.0
    %v2388 = vmax.f32 %v2316, 0.0
    %v2389 = vmax.f32 %v2318, 0.0
    %v2390 = vmax.f32 %v1870, 0.0
    %v2391 = vmax.f32 %v1872, 0.0
    %v2392 = vmax.f32 %v2322, 0.0
    %v2393 = vmax.f32 %v2324, 0.0
    %v2394 = vmax.f32 %v1874, 0.0
    %v2395 = vmax.f32 %v1876, 0.0
    %v2396 = vmax.f32 %v2326, 0.0
    %v2397 = vmax.f32 %v2328, 0.0
    %v2398 = vmax.f32 %v1880, 0.0
    %v2399 = vmax.f32 %v1882, 0.0
    %v2400 = vmax.f32 %v2332, 0.0
    %v2401 = vmax.f32 %v2334, 0.0
    %v2402 = vmax.f32 %v1884, 0.0
    %v2403 = vmax.f32 %v1886, 0.0
    %v2404 = vmax.f32 %v2336, 0.0
    %v2405 = vmax.f32 %v2338, 0.0
    %v2406 = vmax.f32 %v1890, 0.0
    %v2407 = vmax.f32 %v1892, 0.0
    %v2408 = vmax.f32 %v2342, 0.0
    %v2409 = vmax.f32 %v2344, 0.0
    %v2410 = vmax.f32 %v1894, 0.0
    %v2411 = vmax.f32 %v1896, 0.0
    %v2412 = vmax.f32 %v2346, 0.0
    %v2413 = vmax.f32 %v2348, 0.0
    %v2414 = vpack.c.bf16 %v2354, %v2350
    %v2415 = vpack.c.bf16 %v2355, %v2351
    %v2416 = vpack.c.bf16 %v2356, %v2352
    %v2417 = vpack.c.bf16 %v2357, %v2353
    %v2418 = vpack.c.bf16 %v2362, %v2358
    %v2419 = vpack.c.bf16 %v2363, %v2359
    %v2420 = vpack.c.bf16 %v2364, %v2360
    %v2421 = vpack.c.bf16 %v2365, %v2361
    %v2422 = vpack.c.bf16 %v2370, %v2366
    %v2423 = vpack.c.bf16 %v2371, %v2367
    %v2424 = vpack.c.bf16 %v2372, %v2368
    %v2425 = vpack.c.bf16 %v2373, %v2369
    %v2426 = vpack.c.bf16 %v2378, %v2374
    %v2427 = vpack.c.bf16 %v2379, %v2375
    %v2428 = vpack.c.bf16 %v2380, %v2376
    %v2429 = vpack.c.bf16 %v2381, %v2377
    %v2430 = vpack.c.bf16 %v2386, %v2382
    %v2431 = vpack.c.bf16 %v2387, %v2383
    %v2432 = vpack.c.bf16 %v2388, %v2384
    %v2433 = vpack.c.bf16 %v2389, %v2385
    %v2434 = vpack.c.bf16 %v2394, %v2390
    %v2435 = vpack.c.bf16 %v2395, %v2391
    %v2436 = vpack.c.bf16 %v2396, %v2392
    %v2437 = vpack.c.bf16 %v2397, %v2393
    %v2438 = vpack.c.bf16 %v2402, %v2398
    %v2439 = vpack.c.bf16 %v2403, %v2399
    %v2440 = vpack.c.bf16 %v2404, %v2400
    %v2441 = vpack.c.bf16 %v2405, %v2401
    %v2442 = vpack.c.bf16 %v2410, %v2406
    %v2443 = vpack.c.bf16 %v2411, %v2407
    %v2444 = vpack.c.bf16 %v2412, %v2408
    %v2445 = vpack.c.bf16 %v2413, %v2409
    %v2446 = vld [vmem:[#allocation4] sm:$0xff]
    %v2447 = vld [vmem:[#allocation4 + $0x8] sm:$0xff]
    %v2448 = vld [vmem:[#allocation4 + $0x10] sm:$0xff]
    %v2449 = vld [vmem:[#allocation4 + $0x18] sm:$0xff]
    %v2450 = vld [vmem:[#allocation4 + $0x20] sm:$0xff]
    %v2451 = vld [vmem:[#allocation4 + $0x28] sm:$0xff]
    %v2452 = vld [vmem:[#allocation4 + $0x30] sm:$0xff]
    %v2453 = vld [vmem:[#allocation4 + $0x38] sm:$0xff]
    %v2454 = vld [vmem:[#allocation4 + $0x40] sm:$0xff]
    %v2455 = vld [vmem:[#allocation4 + $0x48] sm:$0xff]
    %v2456 = vld [vmem:[#allocation4 + $0x50] sm:$0xff]
    %v2457 = vld [vmem:[#allocation4 + $0x58] sm:$0xff]
    %v2458 = vld [vmem:[#allocation4 + $0x60] sm:$0xff]
    %v2459 = vld [vmem:[#allocation4 + $0x68] sm:$0xff]
    %v2460 = vld [vmem:[#allocation4 + $0x70] sm:$0xff]
    %v2461 = vld [vmem:[#allocation4 + $0x78] sm:$0xff]
    %v2462 = vld [vmem:[#allocation4 + $0x80] sm:$0xff]
    %v2463 = vld [vmem:[#allocation4 + $0x88] sm:$0xff]
    %v2464 = vld [vmem:[#allocation4 + $0x90] sm:$0xff]
    %v2465 = vld [vmem:[#allocation4 + $0x98] sm:$0xff]
    %v2466 = vld [vmem:[#allocation4 + $0xa0] sm:$0xff]
    %v2467 = vld [vmem:[#allocation4 + $0xa8] sm:$0xff]
    %v2468 = vld [vmem:[#allocation4 + $0xb0] sm:$0xff]
    %v2469 = vld [vmem:[#allocation4 + $0xb8] sm:$0xff]
    %v2470 = vld [vmem:[#allocation4 + $0xc0] sm:$0xff]
    %v2471 = vld [vmem:[#allocation4 + $0xc8] sm:$0xff]
    %v2472 = vld [vmem:[#allocation4 + $0xd0] sm:$0xff]
    %v2473 = vld [vmem:[#allocation4 + $0xd8] sm:$0xff]
    %v2474 = vld [vmem:[#allocation4 + $0xe0] sm:$0xff]
    %v2475 = vld [vmem:[#allocation4 + $0xe8] sm:$0xff]
    %v2476 = vld [vmem:[#allocation4 + $0xf0] sm:$0xff]
    %v2477 = vld [vmem:[#allocation4 + $0xf8] sm:$0xff]
    %v2478 = vld [vmem:[#allocation4 + $0x100] sm:$0xff]
    %v2479 = vld [vmem:[#allocation4 + $0x108] sm:$0xff]
    %v2480 = vld [vmem:[#allocation4 + $0x110] sm:$0xff]
    %v2481 = vld [vmem:[#allocation4 + $0x118] sm:$0xff]
    %v2482 = vld [vmem:[#allocation4 + $0x120] sm:$0xff]
    %v2483 = vld [vmem:[#allocation4 + $0x128] sm:$0xff]
    %v2484 = vld [vmem:[#allocation4 + $0x130] sm:$0xff]
    %v2485 = vld [vmem:[#allocation4 + $0x138] sm:$0xff]
    %v2486 = vld [vmem:[#allocation4 + $0x140] sm:$0xff]
    %v2487 = vld [vmem:[#allocation4 + $0x148] sm:$0xff]
    %v2488 = vld [vmem:[#allocation4 + $0x150] sm:$0xff]
    %v2489 = vld [vmem:[#allocation4 + $0x158] sm:$0xff]
    %v2490 = vld [vmem:[#allocation4 + $0x160] sm:$0xff]
    %v2491 = vld [vmem:[#allocation4 + $0x168] sm:$0xff]
    %v2492 = vld [vmem:[#allocation4 + $0x170] sm:$0xff]
    %v2493 = vld [vmem:[#allocation4 + $0x178] sm:$0xff]
    %v2494 = vld [vmem:[#allocation4 + $0x180] sm:$0xff]
    %v2495 = vld [vmem:[#allocation4 + $0x188] sm:$0xff]
    %v2496 = vld [vmem:[#allocation4 + $0x190] sm:$0xff]
    %v2497 = vld [vmem:[#allocation4 + $0x198] sm:$0xff]
    %v2498 = vld [vmem:[#allocation4 + $0x1a0] sm:$0xff]
    %v2499 = vld [vmem:[#allocation4 + $0x1a8] sm:$0xff]
    %v2500 = vld [vmem:[#allocation4 + $0x1b0] sm:$0xff]
    %v2501 = vld [vmem:[#allocation4 + $0x1b8] sm:$0xff]
    %v2502 = vld [vmem:[#allocation4 + $0x1c0] sm:$0xff]
    %v2503 = vld [vmem:[#allocation4 + $0x1c8] sm:$0xff]
    %v2504 = vld [vmem:[#allocation4 + $0x1d0] sm:$0xff]
    %v2505 = vld [vmem:[#allocation4 + $0x1d8] sm:$0xff]
    %v2506 = vld [vmem:[#allocation4 + $0x1e0] sm:$0xff]
    %v2507 = vld [vmem:[#allocation4 + $0x1e8] sm:$0xff]
    %v2508 = vld [vmem:[#allocation4 + $0x1f0] sm:$0xff]
    %v2509 = vld [vmem:[#allocation4 + $0x1f8] sm:$0xff]
    %v2510 = vld [vmem:[#allocation4 + $0x200] sm:$0xff]
    %v2511 = vld [vmem:[#allocation4 + $0x208] sm:$0xff]
    %v2512 = vld [vmem:[#allocation4 + $0x210] sm:$0xff]
    %v2513 = vld [vmem:[#allocation4 + $0x218] sm:$0xff]
    %v2514 = vld [vmem:[#allocation4 + $0x220] sm:$0xff]
    %v2515 = vld [vmem:[#allocation4 + $0x228] sm:$0xff]
    %v2516 = vld [vmem:[#allocation4 + $0x230] sm:$0xff]
    %v2517 = vld [vmem:[#allocation4 + $0x238] sm:$0xff]
    %v2518 = vld [vmem:[#allocation4 + $0x240] sm:$0xff]
    %v2519 = vld [vmem:[#allocation4 + $0x248] sm:$0xff]
    %v2520 = vld [vmem:[#allocation4 + $0x250] sm:$0xff]
    %v2521 = vld [vmem:[#allocation4 + $0x258] sm:$0xff]
    %v2522 = vld [vmem:[#allocation4 + $0x260] sm:$0xff]
    %v2523 = vld [vmem:[#allocation4 + $0x268] sm:$0xff]
    %v2524 = vld [vmem:[#allocation4 + $0x270] sm:$0xff]
    %v2525 = vld [vmem:[#allocation4 + $0x278] sm:$0xff]
    %v2526 = vld [vmem:[#allocation4 + $0x280] sm:$0xff]
    %v2527 = vld [vmem:[#allocation4 + $0x288] sm:$0xff]
    %v2528 = vld [vmem:[#allocation4 + $0x290] sm:$0xff]
    %v2529 = vld [vmem:[#allocation4 + $0x298] sm:$0xff]
    %v2530 = vld [vmem:[#allocation4 + $0x2a0] sm:$0xff]
    %v2531 = vld [vmem:[#allocation4 + $0x2a8] sm:$0xff]
    %v2532 = vld [vmem:[#allocation4 + $0x2b0] sm:$0xff]
    %v2533 = vld [vmem:[#allocation4 + $0x2b8] sm:$0xff]
    %v2534 = vld [vmem:[#allocation4 + $0x2c0] sm:$0xff]
    %v2535 = vld [vmem:[#allocation4 + $0x2c8] sm:$0xff]
    %v2536 = vld [vmem:[#allocation4 + $0x2d0] sm:$0xff]
    %v2537 = vld [vmem:[#allocation4 + $0x2d8] sm:$0xff]
    %v2538 = vld [vmem:[#allocation4 + $0x2e0] sm:$0xff]
    %v2539 = vld [vmem:[#allocation4 + $0x2e8] sm:$0xff]
    %v2540 = vld [vmem:[#allocation4 + $0x2f0] sm:$0xff]
    %v2541 = vld [vmem:[#allocation4 + $0x2f8] sm:$0xff]
    %v2542 = vld [vmem:[#allocation4 + $0x300] sm:$0xff]
    %v2543 = vld [vmem:[#allocation4 + $0x308] sm:$0xff]
    %v2544 = vld [vmem:[#allocation4 + $0x310] sm:$0xff]
    %v2545 = vld [vmem:[#allocation4 + $0x318] sm:$0xff]
    %v2546 = vld [vmem:[#allocation4 + $0x320] sm:$0xff]
    %v2547 = vld [vmem:[#allocation4 + $0x328] sm:$0xff]
    %v2548 = vld [vmem:[#allocation4 + $0x330] sm:$0xff]
    %v2549 = vld [vmem:[#allocation4 + $0x338] sm:$0xff]
    %v2550 = vld [vmem:[#allocation4 + $0x340] sm:$0xff]
    %v2551 = vld [vmem:[#allocation4 + $0x348] sm:$0xff]
    %v2552 = vld [vmem:[#allocation4 + $0x350] sm:$0xff]
    %v2553 = vld [vmem:[#allocation4 + $0x358] sm:$0xff]
    %v2554 = vld [vmem:[#allocation4 + $0x360] sm:$0xff]
    %v2555 = vld [vmem:[#allocation4 + $0x368] sm:$0xff]
    %v2556 = vld [vmem:[#allocation4 + $0x370] sm:$0xff]
    %v2557 = vld [vmem:[#allocation4 + $0x378] sm:$0xff]
    %v2558 = vld [vmem:[#allocation4 + $0x380] sm:$0xff]
    %v2559 = vld [vmem:[#allocation4 + $0x388] sm:$0xff]
    %v2560 = vld [vmem:[#allocation4 + $0x390] sm:$0xff]
    %v2561 = vld [vmem:[#allocation4 + $0x398] sm:$0xff]
    %v2562 = vld [vmem:[#allocation4 + $0x3a0] sm:$0xff]
    %v2563 = vld [vmem:[#allocation4 + $0x3a8] sm:$0xff]
    %v2564 = vld [vmem:[#allocation4 + $0x3b0] sm:$0xff]
    %v2565 = vld [vmem:[#allocation4 + $0x3b8] sm:$0xff]
    %v2566 = vld [vmem:[#allocation4 + $0x3c0] sm:$0xff]
    %v2567 = vld [vmem:[#allocation4 + $0x3c8] sm:$0xff]
    %v2568 = vld [vmem:[#allocation4 + $0x3d0] sm:$0xff]
    %v2569 = vld [vmem:[#allocation4 + $0x3d8] sm:$0xff]
    %v2570 = vld [vmem:[#allocation4 + $0x3e0] sm:$0xff]
    %v2571 = vld [vmem:[#allocation4 + $0x3e8] sm:$0xff]
    %v2572 = vld [vmem:[#allocation4 + $0x3f0] sm:$0xff]
    %v2573 = vld [vmem:[#allocation4 + $0x3f8] sm:$0xff]
    %v2574 = vld [vmem:[%s4] sm:$0xf]
    %v2576 = vlaneseq
    %v2577 = vshrl.u32 %v2576, 7
    %v2578 = vsub.s32 0, %v2577
    %v2579 = vrot.slane %v2574, %v2578
    %v2580 = vlaneseq
    %v2581 = vshrl.u32 %v2580, 7
    %v2582 = vsub.s32 1, %v2581
    %v2583 = vrot.slane %v2574, %v2582
    %v2584 = vlaneseq
    %v2585 = vshrl.u32 %v2584, 7
    %v2586 = vsub.s32 2, %v2585
    %v2587 = vrot.slane %v2574, %v2586
    %v2588 = vlaneseq
    %v2589 = vshrl.u32 %v2588, 7
    %v2590 = vsub.s32 3, %v2589
    %v2591 = vrot.slane %v2574, %v2590
    %v2724 = vunpack.c.l.b16 %v2446
    %v2725 = vunpack.c.h.b16 %v2446
    %v2726 = vunpack.c.l.b16 %v2447
    %v2727 = vunpack.c.h.b16 %v2447
    %v2728 = vunpack.c.l.b16 %v2448
    %v2729 = vunpack.c.h.b16 %v2448
    %v2730 = vunpack.c.l.b16 %v2449
    %v2731 = vunpack.c.h.b16 %v2449
    %v2732 = vunpack.c.l.b16 %v2450
    %v2733 = vunpack.c.h.b16 %v2450
    %v2734 = vunpack.c.l.b16 %v2451
    %v2735 = vunpack.c.h.b16 %v2451
    %v2736 = vunpack.c.l.b16 %v2452
    %v2737 = vunpack.c.h.b16 %v2452
    %v2738 = vunpack.c.l.b16 %v2453
    %v2739 = vunpack.c.h.b16 %v2453
    %v2740 = vunpack.c.l.b16 %v2454
    %v2741 = vunpack.c.h.b16 %v2454
    %v2742 = vunpack.c.l.b16 %v2455
    %v2743 = vunpack.c.h.b16 %v2455
    %v2744 = vunpack.c.l.b16 %v2456
    %v2745 = vunpack.c.h.b16 %v2456
    %v2746 = vunpack.c.l.b16 %v2457
    %v2747 = vunpack.c.h.b16 %v2457
    %v2748 = vunpack.c.l.b16 %v2458
    %v2749 = vunpack.c.h.b16 %v2458
    %v2750 = vunpack.c.l.b16 %v2459
    %v2751 = vunpack.c.h.b16 %v2459
    %v2752 = vunpack.c.l.b16 %v2460
    %v2753 = vunpack.c.h.b16 %v2460
    %v2754 = vunpack.c.l.b16 %v2461
    %v2755 = vunpack.c.h.b16 %v2461
    %v2756 = vunpack.c.l.b16 %v2462
    %v2757 = vunpack.c.h.b16 %v2462
    %v2758 = vunpack.c.l.b16 %v2463
    %v2759 = vunpack.c.h.b16 %v2463
    %v2760 = vunpack.c.l.b16 %v2464
    %v2761 = vunpack.c.h.b16 %v2464
    %v2762 = vunpack.c.l.b16 %v2465
    %v2763 = vunpack.c.h.b16 %v2465
    %v2764 = vunpack.c.l.b16 %v2466
    %v2765 = vunpack.c.h.b16 %v2466
    %v2766 = vunpack.c.l.b16 %v2467
    %v2767 = vunpack.c.h.b16 %v2467
    %v2768 = vunpack.c.l.b16 %v2468
    %v2769 = vunpack.c.h.b16 %v2468
    %v2770 = vunpack.c.l.b16 %v2469
    %v2771 = vunpack.c.h.b16 %v2469
    %v2772 = vunpack.c.l.b16 %v2470
    %v2773 = vunpack.c.h.b16 %v2470
    %v2774 = vunpack.c.l.b16 %v2471
    %v2775 = vunpack.c.h.b16 %v2471
    %v2776 = vunpack.c.l.b16 %v2472
    %v2777 = vunpack.c.h.b16 %v2472
    %v2778 = vunpack.c.l.b16 %v2473
    %v2779 = vunpack.c.h.b16 %v2473
    %v2780 = vunpack.c.l.b16 %v2474
    %v2781 = vunpack.c.h.b16 %v2474
    %v2782 = vunpack.c.l.b16 %v2475
    %v2783 = vunpack.c.h.b16 %v2475
    %v2784 = vunpack.c.l.b16 %v2476
    %v2785 = vunpack.c.h.b16 %v2476
    %v2786 = vunpack.c.l.b16 %v2477
    %v2787 = vunpack.c.h.b16 %v2477
    %v2788 = vunpack.c.l.b16 %v2478
    %v2789 = vunpack.c.h.b16 %v2478
    %v2790 = vunpack.c.l.b16 %v2479
    %v2791 = vunpack.c.h.b16 %v2479
    %v2792 = vunpack.c.l.b16 %v2480
    %v2793 = vunpack.c.h.b16 %v2480
    %v2794 = vunpack.c.l.b16 %v2481
    %v2795 = vunpack.c.h.b16 %v2481
    %v2796 = vunpack.c.l.b16 %v2482
    %v2797 = vunpack.c.h.b16 %v2482
    %v2798 = vunpack.c.l.b16 %v2483
    %v2799 = vunpack.c.h.b16 %v2483
    %v2800 = vunpack.c.l.b16 %v2484
    %v2801 = vunpack.c.h.b16 %v2484
    %v2802 = vunpack.c.l.b16 %v2485
    %v2803 = vunpack.c.h.b16 %v2485
    %v2804 = vunpack.c.l.b16 %v2486
    %v2805 = vunpack.c.h.b16 %v2486
    %v2806 = vunpack.c.l.b16 %v2487
    %v2807 = vunpack.c.h.b16 %v2487
    %v2808 = vunpack.c.l.b16 %v2488
    %v2809 = vunpack.c.h.b16 %v2488
    %v2810 = vunpack.c.l.b16 %v2489
    %v2811 = vunpack.c.h.b16 %v2489
    %v2812 = vunpack.c.l.b16 %v2490
    %v2813 = vunpack.c.h.b16 %v2490
    %v2814 = vunpack.c.l.b16 %v2491
    %v2815 = vunpack.c.h.b16 %v2491
    %v2816 = vunpack.c.l.b16 %v2492
    %v2817 = vunpack.c.h.b16 %v2492
    %v2818 = vunpack.c.l.b16 %v2493
    %v2819 = vunpack.c.h.b16 %v2493
    %v2820 = vunpack.c.l.b16 %v2494
    %v2821 = vunpack.c.h.b16 %v2494
    %v2822 = vunpack.c.l.b16 %v2495
    %v2823 = vunpack.c.h.b16 %v2495
    %v2824 = vunpack.c.l.b16 %v2496
    %v2825 = vunpack.c.h.b16 %v2496
    %v2826 = vunpack.c.l.b16 %v2497
    %v2827 = vunpack.c.h.b16 %v2497
    %v2828 = vunpack.c.l.b16 %v2498
    %v2829 = vunpack.c.h.b16 %v2498
    %v2830 = vunpack.c.l.b16 %v2499
    %v2831 = vunpack.c.h.b16 %v2499
    %v2832 = vunpack.c.l.b16 %v2500
    %v2833 = vunpack.c.h.b16 %v2500
    %v2834 = vunpack.c.l.b16 %v2501
    %v2835 = vunpack.c.h.b16 %v2501
    %v2836 = vunpack.c.l.b16 %v2502
    %v2837 = vunpack.c.h.b16 %v2502
    %v2838 = vunpack.c.l.b16 %v2503
    %v2839 = vunpack.c.h.b16 %v2503
    %v2840 = vunpack.c.l.b16 %v2504
    %v2841 = vunpack.c.h.b16 %v2504
    %v2842 = vunpack.c.l.b16 %v2505
    %v2843 = vunpack.c.h.b16 %v2505
    %v2844 = vunpack.c.l.b16 %v2506
    %v2845 = vunpack.c.h.b16 %v2506
    %v2846 = vunpack.c.l.b16 %v2507
    %v2847 = vunpack.c.h.b16 %v2507
    %v2848 = vunpack.c.l.b16 %v2508
    %v2849 = vunpack.c.h.b16 %v2508
    %v2850 = vunpack.c.l.b16 %v2509
    %v2851 = vunpack.c.h.b16 %v2509
    %v2852 = vunpack.c.l.b16 %v2510
    %v2853 = vunpack.c.h.b16 %v2510
    %v2854 = vunpack.c.l.b16 %v2511
    %v2855 = vunpack.c.h.b16 %v2511
    %v2856 = vunpack.c.l.b16 %v2512
    %v2857 = vunpack.c.h.b16 %v2512
    %v2858 = vunpack.c.l.b16 %v2513
    %v2859 = vunpack.c.h.b16 %v2513
    %v2860 = vunpack.c.l.b16 %v2514
    %v2861 = vunpack.c.h.b16 %v2514
    %v2862 = vunpack.c.l.b16 %v2515
    %v2863 = vunpack.c.h.b16 %v2515
    %v2864 = vunpack.c.l.b16 %v2516
    %v2865 = vunpack.c.h.b16 %v2516
    %v2866 = vunpack.c.l.b16 %v2517
    %v2867 = vunpack.c.h.b16 %v2517
    %v2868 = vunpack.c.l.b16 %v2518
    %v2869 = vunpack.c.h.b16 %v2518
    %v2870 = vunpack.c.l.b16 %v2519
    %v2871 = vunpack.c.h.b16 %v2519
    %v2872 = vunpack.c.l.b16 %v2520
    %v2873 = vunpack.c.h.b16 %v2520
    %v2874 = vunpack.c.l.b16 %v2521
    %v2875 = vunpack.c.h.b16 %v2521
    %v2876 = vunpack.c.l.b16 %v2522
    %v2877 = vunpack.c.h.b16 %v2522
    %v2878 = vunpack.c.l.b16 %v2523
    %v2879 = vunpack.c.h.b16 %v2523
    %v2880 = vunpack.c.l.b16 %v2524
    %v2881 = vunpack.c.h.b16 %v2524
    %v2882 = vunpack.c.l.b16 %v2525
    %v2883 = vunpack.c.h.b16 %v2525
    %v2884 = vunpack.c.l.b16 %v2526
    %v2885 = vunpack.c.h.b16 %v2526
    %v2886 = vunpack.c.l.b16 %v2527
    %v2887 = vunpack.c.h.b16 %v2527
    %v2888 = vunpack.c.l.b16 %v2528
    %v2889 = vunpack.c.h.b16 %v2528
    %v2890 = vunpack.c.l.b16 %v2529
    %v2891 = vunpack.c.h.b16 %v2529
    %v2892 = vunpack.c.l.b16 %v2530
    %v2893 = vunpack.c.h.b16 %v2530
    %v2894 = vunpack.c.l.b16 %v2531
    %v2895 = vunpack.c.h.b16 %v2531
    %v2896 = vunpack.c.l.b16 %v2532
    %v2897 = vunpack.c.h.b16 %v2532
    %v2898 = vunpack.c.l.b16 %v2533
    %v2899 = vunpack.c.h.b16 %v2533
    %v2900 = vunpack.c.l.b16 %v2534
    %v2901 = vunpack.c.h.b16 %v2534
    %v2902 = vunpack.c.l.b16 %v2535
    %v2903 = vunpack.c.h.b16 %v2535
    %v2904 = vunpack.c.l.b16 %v2536
    %v2905 = vunpack.c.h.b16 %v2536
    %v2906 = vunpack.c.l.b16 %v2537
    %v2907 = vunpack.c.h.b16 %v2537
    %v2908 = vunpack.c.l.b16 %v2538
    %v2909 = vunpack.c.h.b16 %v2538
    %v2910 = vunpack.c.l.b16 %v2539
    %v2911 = vunpack.c.h.b16 %v2539
    %v2912 = vunpack.c.l.b16 %v2540
    %v2913 = vunpack.c.h.b16 %v2540
    %v2914 = vunpack.c.l.b16 %v2541
    %v2915 = vunpack.c.h.b16 %v2541
    %v2916 = vunpack.c.l.b16 %v2542
    %v2917 = vunpack.c.h.b16 %v2542
    %v2918 = vunpack.c.l.b16 %v2543
    %v2919 = vunpack.c.h.b16 %v2543
    %v2920 = vunpack.c.l.b16 %v2544
    %v2921 = vunpack.c.h.b16 %v2544
    %v2922 = vunpack.c.l.b16 %v2545
    %v2923 = vunpack.c.h.b16 %v2545
    %v2924 = vunpack.c.l.b16 %v2546
    %v2925 = vunpack.c.h.b16 %v2546
    %v2926 = vunpack.c.l.b16 %v2547
    %v2927 = vunpack.c.h.b16 %v2547
    %v2928 = vunpack.c.l.b16 %v2548
    %v2929 = vunpack.c.h.b16 %v2548
    %v2930 = vunpack.c.l.b16 %v2549
    %v2931 = vunpack.c.h.b16 %v2549
    %v2932 = vunpack.c.l.b16 %v2550
    %v2933 = vunpack.c.h.b16 %v2550
    %v2934 = vunpack.c.l.b16 %v2551
    %v2935 = vunpack.c.h.b16 %v2551
    %v2936 = vunpack.c.l.b16 %v2552
    %v2937 = vunpack.c.h.b16 %v2552
    %v2938 = vunpack.c.l.b16 %v2553
    %v2939 = vunpack.c.h.b16 %v2553
    %v2940 = vunpack.c.l.b16 %v2554
    %v2941 = vunpack.c.h.b16 %v2554
    %v2942 = vunpack.c.l.b16 %v2555
    %v2943 = vunpack.c.h.b16 %v2555
    %v2944 = vunpack.c.l.b16 %v2556
    %v2945 = vunpack.c.h.b16 %v2556
    %v2946 = vunpack.c.l.b16 %v2557
    %v2947 = vunpack.c.h.b16 %v2557
    %v2948 = vunpack.c.l.b16 %v2558
    %v2949 = vunpack.c.h.b16 %v2558
    %v2950 = vunpack.c.l.b16 %v2559
    %v2951 = vunpack.c.h.b16 %v2559
    %v2952 = vunpack.c.l.b16 %v2560
    %v2953 = vunpack.c.h.b16 %v2560
    %v2954 = vunpack.c.l.b16 %v2561
    %v2955 = vunpack.c.h.b16 %v2561
    %v2956 = vunpack.c.l.b16 %v2562
    %v2957 = vunpack.c.h.b16 %v2562
    %v2958 = vunpack.c.l.b16 %v2563
    %v2959 = vunpack.c.h.b16 %v2563
    %v2960 = vunpack.c.l.b16 %v2564
    %v2961 = vunpack.c.h.b16 %v2564
    %v2962 = vunpack.c.l.b16 %v2565
    %v2963 = vunpack.c.h.b16 %v2565
    %v2964 = vunpack.c.l.b16 %v2566
    %v2965 = vunpack.c.h.b16 %v2566
    %v2966 = vunpack.c.l.b16 %v2567
    %v2967 = vunpack.c.h.b16 %v2567
    %v2968 = vunpack.c.l.b16 %v2568
    %v2969 = vunpack.c.h.b16 %v2568
    %v2970 = vunpack.c.l.b16 %v2569
    %v2971 = vunpack.c.h.b16 %v2569
    %v2972 = vunpack.c.l.b16 %v2570
    %v2973 = vunpack.c.h.b16 %v2570
    %v2974 = vunpack.c.l.b16 %v2571
    %v2975 = vunpack.c.h.b16 %v2571
    %v2976 = vunpack.c.l.b16 %v2572
    %v2977 = vunpack.c.h.b16 %v2572
    %v2978 = vunpack.c.l.b16 %v2573
    %v2979 = vunpack.c.h.b16 %v2573
    %v2980 = vpack.c.b16 %v2728, %v2724
    %v2981 = vpack.c.b16 %v2729, %v2725
    %v2982 = vpack.c.b16 %v2730, %v2726
    %v2983 = vpack.c.b16 %v2731, %v2727
    %v2984 = vpack.c.b16 %v2736, %v2732
    %v2985 = vpack.c.b16 %v2737, %v2733
    %v2986 = vpack.c.b16 %v2738, %v2734
    %v2987 = vpack.c.b16 %v2739, %v2735
    %v2988 = vpack.c.b16 %v2744, %v2740
    %v2989 = vpack.c.b16 %v2745, %v2741
    %v2990 = vpack.c.b16 %v2746, %v2742
    %v2991 = vpack.c.b16 %v2747, %v2743
    %v2992 = vpack.c.b16 %v2752, %v2748
    %v2993 = vpack.c.b16 %v2753, %v2749
    %v2994 = vpack.c.b16 %v2754, %v2750
    %v2995 = vpack.c.b16 %v2755, %v2751
    %v2996 = vpack.c.b16 %v2760, %v2756
    %v2997 = vpack.c.b16 %v2761, %v2757
    %v2998 = vpack.c.b16 %v2762, %v2758
    %v2999 = vpack.c.b16 %v2763, %v2759
    %v3000 = vpack.c.b16 %v2768, %v2764
    %v3001 = vpack.c.b16 %v2769, %v2765
    %v3002 = vpack.c.b16 %v2770, %v2766
    %v3003 = vpack.c.b16 %v2771, %v2767
    %v3004 = vpack.c.b16 %v2776, %v2772
    %v3005 = vpack.c.b16 %v2777, %v2773
    %v3006 = vpack.c.b16 %v2778, %v2774
    %v3007 = vpack.c.b16 %v2779, %v2775
    %v3008 = vpack.c.b16 %v2784, %v2780
    %v3009 = vpack.c.b16 %v2785, %v2781
    %v3010 = vpack.c.b16 %v2786, %v2782
    %v3011 = vpack.c.b16 %v2787, %v2783
    %v3012 = vpack.c.b16 %v2792, %v2788
    %v3013 = vpack.c.b16 %v2793, %v2789
    %v3014 = vpack.c.b16 %v2794, %v2790
    %v3015 = vpack.c.b16 %v2795, %v2791
    %v3016 = vpack.c.b16 %v2800, %v2796
    %v3017 = vpack.c.b16 %v2801, %v2797
    %v3018 = vpack.c.b16 %v2802, %v2798
    %v3019 = vpack.c.b16 %v2803, %v2799
    %v3020 = vpack.c.b16 %v2808, %v2804
    %v3021 = vpack.c.b16 %v2809, %v2805
    %v3022 = vpack.c.b16 %v2810, %v2806
    %v3023 = vpack.c.b16 %v2811, %v2807
    %v3024 = vpack.c.b16 %v2816, %v2812
    %v3025 = vpack.c.b16 %v2817, %v2813
    %v3026 = vpack.c.b16 %v2818, %v2814
    %v3027 = vpack.c.b16 %v2819, %v2815
    %v3028 = vpack.c.b16 %v2824, %v2820
    %v3029 = vpack.c.b16 %v2825, %v2821
    %v3030 = vpack.c.b16 %v2826, %v2822
    %v3031 = vpack.c.b16 %v2827, %v2823
    %v3032 = vpack.c.b16 %v2832, %v2828
    %v3033 = vpack.c.b16 %v2833, %v2829
    %v3034 = vpack.c.b16 %v2834, %v2830
    %v3035 = vpack.c.b16 %v2835, %v2831
    %v3036 = vpack.c.b16 %v2840, %v2836
    %v3037 = vpack.c.b16 %v2841, %v2837
    %v3038 = vpack.c.b16 %v2842, %v2838
    %v3039 = vpack.c.b16 %v2843, %v2839
    %v3040 = vpack.c.b16 %v2848, %v2844
    %v3041 = vpack.c.b16 %v2849, %v2845
    %v3042 = vpack.c.b16 %v2850, %v2846
    %v3043 = vpack.c.b16 %v2851, %v2847
    %v3044 = vpack.c.b16 %v2856, %v2852
    %v3045 = vpack.c.b16 %v2857, %v2853
    %v3046 = vpack.c.b16 %v2858, %v2854
    %v3047 = vpack.c.b16 %v2859, %v2855
    %v3048 = vpack.c.b16 %v2864, %v2860
    %v3049 = vpack.c.b16 %v2865, %v2861
    %v3050 = vpack.c.b16 %v2866, %v2862
    %v3051 = vpack.c.b16 %v2867, %v2863
    %v3052 = vpack.c.b16 %v2872, %v2868
    %v3053 = vpack.c.b16 %v2873, %v2869
    %v3054 = vpack.c.b16 %v2874, %v2870
    %v3055 = vpack.c.b16 %v2875, %v2871
    %v3056 = vpack.c.b16 %v2880, %v2876
    %v3057 = vpack.c.b16 %v2881, %v2877
    %v3058 = vpack.c.b16 %v2882, %v2878
    %v3059 = vpack.c.b16 %v2883, %v2879
    %v3060 = vpack.c.b16 %v2888, %v2884
    %v3061 = vpack.c.b16 %v2889, %v2885
    %v3062 = vpack.c.b16 %v2890, %v2886
    %v3063 = vpack.c.b16 %v2891, %v2887
    %v3064 = vpack.c.b16 %v2896, %v2892
    %v3065 = vpack.c.b16 %v2897, %v2893
    %v3066 = vpack.c.b16 %v2898, %v2894
    %v3067 = vpack.c.b16 %v2899, %v2895
    %v3068 = vpack.c.b16 %v2904, %v2900
    %v3069 = vpack.c.b16 %v2905, %v2901
    %v3070 = vpack.c.b16 %v2906, %v2902
    %v3071 = vpack.c.b16 %v2907, %v2903
    %v3072 = vpack.c.b16 %v2912, %v2908
    %v3073 = vpack.c.b16 %v2913, %v2909
    %v3074 = vpack.c.b16 %v2914, %v2910
    %v3075 = vpack.c.b16 %v2915, %v2911
    %v3076 = vpack.c.b16 %v2920, %v2916
    %v3077 = vpack.c.b16 %v2921, %v2917
    %v3078 = vpack.c.b16 %v2922, %v2918
    %v3079 = vpack.c.b16 %v2923, %v2919
    %v3080 = vpack.c.b16 %v2928, %v2924
    %v3081 = vpack.c.b16 %v2929, %v2925
    %v3082 = vpack.c.b16 %v2930, %v2926
    %v3083 = vpack.c.b16 %v2931, %v2927
    %v3084 = vpack.c.b16 %v2936, %v2932
    %v3085 = vpack.c.b16 %v2937, %v2933
    %v3086 = vpack.c.b16 %v2938, %v2934
    %v3087 = vpack.c.b16 %v2939, %v2935
    %v3088 = vpack.c.b16 %v2944, %v2940
    %v3089 = vpack.c.b16 %v2945, %v2941
    %v3090 = vpack.c.b16 %v2946, %v2942
    %v3091 = vpack.c.b16 %v2947, %v2943
    %v3092 = vpack.c.b16 %v2952, %v2948
    %v3093 = vpack.c.b16 %v2953, %v2949
    %v3094 = vpack.c.b16 %v2954, %v2950
    %v3095 = vpack.c.b16 %v2955, %v2951
    %v3096 = vpack.c.b16 %v2960, %v2956
    %v3097 = vpack.c.b16 %v2961, %v2957
    %v3098 = vpack.c.b16 %v2962, %v2958
    %v3099 = vpack.c.b16 %v2963, %v2959
    %v3100 = vpack.c.b16 %v2968, %v2964
    %v3101 = vpack.c.b16 %v2969, %v2965
    %v3102 = vpack.c.b16 %v2970, %v2966
    %v3103 = vpack.c.b16 %v2971, %v2967
    %v3104 = vpack.c.b16 %v2976, %v2972
    %v3105 = vpack.c.b16 %v2977, %v2973
    %v3106 = vpack.c.b16 %v2978, %v2974
    %v3107 = vpack.c.b16 %v2979, %v2975
    %3236 = vmatprep.subr.bf16.mxu0 %v2981
    %3237 = vmatpush1.bf16.msra.mxu0 %v2980
    %3238 = vmatprep.subr.bf16.mxu0 %v2985
    %3239 = vmatpush1.bf16.msra.mxu0 %v2984
    %3240 = vmatprep.subr.bf16.mxu0 %v2989
    %3241 = vmatpush1.bf16.msra.mxu0 %v2988
    %3242 = vmatprep.subr.bf16.mxu0 %v2993
    %3243 = vmatpush1.bf16.msra.mxu0 %v2992
    %3244 = vmatprep.subr.bf16.mxu0 %v2997
    %3245 = vmatpush1.bf16.msra.mxu0 %v2996
    %3246 = vmatprep.subr.bf16.mxu0 %v3001
    %3247 = vmatpush1.bf16.msra.mxu0 %v3000
    %3248 = vmatprep.subr.bf16.mxu0 %v3005
    %3249 = vmatpush1.bf16.msra.mxu0 %v3004
    %3250 = vmatprep.subr.bf16.mxu0 %v3009
    %3251 = vmatpush1.bf16.msra.mxu0 %v3008
    %3252 = vmatprep.subr.bf16.mxu0 %v3013
    %3253 = vmatpush1.bf16.msra.mxu0 %v3012
    %3254 = vmatprep.subr.bf16.mxu0 %v3017
    %3255 = vmatpush1.bf16.msra.mxu0 %v3016
    %3256 = vmatprep.subr.bf16.mxu0 %v3021
    %3257 = vmatpush1.bf16.msra.mxu0 %v3020
    %3258 = vmatprep.subr.bf16.mxu0 %v3025
    %3259 = vmatpush1.bf16.msra.mxu0 %v3024
    %3260 = vmatprep.subr.bf16.mxu0 %v3029
    %3261 = vmatpush1.bf16.msra.mxu0 %v3028
    %3262 = vmatprep.subr.bf16.mxu0 %v3033
    %3263 = vmatpush1.bf16.msra.mxu0 %v3032
    %3264 = vmatprep.subr.bf16.mxu0 %v3037
    %3265 = vmatpush1.bf16.msra.mxu0 %v3036
    %3266 = vmatprep.subr.bf16.mxu0 %v3041
    %3267 = vmatpush1.bf16.msra.mxu0 %v3040
    %3268 = vmatprep.mubr.bf16.mxu0 %v2415
    %3269 = vmatmul.mubr.bf16.gmra.mrb[0].mxu0 %v2414
    %v3270 = vpop.f32.mrb[0].mxu0
    %v3271 = vadd.f32 %v2579, %v3270
    %v3272 = vpop.f32.mrb[0].mxu0
    %v3273 = vadd.f32 %v2583, %v3272
    %v3274 = vpop.f32.mrb[0].mxu0
    %v3275 = vadd.f32 %v2579, %v3274
    %v3276 = vpop.f32.mrb[0].mxu0
    %v3277 = vadd.f32 %v2583, %v3276
    %3278 = vmatprep.mubr.bf16.mxu0 %v2419
    %3279 = vmatmul.mubr.bf16.gmra.mrb[0].mxu0 %v2418
    %v3280 = vpop.f32.mrb[0].mxu0
    %v3281 = vadd.f32 %v2579, %v3280
    %v3282 = vpop.f32.mrb[0].mxu0
    %v3283 = vadd.f32 %v2583, %v3282
    %v3284 = vpop.f32.mrb[0].mxu0
    %v3285 = vadd.f32 %v2579, %v3284
    %v3286 = vpop.f32.mrb[0].mxu0
    %v3287 = vadd.f32 %v2583, %v3286
    %3288 = vmatprep.mubr.bf16.mxu0 %v2423
    %3289 = vmatmul.mubr.bf16.gmra.mrb[0].mxu0 %v2422
    %v3290 = vpop.f32.mrb[0].mxu0
    %v3291 = vadd.f32 %v2579, %v3290
    %v3292 = vpop.f32.mrb[0].mxu0
    %v3293 = vadd.f32 %v2583, %v3292
    %v3294 = vpop.f32.mrb[0].mxu0
    %v3295 = vadd.f32 %v2579, %v3294
    %v3296 = vpop.f32.mrb[0].mxu0
    %v3297 = vadd.f32 %v2583, %v3296
    %3298 = vmatprep.mubr.bf16.mxu0 %v2427
    %3299 = vmatmul.mubr.bf16.gmra.mrb[0].mxu0 %v2426
    %v3300 = vpop.f32.mrb[0].mxu0
    %v3301 = vadd.f32 %v2579, %v3300
    %v3302 = vpop.f32.mrb[0].mxu0
    %v3303 = vadd.f32 %v2583, %v3302
    %v3304 = vpop.f32.mrb[0].mxu0
    %v3305 = vadd.f32 %v2579, %v3304
    %v3306 = vpop.f32.mrb[0].mxu0
    %v3307 = vadd.f32 %v2583, %v3306
    %3308 = vmatprep.mubr.bf16.mxu0 %v2431
    %3309 = vmatmul.mubr.bf16.gmra.mrb[0].mxu0 %v2430
    %v3310 = vpop.f32.mrb[0].mxu0
    %v3311 = vadd.f32 %v2579, %v3310
    %v3312 = vpop.f32.mrb[0].mxu0
    %v3313 = vadd.f32 %v2583, %v3312
    %v3314 = vpop.f32.mrb[0].mxu0
    %v3315 = vadd.f32 %v2579, %v3314
    %v3316 = vpop.f32.mrb[0].mxu0
    %v3317 = vadd.f32 %v2583, %v3316
    %3318 = vmatprep.mubr.bf16.mxu0 %v2435
    %3319 = vmatmul.mubr.bf16.gmra.mrb[0].mxu0 %v2434
    %v3320 = vpop.f32.mrb[0].mxu0
    %v3321 = vadd.f32 %v2579, %v3320
    %v3322 = vpop.f32.mrb[0].mxu0
    %v3323 = vadd.f32 %v2583, %v3322
    %v3324 = vpop.f32.mrb[0].mxu0
    %v3325 = vadd.f32 %v2579, %v3324
    %v3326 = vpop.f32.mrb[0].mxu0
    %v3327 = vadd.f32 %v2583, %v3326
    %3328 = vmatprep.mubr.bf16.mxu0 %v2439
    %3329 = vmatmul.mubr.bf16.gmra.mrb[0].mxu0 %v2438
    %v3330 = vpop.f32.mrb[0].mxu0
    %v3331 = vadd.f32 %v2579, %v3330
    %v3332 = vpop.f32.mrb[0].mxu0
    %v3333 = vadd.f32 %v2583, %v3332
    %v3334 = vpop.f32.mrb[0].mxu0
    %v3335 = vadd.f32 %v2579, %v3334
    %v3336 = vpop.f32.mrb[0].mxu0
    %v3337 = vadd.f32 %v2583, %v3336
    %3338 = vmatprep.mubr.bf16.mxu0 %v2443
    %3339 = vmatmul.mubr.bf16.gmra.mrb[0].mxu0 %v2442
    %v3340 = vpop.f32.mrb[0].mxu0
    %v3341 = vadd.f32 %v2579, %v3340
    %v3342 = vpop.f32.mrb[0].mxu0
    %v3343 = vadd.f32 %v2583, %v3342
    %v3344 = vpop.f32.mrb[0].mxu0
    %v3345 = vadd.f32 %v2579, %v3344
    %v3346 = vpop.f32.mrb[0].mxu0
    %v3347 = vadd.f32 %v2583, %v3346
    %3348 = vdwg.mxu0
    %3349 = vmatprep.subr.bf16.mxu0 %v3045
    %3350 = vmatpush1.bf16.msra.mxu0 %v3044
    %3351 = vmatprep.subr.bf16.mxu0 %v3049
    %3352 = vmatpush1.bf16.msra.mxu0 %v3048
    %3353 = vmatprep.subr.bf16.mxu0 %v3053
    %3354 = vmatpush1.bf16.msra.mxu0 %v3052
    %3355 = vmatprep.subr.bf16.mxu0 %v3057
    %3356 = vmatpush1.bf16.msra.mxu0 %v3056
    %3357 = vmatprep.subr.bf16.mxu0 %v3061
    %3358 = vmatpush1.bf16.msra.mxu0 %v3060
    %3359 = vmatprep.subr.bf16.mxu0 %v3065
    %3360 = vmatpush1.bf16.msra.mxu0 %v3064
    %3361 = vmatprep.subr.bf16.mxu0 %v3069
    %3362 = vmatpush1.bf16.msra.mxu0 %v3068
    %3363 = vmatprep.subr.bf16.mxu0 %v3073
    %3364 = vmatpush1.bf16.msra.mxu0 %v3072
    %3365 = vmatprep.subr.bf16.mxu0 %v3077
    %3366 = vmatpush1.bf16.msra.mxu0 %v3076
    %3367 = vmatprep.subr.bf16.mxu0 %v3081
    %3368 = vmatpush1.bf16.msra.mxu0 %v3080
    %3369 = vmatprep.subr.bf16.mxu0 %v3085
    %3370 = vmatpush1.bf16.msra.mxu0 %v3084
    %3371 = vmatprep.subr.bf16.mxu0 %v3089
    %3372 = vmatpush1.bf16.msra.mxu0 %v3088
    %3373 = vmatprep.subr.bf16.mxu0 %v3093
    %3374 = vmatpush1.bf16.msra.mxu0 %v3092
    %3375 = vmatprep.subr.bf16.mxu0 %v3097
    %3376 = vmatpush1.bf16.msra.mxu0 %v3096
    %3377 = vmatprep.subr.bf16.mxu0 %v3101
    %3378 = vmatpush1.bf16.msra.mxu0 %v3100
    %3379 = vmatprep.subr.bf16.mxu0 %v3105
    %3380 = vmatpush1.bf16.msra.mxu0 %v3104
    %3381 = vmatprep.mubr.bf16.mxu0 %v2417
    %3382 = vmatmul.mubr.bf16.gmra.mrb[0].mxu0 %v2416
    %v3383 = vpop.f32.mrb[0].mxu0
    %v3384 = vadd.f32 %v3271, %v3383
    %v3385 = vpop.f32.mrb[0].mxu0
    %v3386 = vadd.f32 %v3273, %v3385
    %v3387 = vpop.f32.mrb[0].mxu0
    %v3388 = vadd.f32 %v3275, %v3387
    %v3389 = vpop.f32.mrb[0].mxu0
    %v3390 = vadd.f32 %v3277, %v3389
    %3391 = vmatprep.mubr.bf16.mxu0 %v2421
    %3392 = vmatmul.mubr.bf16.gmra.mrb[0].mxu0 %v2420
    %v3393 = vpop.f32.mrb[0].mxu0
    %v3394 = vadd.f32 %v3281, %v3393
    %v3395 = vpop.f32.mrb[0].mxu0
    %v3396 = vadd.f32 %v3283, %v3395
    %v3397 = vpop.f32.mrb[0].mxu0
    %v3398 = vadd.f32 %v3285, %v3397
    %v3399 = vpop.f32.mrb[0].mxu0
    %v3400 = vadd.f32 %v3287, %v3399
    %3401 = vmatprep.mubr.bf16.mxu0 %v2425
    %3402 = vmatmul.mubr.bf16.gmra.mrb[0].mxu0 %v2424
    %v3403 = vpop.f32.mrb[0].mxu0
    %v3404 = vadd.f32 %v3291, %v3403
    %v3405 = vpop.f32.mrb[0].mxu0
    %v3406 = vadd.f32 %v3293, %v3405
    %v3407 = vpop.f32.mrb[0].mxu0
    %v3408 = vadd.f32 %v3295, %v3407
    %v3409 = vpop.f32.mrb[0].mxu0
    %v3410 = vadd.f32 %v3297, %v3409
    %3411 = vmatprep.mubr.bf16.mxu0 %v2429
    %3412 = vmatmul.mubr.bf16.gmra.mrb[0].mxu0 %v2428
    %v3413 = vpop.f32.mrb[0].mxu0
    %v3414 = vadd.f32 %v3301, %v3413
    %v3415 = vpop.f32.mrb[0].mxu0
    %v3416 = vadd.f32 %v3303, %v3415
    %v3417 = vpop.f32.mrb[0].mxu0
    %v3418 = vadd.f32 %v3305, %v3417
    %v3419 = vpop.f32.mrb[0].mxu0
    %v3420 = vadd.f32 %v3307, %v3419
    %3421 = vmatprep.mubr.bf16.mxu0 %v2433
    %3422 = vmatmul.mubr.bf16.gmra.mrb[0].mxu0 %v2432
    %v3423 = vpop.f32.mrb[0].mxu0
    %v3424 = vadd.f32 %v3311, %v3423
    %v3425 = vpop.f32.mrb[0].mxu0
    %v3426 = vadd.f32 %v3313, %v3425
    %v3427 = vpop.f32.mrb[0].mxu0
    %v3428 = vadd.f32 %v3315, %v3427
    %v3429 = vpop.f32.mrb[0].mxu0
    %v3430 = vadd.f32 %v3317, %v3429
    %3431 = vmatprep.mubr.bf16.mxu0 %v2437
    %3432 = vmatmul.mubr.bf16.gmra.mrb[0].mxu0 %v2436
    %v3433 = vpop.f32.mrb[0].mxu0
    %v3434 = vadd.f32 %v3321, %v3433
    %v3435 = vpop.f32.mrb[0].mxu0
    %v3436 = vadd.f32 %v3323, %v3435
    %v3437 = vpop.f32.mrb[0].mxu0
    %v3438 = vadd.f32 %v3325, %v3437
    %v3439 = vpop.f32.mrb[0].mxu0
    %v3440 = vadd.f32 %v3327, %v3439
    %3441 = vmatprep.mubr.bf16.mxu0 %v2441
    %3442 = vmatmul.mubr.bf16.gmra.mrb[0].mxu0 %v2440
    %v3443 = vpop.f32.mrb[0].mxu0
    %v3444 = vadd.f32 %v3331, %v3443
    %v3445 = vpop.f32.mrb[0].mxu0
    %v3446 = vadd.f32 %v3333, %v3445
    %v3447 = vpop.f32.mrb[0].mxu0
    %v3448 = vadd.f32 %v3335, %v3447
    %v3449 = vpop.f32.mrb[0].mxu0
    %v3450 = vadd.f32 %v3337, %v3449
    %3451 = vmatprep.mubr.bf16.mxu0 %v2445
    %3452 = vmatmul.mubr.bf16.gmra.mrb[0].mxu0 %v2444
    %v3453 = vpop.f32.mrb[0].mxu0
    %v3454 = vadd.f32 %v3341, %v3453
    %v3455 = vpop.f32.mrb[0].mxu0
    %v3456 = vadd.f32 %v3343, %v3455
    %v3457 = vpop.f32.mrb[0].mxu0
    %v3458 = vadd.f32 %v3345, %v3457
    %v3459 = vpop.f32.mrb[0].mxu0
    %v3460 = vadd.f32 %v3347, %v3459
    %3461 = vdwg.mxu0
    %3462 = vmatprep.subr.bf16.mxu0 %v2983
    %3463 = vmatpush1.bf16.msra.mxu0 %v2982
    %3464 = vmatprep.subr.bf16.mxu0 %v2987
    %3465 = vmatpush1.bf16.msra.mxu0 %v2986
    %3466 = vmatprep.subr.bf16.mxu0 %v2991
    %3467 = vmatpush1.bf16.msra.mxu0 %v2990
    %3468 = vmatprep.subr.bf16.mxu0 %v2995
    %3469 = vmatpush1.bf16.msra.mxu0 %v2994
    %3470 = vmatprep.subr.bf16.mxu0 %v2999
    %3471 = vmatpush1.bf16.msra.mxu0 %v2998
    %3472 = vmatprep.subr.bf16.mxu0 %v3003
    %3473 = vmatpush1.bf16.msra.mxu0 %v3002
    %3474 = vmatprep.subr.bf16.mxu0 %v3007
    %3475 = vmatpush1.bf16.msra.mxu0 %v3006
    %3476 = vmatprep.subr.bf16.mxu0 %v3011
    %3477 = vmatpush1.bf16.msra.mxu0 %v3010
    %3478 = vmatprep.subr.bf16.mxu0 %v3015
    %3479 = vmatpush1.bf16.msra.mxu0 %v3014
    %3480 = vmatprep.subr.bf16.mxu0 %v3019
    %3481 = vmatpush1.bf16.msra.mxu0 %v3018
    %3482 = vmatprep.subr.bf16.mxu0 %v3023
    %3483 = vmatpush1.bf16.msra.mxu0 %v3022
    %3484 = vmatprep.subr.bf16.mxu0 %v3027
    %3485 = vmatpush1.bf16.msra.mxu0 %v3026
    %3486 = vmatprep.subr.bf16.mxu0 %v3031
    %3487 = vmatpush1.bf16.msra.mxu0 %v3030
    %3488 = vmatprep.subr.bf16.mxu0 %v3035
    %3489 = vmatpush1.bf16.msra.mxu0 %v3034
    %3490 = vmatprep.subr.bf16.mxu0 %v3039
    %3491 = vmatpush1.bf16.msra.mxu0 %v3038
    %3492 = vmatprep.subr.bf16.mxu0 %v3043
    %3493 = vmatpush1.bf16.msra.mxu0 %v3042
    %3494 = vmatprep.mubr.bf16.mxu0 %v2415
    %3495 = vmatmul.mubr.bf16.gmra.mrb[0].mxu0 %v2414
    %v3496 = vpop.f32.mrb[0].mxu0
    %v3497 = vadd.f32 %v2587, %v3496
    %v3498 = vpop.f32.mrb[0].mxu0
    %v3499 = vadd.f32 %v2591, %v3498
    %v3500 = vpop.f32.mrb[0].mxu0
    %v3501 = vadd.f32 %v2587, %v3500
    %v3502 = vpop.f32.mrb[0].mxu0
    %v3503 = vadd.f32 %v2591, %v3502
    %3504 = vmatprep.mubr.bf16.mxu0 %v2419
    %3505 = vmatmul.mubr.bf16.gmra.mrb[0].mxu0 %v2418
    %v3506 = vpop.f32.mrb[0].mxu0
    %v3507 = vadd.f32 %v2587, %v3506
    %v3508 = vpop.f32.mrb[0].mxu0
    %v3509 = vadd.f32 %v2591, %v3508
    %v3510 = vpop.f32.mrb[0].mxu0
    %v3511 = vadd.f32 %v2587, %v3510
    %v3512 = vpop.f32.mrb[0].mxu0
    %v3513 = vadd.f32 %v2591, %v3512
    %3514 = vmatprep.mubr.bf16.mxu0 %v2423
    %3515 = vmatmul.mubr.bf16.gmra.mrb[0].mxu0 %v2422
    %v3516 = vpop.f32.mrb[0].mxu0
    %v3517 = vadd.f32 %v2587, %v3516
    %v3518 = vpop.f32.mrb[0].mxu0
    %v3519 = vadd.f32 %v2591, %v3518
    %v3520 = vpop.f32.mrb[0].mxu0
    %v3521 = vadd.f32 %v2587, %v3520
    %v3522 = vpop.f32.mrb[0].mxu0
    %v3523 = vadd.f32 %v2591, %v3522
    %3524 = vmatprep.mubr.bf16.mxu0 %v2427
    %3525 = vmatmul.mubr.bf16.gmra.mrb[0].mxu0 %v2426
    %v3526 = vpop.f32.mrb[0].mxu0
    %v3527 = vadd.f32 %v2587, %v3526
    %v3528 = vpop.f32.mrb[0].mxu0
    %v3529 = vadd.f32 %v2591, %v3528
    %v3530 = vpop.f32.mrb[0].mxu0
    %v3531 = vadd.f32 %v2587, %v3530
    %v3532 = vpop.f32.mrb[0].mxu0
    %v3533 = vadd.f32 %v2591, %v3532
    %3534 = vmatprep.mubr.bf16.mxu0 %v2431
    %3535 = vmatmul.mubr.bf16.gmra.mrb[0].mxu0 %v2430
    %v3536 = vpop.f32.mrb[0].mxu0
    %v3537 = vadd.f32 %v2587, %v3536
    %v3538 = vpop.f32.mrb[0].mxu0
    %v3539 = vadd.f32 %v2591, %v3538
    %v3540 = vpop.f32.mrb[0].mxu0
    %v3541 = vadd.f32 %v2587, %v3540
    %v3542 = vpop.f32.mrb[0].mxu0
    %v3543 = vadd.f32 %v2591, %v3542
    %3544 = vmatprep.mubr.bf16.mxu0 %v2435
    %3545 = vmatmul.mubr.bf16.gmra.mrb[0].mxu0 %v2434
    %v3546 = vpop.f32.mrb[0].mxu0
    %v3547 = vadd.f32 %v2587, %v3546
    %v3548 = vpop.f32.mrb[0].mxu0
    %v3549 = vadd.f32 %v2591, %v3548
    %v3550 = vpop.f32.mrb[0].mxu0
    %v3551 = vadd.f32 %v2587, %v3550
    %v3552 = vpop.f32.mrb[0].mxu0
    %v3553 = vadd.f32 %v2591, %v3552
    %3554 = vmatprep.mubr.bf16.mxu0 %v2439
    %3555 = vmatmul.mubr.bf16.gmra.mrb[0].mxu0 %v2438
    %v3556 = vpop.f32.mrb[0].mxu0
    %v3557 = vadd.f32 %v2587, %v3556
    %v3558 = vpop.f32.mrb[0].mxu0
    %v3559 = vadd.f32 %v2591, %v3558
    %v3560 = vpop.f32.mrb[0].mxu0
    %v3561 = vadd.f32 %v2587, %v3560
    %v3562 = vpop.f32.mrb[0].mxu0
    %v3563 = vadd.f32 %v2591, %v3562
    %3564 = vmatprep.mubr.bf16.mxu0 %v2443
    %3565 = vmatmul.mubr.bf16.gmra.mrb[0].mxu0 %v2442
    %v3566 = vpop.f32.mrb[0].mxu0
    %v3567 = vadd.f32 %v2587, %v3566
    %v3568 = vpop.f32.mrb[0].mxu0
    %v3569 = vadd.f32 %v2591, %v3568
    %v3570 = vpop.f32.mrb[0].mxu0
    %v3571 = vadd.f32 %v2587, %v3570
    %v3572 = vpop.f32.mrb[0].mxu0
    %v3573 = vadd.f32 %v2591, %v3572
    %3574 = vdwg.mxu0
    %3575 = vmatprep.subr.bf16.mxu0 %v3047
    %3576 = vmatpush1.bf16.msra.mxu0 %v3046
    %3577 = vmatprep.subr.bf16.mxu0 %v3051
    %3578 = vmatpush1.bf16.msra.mxu0 %v3050
    %3579 = vmatprep.subr.bf16.mxu0 %v3055
    %3580 = vmatpush1.bf16.msra.mxu0 %v3054
    %3581 = vmatprep.subr.bf16.mxu0 %v3059
    %3582 = vmatpush1.bf16.msra.mxu0 %v3058
    %3583 = vmatprep.subr.bf16.mxu0 %v3063
    %3584 = vmatpush1.bf16.msra.mxu0 %v3062
    %3585 = vmatprep.subr.bf16.mxu0 %v3067
    %3586 = vmatpush1.bf16.msra.mxu0 %v3066
    %3587 = vmatprep.subr.bf16.mxu0 %v3071
    %3588 = vmatpush1.bf16.msra.mxu0 %v3070
    %3589 = vmatprep.subr.bf16.mxu0 %v3075
    %3590 = vmatpush1.bf16.msra.mxu0 %v3074
    %3591 = vmatprep.subr.bf16.mxu0 %v3079
    %3592 = vmatpush1.bf16.msra.mxu0 %v3078
    %3593 = vmatprep.subr.bf16.mxu0 %v3083
    %3594 = vmatpush1.bf16.msra.mxu0 %v3082
    %3595 = vmatprep.subr.bf16.mxu0 %v3087
    %3596 = vmatpush1.bf16.msra.mxu0 %v3086
    %3597 = vmatprep.subr.bf16.mxu0 %v3091
    %3598 = vmatpush1.bf16.msra.mxu0 %v3090
    %3599 = vmatprep.subr.bf16.mxu0 %v3095
    %3600 = vmatpush1.bf16.msra.mxu0 %v3094
    %3601 = vmatprep.subr.bf16.mxu0 %v3099
    %3602 = vmatpush1.bf16.msra.mxu0 %v3098
    %3603 = vmatprep.subr.bf16.mxu0 %v3103
    %3604 = vmatpush1.bf16.msra.mxu0 %v3102
    %3605 = vmatprep.subr.bf16.mxu0 %v3107
    %3606 = vmatpush1.bf16.msra.mxu0 %v3106
    %3607 = vmatprep.mubr.bf16.mxu0 %v2417
    %3608 = vmatmul.mubr.bf16.gmra.mrb[0].mxu0 %v2416
    %v3609 = vpop.f32.mrb[0].mxu0
    %v3610 = vadd.f32 %v3497, %v3609
    %v3611 = vpop.f32.mrb[0].mxu0
    %v3612 = vadd.f32 %v3499, %v3611
    %v3613 = vpop.f32.mrb[0].mxu0
    %v3614 = vadd.f32 %v3501, %v3613
    %v3615 = vpop.f32.mrb[0].mxu0
    %v3616 = vadd.f32 %v3503, %v3615
    %3617 = vmatprep.mubr.bf16.mxu0 %v2421
    %3618 = vmatmul.mubr.bf16.gmra.mrb[0].mxu0 %v2420
    %v3619 = vpop.f32.mrb[0].mxu0
    %v3620 = vadd.f32 %v3507, %v3619
    %v3621 = vpop.f32.mrb[0].mxu0
    %v3622 = vadd.f32 %v3509, %v3621
    %v3623 = vpop.f32.mrb[0].mxu0
    %v3624 = vadd.f32 %v3511, %v3623
    %v3625 = vpop.f32.mrb[0].mxu0
    %v3626 = vadd.f32 %v3513, %v3625
    %3627 = vmatprep.mubr.bf16.mxu0 %v2425
    %3628 = vmatmul.mubr.bf16.gmra.mrb[0].mxu0 %v2424
    %v3629 = vpop.f32.mrb[0].mxu0
    %v3630 = vadd.f32 %v3517, %v3629
    %v3631 = vpop.f32.mrb[0].mxu0
    %v3632 = vadd.f32 %v3519, %v3631
    %v3633 = vpop.f32.mrb[0].mxu0
    %v3634 = vadd.f32 %v3521, %v3633
    %v3635 = vpop.f32.mrb[0].mxu0
    %v3636 = vadd.f32 %v3523, %v3635
    %3637 = vmatprep.mubr.bf16.mxu0 %v2429
    %3638 = vmatmul.mubr.bf16.gmra.mrb[0].mxu0 %v2428
    %v3639 = vpop.f32.mrb[0].mxu0
    %v3640 = vadd.f32 %v3527, %v3639
    %v3641 = vpop.f32.mrb[0].mxu0
    %v3642 = vadd.f32 %v3529, %v3641
    %v3643 = vpop.f32.mrb[0].mxu0
    %v3644 = vadd.f32 %v3531, %v3643
    %v3645 = vpop.f32.mrb[0].mxu0
    %v3646 = vadd.f32 %v3533, %v3645
    %3647 = vmatprep.mubr.bf16.mxu0 %v2433
    %3648 = vmatmul.mubr.bf16.gmra.mrb[0].mxu0 %v2432
    %v3649 = vpop.f32.mrb[0].mxu0
    %v3650 = vadd.f32 %v3537, %v3649
    %v3651 = vpop.f32.mrb[0].mxu0
    %v3652 = vadd.f32 %v3539, %v3651
    %v3653 = vpop.f32.mrb[0].mxu0
    %v3654 = vadd.f32 %v3541, %v3653
    %v3655 = vpop.f32.mrb[0].mxu0
    %v3656 = vadd.f32 %v3543, %v3655
    %3657 = vmatprep.mubr.bf16.mxu0 %v2437
    %3658 = vmatmul.mubr.bf16.gmra.mrb[0].mxu0 %v2436
    %v3659 = vpop.f32.mrb[0].mxu0
    %v3660 = vadd.f32 %v3547, %v3659
    %v3661 = vpop.f32.mrb[0].mxu0
    %v3662 = vadd.f32 %v3549, %v3661
    %v3663 = vpop.f32.mrb[0].mxu0
    %v3664 = vadd.f32 %v3551, %v3663
    %v3665 = vpop.f32.mrb[0].mxu0
    %v3666 = vadd.f32 %v3553, %v3665
    %3667 = vmatprep.mubr.bf16.mxu0 %v2441
    %3668 = vmatmul.mubr.bf16.gmra.mrb[0].mxu0 %v2440
    %v3669 = vpop.f32.mrb[0].mxu0
    %v3670 = vadd.f32 %v3557, %v3669
    %v3671 = vpop.f32.mrb[0].mxu0
    %v3672 = vadd.f32 %v3559, %v3671
    %v3673 = vpop.f32.mrb[0].mxu0
    %v3674 = vadd.f32 %v3561, %v3673
    %v3675 = vpop.f32.mrb[0].mxu0
    %v3676 = vadd.f32 %v3563, %v3675
    %3677 = vmatprep.mubr.bf16.mxu0 %v2445
    %3678 = vmatmul.mubr.bf16.gmra.mrb[0].mxu0 %v2444
    %v3679 = vpop.f32.mrb[0].mxu0
    %v3680 = vadd.f32 %v3567, %v3679
    %v3681 = vpop.f32.mrb[0].mxu0
    %v3682 = vadd.f32 %v3569, %v3681
    %v3683 = vpop.f32.mrb[0].mxu0
    %v3684 = vadd.f32 %v3571, %v3683
    %v3685 = vpop.f32.mrb[0].mxu0
    %v3686 = vadd.f32 %v3573, %v3685
    %3687 = vdwg.mxu0
    %v3688 = vmax.f32 %v3384, 0.0
    %v3689 = vmax.f32 %v3386, 0.0
    %v3690 = vmax.f32 %v3610, 0.0
    %v3691 = vmax.f32 %v3612, 0.0
    %v3692 = vmax.f32 %v3388, 0.0
    %v3693 = vmax.f32 %v3390, 0.0
    %v3694 = vmax.f32 %v3614, 0.0
    %v3695 = vmax.f32 %v3616, 0.0
    %v3696 = vmax.f32 %v3394, 0.0
    %v3697 = vmax.f32 %v3396, 0.0
    %v3698 = vmax.f32 %v3620, 0.0
    %v3699 = vmax.f32 %v3622, 0.0
    %v3700 = vmax.f32 %v3398, 0.0
    %v3701 = vmax.f32 %v3400, 0.0
    %v3702 = vmax.f32 %v3624, 0.0
    %v3703 = vmax.f32 %v3626, 0.0
    %v3704 = vmax.f32 %v3404, 0.0
    %v3705 = vmax.f32 %v3406, 0.0
    %v3706 = vmax.f32 %v3630, 0.0
    %v3707 = vmax.f32 %v3632, 0.0
    %v3708 = vmax.f32 %v3408, 0.0
    %v3709 = vmax.f32 %v3410, 0.0
    %v3710 = vmax.f32 %v3634, 0.0
    %v3711 = vmax.f32 %v3636, 0.0
    %v3712 = vmax.f32 %v3414, 0.0
    %v3713 = vmax.f32 %v3416, 0.0
    %v3714 = vmax.f32 %v3640, 0.0
    %v3715 = vmax.f32 %v3642, 0.0
    %v3716 = vmax.f32 %v3418, 0.0
    %v3717 = vmax.f32 %v3420, 0.0
    %v3718 = vmax.f32 %v3644, 0.0
    %v3719 = vmax.f32 %v3646, 0.0
    %v3720 = vmax.f32 %v3424, 0.0
    %v3721 = vmax.f32 %v3426, 0.0
    %v3722 = vmax.f32 %v3650, 0.0
    %v3723 = vmax.f32 %v3652, 0.0
    %v3724 = vmax.f32 %v3428, 0.0
    %v3725 = vmax.f32 %v3430, 0.0
    %v3726 = vmax.f32 %v3654, 0.0
    %v3727 = vmax.f32 %v3656, 0.0
    %v3728 = vmax.f32 %v3434, 0.0
    %v3729 = vmax.f32 %v3436, 0.0
    %v3730 = vmax.f32 %v3660, 0.0
    %v3731 = vmax.f32 %v3662, 0.0
    %v3732 = vmax.f32 %v3438, 0.0
    %v3733 = vmax.f32 %v3440, 0.0
    %v3734 = vmax.f32 %v3664, 0.0
    %v3735 = vmax.f32 %v3666, 0.0
    %v3736 = vmax.f32 %v3444, 0.0
    %v3737 = vmax.f32 %v3446, 0.0
    %v3738 = vmax.f32 %v3670, 0.0
    %v3739 = vmax.f32 %v3672, 0.0
    %v3740 = vmax.f32 %v3448, 0.0
    %v3741 = vmax.f32 %v3450, 0.0
    %v3742 = vmax.f32 %v3674, 0.0
    %v3743 = vmax.f32 %v3676, 0.0
    %v3744 = vmax.f32 %v3454, 0.0
    %v3745 = vmax.f32 %v3456, 0.0
    %v3746 = vmax.f32 %v3680, 0.0
    %v3747 = vmax.f32 %v3682, 0.0
    %v3748 = vmax.f32 %v3458, 0.0
    %v3749 = vmax.f32 %v3460, 0.0
    %v3750 = vmax.f32 %v3684, 0.0
    %v3751 = vmax.f32 %v3686, 0.0
    %v3752 = vpack.c.bf16 %v3692, %v3688
    %v3753 = vpack.c.bf16 %v3693, %v3689
    %v3754 = vpack.c.bf16 %v3694, %v3690
    %v3755 = vpack.c.bf16 %v3695, %v3691
    %v3756 = vpack.c.bf16 %v3700, %v3696
    %v3757 = vpack.c.bf16 %v3701, %v3697
    %v3758 = vpack.c.bf16 %v3702, %v3698
    %v3759 = vpack.c.bf16 %v3703, %v3699
    %v3760 = vpack.c.bf16 %v3708, %v3704
    %v3761 = vpack.c.bf16 %v3709, %v3705
    %v3762 = vpack.c.bf16 %v3710, %v3706
    %v3763 = vpack.c.bf16 %v3711, %v3707
    %v3764 = vpack.c.bf16 %v3716, %v3712
    %v3765 = vpack.c.bf16 %v3717, %v3713
    %v3766 = vpack.c.bf16 %v3718, %v3714
    %v3767 = vpack.c.bf16 %v3719, %v3715
    %v3768 = vpack.c.bf16 %v3724, %v3720
    %v3769 = vpack.c.bf16 %v3725, %v3721
    %v3770 = vpack.c.bf16 %v3726, %v3722
    %v3771 = vpack.c.bf16 %v3727, %v3723
    %v3772 = vpack.c.bf16 %v3732, %v3728
    %v3773 = vpack.c.bf16 %v3733, %v3729
    %v3774 = vpack.c.bf16 %v3734, %v3730
    %v3775 = vpack.c.bf16 %v3735, %v3731
    %v3776 = vpack.c.bf16 %v3740, %v3736
    %v3777 = vpack.c.bf16 %v3741, %v3737
    %v3778 = vpack.c.bf16 %v3742, %v3738
    %v3779 = vpack.c.bf16 %v3743, %v3739
    %v3780 = vpack.c.bf16 %v3748, %v3744
    %v3781 = vpack.c.bf16 %v3749, %v3745
    %v3782 = vpack.c.bf16 %v3750, %v3746
    %v3783 = vpack.c.bf16 %v3751, %v3747
    %v3784 = vld [vmem:[%s5] sm:$0xf]
    %v3785 = vld [vmem:[%s5 + $0x4] sm:$0xf]
    %v3786 = vld [vmem:[%s5 + $0x8] sm:$0xf]
    %v3787 = vld [vmem:[%s5 + $0xc] sm:$0xf]
    %v3788 = vld [vmem:[%s5 + $0x10] sm:$0xf]
    %v3789 = vld [vmem:[%s5 + $0x14] sm:$0xf]
    %v3790 = vld [vmem:[%s5 + $0x18] sm:$0xf]
    %v3791 = vld [vmem:[%s5 + $0x1c] sm:$0xf]
    %v3792 = vld [vmem:[%s5 + $0x20] sm:$0xf]
    %v3793 = vld [vmem:[%s5 + $0x24] sm:$0xf]
    %v3794 = vld [vmem:[%s5 + $0x28] sm:$0xf]
    %v3795 = vld [vmem:[%s5 + $0x2c] sm:$0xf]
    %v3796 = vld [vmem:[%s5 + $0x30] sm:$0xf]
    %v3797 = vld [vmem:[%s5 + $0x34] sm:$0xf]
    %v3798 = vld [vmem:[%s5 + $0x38] sm:$0xf]
    %v3799 = vld [vmem:[%s5 + $0x3c] sm:$0xf]
    %v3800 = vld [vmem:[%s5 + $0x40] sm:$0xf]
    %v3801 = vld [vmem:[%s5 + $0x44] sm:$0xf]
    %v3802 = vld [vmem:[%s5 + $0x48] sm:$0xf]
    %v3803 = vld [vmem:[%s5 + $0x4c] sm:$0xf]
    %v3804 = vld [vmem:[%s5 + $0x50] sm:$0xf]
    %v3805 = vld [vmem:[%s5 + $0x54] sm:$0xf]
    %v3806 = vld [vmem:[%s5 + $0x58] sm:$0xf]
    %v3807 = vld [vmem:[%s5 + $0x5c] sm:$0xf]
    %v3808 = vld [vmem:[%s5 + $0x60] sm:$0xf]
    %v3809 = vld [vmem:[%s5 + $0x64] sm:$0xf]
    %v3810 = vld [vmem:[%s5 + $0x68] sm:$0xf]
    %v3811 = vld [vmem:[%s5 + $0x6c] sm:$0xf]
    %v3812 = vld [vmem:[%s5 + $0x70] sm:$0xf]
    %v3813 = vld [vmem:[%s5 + $0x74] sm:$0xf]
    %v3814 = vld [vmem:[%s5 + $0x78] sm:$0xf]
    %v3815 = vld [vmem:[%s5 + $0x7c] sm:$0xf]
    %v3816 = vld [vmem:[%s5 + $0x80] sm:$0xf]
    %v3817 = vld [vmem:[%s5 + $0x84] sm:$0xf]
    %v3818 = vld [vmem:[%s5 + $0x88] sm:$0xf]
    %v3819 = vld [vmem:[%s5 + $0x8c] sm:$0xf]
    %v3820 = vld [vmem:[%s5 + $0x90] sm:$0xf]
    %v3821 = vld [vmem:[%s5 + $0x94] sm:$0xf]
    %v3822 = vld [vmem:[%s5 + $0x98] sm:$0xf]
    %v3823 = vld [vmem:[%s5 + $0x9c] sm:$0xf]
    %v3824 = vld [vmem:[%s5 + $0xa0] sm:$0xf]
    %v3825 = vld [vmem:[%s5 + $0xa4] sm:$0xf]
    %v3826 = vld [vmem:[%s5 + $0xa8] sm:$0xf]
    %v3827 = vld [vmem:[%s5 + $0xac] sm:$0xf]
    %v3828 = vld [vmem:[%s5 + $0xb0] sm:$0xf]
    %v3829 = vld [vmem:[%s5 + $0xb4] sm:$0xf]
    %v3830 = vld [vmem:[%s5 + $0xb8] sm:$0xf]
    %v3831 = vld [vmem:[%s5 + $0xbc] sm:$0xf]
    %v3832 = vld [vmem:[%s5 + $0xc0] sm:$0xf]
    %v3833 = vld [vmem:[%s5 + $0xc4] sm:$0xf]
    %v3834 = vld [vmem:[%s5 + $0xc8] sm:$0xf]
    %v3835 = vld [vmem:[%s5 + $0xcc] sm:$0xf]
    %v3836 = vld [vmem:[%s5 + $0xd0] sm:$0xf]
    %v3837 = vld [vmem:[%s5 + $0xd4] sm:$0xf]
    %v3838 = vld [vmem:[%s5 + $0xd8] sm:$0xf]
    %v3839 = vld [vmem:[%s5 + $0xdc] sm:$0xf]
    %v3840 = vld [vmem:[%s5 + $0xe0] sm:$0xf]
    %v3841 = vld [vmem:[%s5 + $0xe4] sm:$0xf]
    %v3842 = vld [vmem:[%s5 + $0xe8] sm:$0xf]
    %v3843 = vld [vmem:[%s5 + $0xec] sm:$0xf]
    %v3844 = vld [vmem:[%s5 + $0xf0] sm:$0xf]
    %v3845 = vld [vmem:[%s5 + $0xf4] sm:$0xf]
    %v3846 = vld [vmem:[%s5 + $0xf8] sm:$0xf]
    %v3847 = vld [vmem:[%s5 + $0xfc] sm:$0xf]
    %v3848 = vld [vmem:[%s6] sm:$0x1]
    %v3850 = vlaneseq
    %v3851 = vshrl.u32 %v3850, 7
    %v3852 = vsub.s32 0, %v3851
    %v3853 = vrot.slane %v3848, %v3852
    %v3919 = vunpack.c.l.b16 %v3784
    %v3920 = vunpack.c.l.b16 %v3785
    %v3921 = vunpack.c.l.b16 %v3786
    %v3922 = vunpack.c.l.b16 %v3787
    %v3923 = vunpack.c.l.b16 %v3788
    %v3924 = vunpack.c.l.b16 %v3789
    %v3925 = vunpack.c.l.b16 %v3790
    %v3926 = vunpack.c.l.b16 %v3791
    %v3927 = vunpack.c.l.b16 %v3792
    %v3928 = vunpack.c.l.b16 %v3793
    %v3929 = vunpack.c.l.b16 %v3794
    %v3930 = vunpack.c.l.b16 %v3795
    %v3931 = vunpack.c.l.b16 %v3796
    %v3932 = vunpack.c.l.b16 %v3797
    %v3933 = vunpack.c.l.b16 %v3798
    %v3934 = vunpack.c.l.b16 %v3799
    %v3935 = vunpack.c.l.b16 %v3800
    %v3936 = vunpack.c.l.b16 %v3801
    %v3937 = vunpack.c.l.b16 %v3802
    %v3938 = vunpack.c.l.b16 %v3803
    %v3939 = vunpack.c.l.b16 %v3804
    %v3940 = vunpack.c.l.b16 %v3805
    %v3941 = vunpack.c.l.b16 %v3806
    %v3942 = vunpack.c.l.b16 %v3807
    %v3943 = vunpack.c.l.b16 %v3808
    %v3944 = vunpack.c.l.b16 %v3809
    %v3945 = vunpack.c.l.b16 %v3810
    %v3946 = vunpack.c.l.b16 %v3811
    %v3947 = vunpack.c.l.b16 %v3812
    %v3948 = vunpack.c.l.b16 %v3813
    %v3949 = vunpack.c.l.b16 %v3814
    %v3950 = vunpack.c.l.b16 %v3815
    %v3951 = vunpack.c.l.b16 %v3816
    %v3952 = vunpack.c.l.b16 %v3817
    %v3953 = vunpack.c.l.b16 %v3818
    %v3954 = vunpack.c.l.b16 %v3819
    %v3955 = vunpack.c.l.b16 %v3820
    %v3956 = vunpack.c.l.b16 %v3821
    %v3957 = vunpack.c.l.b16 %v3822
    %v3958 = vunpack.c.l.b16 %v3823
    %v3959 = vunpack.c.l.b16 %v3824
    %v3960 = vunpack.c.l.b16 %v3825
    %v3961 = vunpack.c.l.b16 %v3826
    %v3962 = vunpack.c.l.b16 %v3827
    %v3963 = vunpack.c.l.b16 %v3828
    %v3964 = vunpack.c.l.b16 %v3829
    %v3965 = vunpack.c.l.b16 %v3830
    %v3966 = vunpack.c.l.b16 %v3831
    %v3967 = vunpack.c.l.b16 %v3832
    %v3968 = vunpack.c.l.b16 %v3833
    %v3969 = vunpack.c.l.b16 %v3834
    %v3970 = vunpack.c.l.b16 %v3835
    %v3971 = vunpack.c.l.b16 %v3836
    %v3972 = vunpack.c.l.b16 %v3837
    %v3973 = vunpack.c.l.b16 %v3838
    %v3974 = vunpack.c.l.b16 %v3839
    %v3975 = vunpack.c.l.b16 %v3840
    %v3976 = vunpack.c.l.b16 %v3841
    %v3977 = vunpack.c.l.b16 %v3842
    %v3978 = vunpack.c.l.b16 %v3843
    %v3979 = vunpack.c.l.b16 %v3844
    %v3980 = vunpack.c.l.b16 %v3845
    %v3981 = vunpack.c.l.b16 %v3846
    %v3982 = vunpack.c.l.b16 %v3847
    %v3983 = vpack.c.b16 %v3920, %v3919
    %v3984 = vpack.c.b16 %v3922, %v3921
    %v3985 = vpack.c.b16 %v3924, %v3923
    %v3986 = vpack.c.b16 %v3926, %v3925
    %v3987 = vpack.c.b16 %v3928, %v3927
    %v3988 = vpack.c.b16 %v3930, %v3929
    %v3989 = vpack.c.b16 %v3932, %v3931
    %v3990 = vpack.c.b16 %v3934, %v3933
    %v3991 = vpack.c.b16 %v3936, %v3935
    %v3992 = vpack.c.b16 %v3938, %v3937
    %v3993 = vpack.c.b16 %v3940, %v3939
    %v3994 = vpack.c.b16 %v3942, %v3941
    %v3995 = vpack.c.b16 %v3944, %v3943
    %v3996 = vpack.c.b16 %v3946, %v3945
    %v3997 = vpack.c.b16 %v3948, %v3947
    %v3998 = vpack.c.b16 %v3950, %v3949
    %v3999 = vpack.c.b16 %v3952, %v3951
    %v4000 = vpack.c.b16 %v3954, %v3953
    %v4001 = vpack.c.b16 %v3956, %v3955
    %v4002 = vpack.c.b16 %v3958, %v3957
    %v4003 = vpack.c.b16 %v3960, %v3959
    %v4004 = vpack.c.b16 %v3962, %v3961
    %v4005 = vpack.c.b16 %v3964, %v3963
    %v4006 = vpack.c.b16 %v3966, %v3965
    %v4007 = vpack.c.b16 %v3968, %v3967
    %v4008 = vpack.c.b16 %v3970, %v3969
    %v4009 = vpack.c.b16 %v3972, %v3971
    %v4010 = vpack.c.b16 %v3974, %v3973
    %v4011 = vpack.c.b16 %v3976, %v3975
    %v4012 = vpack.c.b16 %v3978, %v3977
    %v4013 = vpack.c.b16 %v3980, %v3979
    %v4014 = vpack.c.b16 %v3982, %v3981
    %4047 = vmatprep.subr.bf16.mxu0 0
    %4048 = vmatpush1.bf16.msra.mxu0 %v3983
    %4049 = vmatprep.subr.bf16.mxu0 0
    %4050 = vmatpush1.bf16.msra.mxu0 %v3984
    %4051 = vmatprep.subr.bf16.mxu0 0
    %4052 = vmatpush1.bf16.msra.mxu0 %v3985
    %4053 = vmatprep.subr.bf16.mxu0 0
    %4054 = vmatpush1.bf16.msra.mxu0 %v3986
    %4055 = vmatprep.subr.bf16.mxu0 0
    %4056 = vmatpush1.bf16.msra.mxu0 %v3987
    %4057 = vmatprep.subr.bf16.mxu0 0
    %4058 = vmatpush1.bf16.msra.mxu0 %v3988
    %4059 = vmatprep.subr.bf16.mxu0 0
    %4060 = vmatpush1.bf16.msra.mxu0 %v3989
    %4061 = vmatprep.subr.bf16.mxu0 0
    %4062 = vmatpush1.bf16.msra.mxu0 %v3990
    %4063 = vmatprep.subr.bf16.mxu0 0
    %4064 = vmatpush1.bf16.msra.mxu0 %v3991
    %4065 = vmatprep.subr.bf16.mxu0 0
    %4066 = vmatpush1.bf16.msra.mxu0 %v3992
    %4067 = vmatprep.subr.bf16.mxu0 0
    %4068 = vmatpush1.bf16.msra.mxu0 %v3993
    %4069 = vmatprep.subr.bf16.mxu0 0
    %4070 = vmatpush1.bf16.msra.mxu0 %v3994
    %4071 = vmatprep.subr.bf16.mxu0 0
    %4072 = vmatpush1.bf16.msra.mxu0 %v3995
    %4073 = vmatprep.subr.bf16.mxu0 0
    %4074 = vmatpush1.bf16.msra.mxu0 %v3996
    %4075 = vmatprep.subr.bf16.mxu0 0
    %4076 = vmatpush1.bf16.msra.mxu0 %v3997
    %4077 = vmatprep.subr.bf16.mxu0 0
    %4078 = vmatpush1.bf16.msra.mxu0 %v3998
    %4079 = vmatprep.mubr.bf16.mxu0 %v3753
    %4080 = vmatmul.mubr.bf16.gmra.mrb[0].mxu0 %v3752
    %v4081 = vpop.f32.mrb[0].mxu0
    %v4082 = vadd.f32 %v3853, %v4081
    %v4083 = vpop.f32.mrb[0].mxu0
    %v4084 = vpop.f32.mrb[0].mxu0
    %v4085 = vadd.f32 %v3853, %v4084
    %v4086 = vpop.f32.mrb[0].mxu0
    %4087 = vmatprep.mubr.bf16.mxu0 %v3757
    %4088 = vmatmul.mubr.bf16.gmra.mrb[0].mxu0 %v3756
    %v4089 = vpop.f32.mrb[0].mxu0
    %v4090 = vadd.f32 %v3853, %v4089
    %v4091 = vpop.f32.mrb[0].mxu0
    %v4092 = vpop.f32.mrb[0].mxu0
    %v4093 = vadd.f32 %v3853, %v4092
    %v4094 = vpop.f32.mrb[0].mxu0
    %4095 = vmatprep.mubr.bf16.mxu0 %v3761
    %4096 = vmatmul.mubr.bf16.gmra.mrb[0].mxu0 %v3760
    %v4097 = vpop.f32.mrb[0].mxu0
    %v4098 = vadd.f32 %v3853, %v4097
    %v4099 = vpop.f32.mrb[0].mxu0
    %v4100 = vpop.f32.mrb[0].mxu0
    %v4101 = vadd.f32 %v3853, %v4100
    %v4102 = vpop.f32.mrb[0].mxu0
    %4103 = vmatprep.mubr.bf16.mxu0 %v3765
    %4104 = vmatmul.mubr.bf16.gmra.mrb[0].mxu0 %v3764
    %v4105 = vpop.f32.mrb[0].mxu0
    %v4106 = vadd.f32 %v3853, %v4105
    %v4107 = vpop.f32.mrb[0].mxu0
    %v4108 = vpop.f32.mrb[0].mxu0
    %v4109 = vadd.f32 %v3853, %v4108
    %v4110 = vpop.f32.mrb[0].mxu0
    %4111 = vmatprep.mubr.bf16.mxu0 %v3769
    %4112 = vmatmul.mubr.bf16.gmra.mrb[0].mxu0 %v3768
    %v4113 = vpop.f32.mrb[0].mxu0
    %v4114 = vadd.f32 %v3853, %v4113
    %v4115 = vpop.f32.mrb[0].mxu0
    %v4116 = vpop.f32.mrb[0].mxu0
    %v4117 = vadd.f32 %v3853, %v4116
    %v4118 = vpop.f32.mrb[0].mxu0
    %4119 = vmatprep.mubr.bf16.mxu0 %v3773
    %4120 = vmatmul.mubr.bf16.gmra.mrb[0].mxu0 %v3772
    %v4121 = vpop.f32.mrb[0].mxu0
    %v4122 = vadd.f32 %v3853, %v4121
    %v4123 = vpop.f32.mrb[0].mxu0
    %v4124 = vpop.f32.mrb[0].mxu0
    %v4125 = vadd.f32 %v3853, %v4124
    %v4126 = vpop.f32.mrb[0].mxu0
    %4127 = vmatprep.mubr.bf16.mxu0 %v3777
    %4128 = vmatmul.mubr.bf16.gmra.mrb[0].mxu0 %v3776
    %v4129 = vpop.f32.mrb[0].mxu0
    %v4130 = vadd.f32 %v3853, %v4129
    %v4131 = vpop.f32.mrb[0].mxu0
    %v4132 = vpop.f32.mrb[0].mxu0
    %v4133 = vadd.f32 %v3853, %v4132
    %v4134 = vpop.f32.mrb[0].mxu0
    %4135 = vmatprep.mubr.bf16.mxu0 %v3781
    %4136 = vmatmul.mubr.bf16.gmra.mrb[0].mxu0 %v3780
    %v4137 = vpop.f32.mrb[0].mxu0
    %v4138 = vadd.f32 %v3853, %v4137
    %v4139 = vpop.f32.mrb[0].mxu0
    %v4140 = vpop.f32.mrb[0].mxu0
    %v4141 = vadd.f32 %v3853, %v4140
    %v4142 = vpop.f32.mrb[0].mxu0
    %4143 = vdwg.mxu0
    %4144 = vmatprep.subr.bf16.mxu0 0
    %4145 = vmatpush1.bf16.msra.mxu0 %v3999
    %4146 = vmatprep.subr.bf16.mxu0 0
    %4147 = vmatpush1.bf16.msra.mxu0 %v4000
    %4148 = vmatprep.subr.bf16.mxu0 0
    %4149 = vmatpush1.bf16.msra.mxu0 %v4001
    %4150 = vmatprep.subr.bf16.mxu0 0
    %4151 = vmatpush1.bf16.msra.mxu0 %v4002
    %4152 = vmatprep.subr.bf16.mxu0 0
    %4153 = vmatpush1.bf16.msra.mxu0 %v4003
    %4154 = vmatprep.subr.bf16.mxu0 0
    %4155 = vmatpush1.bf16.msra.mxu0 %v4004
    %4156 = vmatprep.subr.bf16.mxu0 0
    %4157 = vmatpush1.bf16.msra.mxu0 %v4005
    %4158 = vmatprep.subr.bf16.mxu0 0
    %4159 = vmatpush1.bf16.msra.mxu0 %v4006
    %4160 = vmatprep.subr.bf16.mxu0 0
    %4161 = vmatpush1.bf16.msra.mxu0 %v4007
    %4162 = vmatprep.subr.bf16.mxu0 0
    %4163 = vmatpush1.bf16.msra.mxu0 %v4008
    %4164 = vmatprep.subr.bf16.mxu0 0
    %4165 = vmatpush1.bf16.msra.mxu0 %v4009
    %4166 = vmatprep.subr.bf16.mxu0 0
    %4167 = vmatpush1.bf16.msra.mxu0 %v4010
    %4168 = vmatprep.subr.bf16.mxu0 0
    %4169 = vmatpush1.bf16.msra.mxu0 %v4011
    %4170 = vmatprep.subr.bf16.mxu0 0
    %4171 = vmatpush1.bf16.msra.mxu0 %v4012
    %4172 = vmatprep.subr.bf16.mxu0 0
    %4173 = vmatpush1.bf16.msra.mxu0 %v4013
    %4174 = vmatprep.subr.bf16.mxu0 0
    %4175 = vmatpush1.bf16.msra.mxu0 %v4014
    %4176 = vmatprep.mubr.bf16.mxu0 %v3755
    %4177 = vmatmul.mubr.bf16.gmra.mrb[0].mxu0 %v3754
    %v4178 = vpop.f32.mrb[0].mxu0
    %v4179 = vadd.f32 %v4082, %v4178
    %v4180 = vpop.f32.mrb[0].mxu0
    %v4181 = vpop.f32.mrb[0].mxu0
    %v4182 = vadd.f32 %v4085, %v4181
    %v4183 = vpop.f32.mrb[0].mxu0
    %4184 = vmatprep.mubr.bf16.mxu0 %v3759
    %4185 = vmatmul.mubr.bf16.gmra.mrb[0].mxu0 %v3758
    %v4186 = vpop.f32.mrb[0].mxu0
    %v4187 = vadd.f32 %v4090, %v4186
    %v4188 = vpop.f32.mrb[0].mxu0
    %v4189 = vpop.f32.mrb[0].mxu0
    %v4190 = vadd.f32 %v4093, %v4189
    %v4191 = vpop.f32.mrb[0].mxu0
    %4192 = vmatprep.mubr.bf16.mxu0 %v3763
    %4193 = vmatmul.mubr.bf16.gmra.mrb[0].mxu0 %v3762
    %v4194 = vpop.f32.mrb[0].mxu0
    %v4195 = vadd.f32 %v4098, %v4194
    %v4196 = vpop.f32.mrb[0].mxu0
    %v4197 = vpop.f32.mrb[0].mxu0
    %v4198 = vadd.f32 %v4101, %v4197
    %v4199 = vpop.f32.mrb[0].mxu0
    %4200 = vmatprep.mubr.bf16.mxu0 %v3767
    %4201 = vmatmul.mubr.bf16.gmra.mrb[0].mxu0 %v3766
    %v4202 = vpop.f32.mrb[0].mxu0
    %v4203 = vadd.f32 %v4106, %v4202
    %v4204 = vpop.f32.mrb[0].mxu0
    %v4205 = vpop.f32.mrb[0].mxu0
    %v4206 = vadd.f32 %v4109, %v4205
    %v4207 = vpop.f32.mrb[0].mxu0
    %4208 = vmatprep.mubr.bf16.mxu0 %v3771
    %4209 = vmatmul.mubr.bf16.gmra.mrb[0].mxu0 %v3770
    %v4210 = vpop.f32.mrb[0].mxu0
    %v4211 = vadd.f32 %v4114, %v4210
    %v4212 = vpop.f32.mrb[0].mxu0
    %v4213 = vpop.f32.mrb[0].mxu0
    %v4214 = vadd.f32 %v4117, %v4213
    %v4215 = vpop.f32.mrb[0].mxu0
    %4216 = vmatprep.mubr.bf16.mxu0 %v3775
    %4217 = vmatmul.mubr.bf16.gmra.mrb[0].mxu0 %v3774
    %v4218 = vpop.f32.mrb[0].mxu0
    %v4219 = vadd.f32 %v4122, %v4218
    %v4220 = vpop.f32.mrb[0].mxu0
    %v4221 = vpop.f32.mrb[0].mxu0
    %v4222 = vadd.f32 %v4125, %v4221
    %v4223 = vpop.f32.mrb[0].mxu0
    %4224 = vmatprep.mubr.bf16.mxu0 %v3779
    %4225 = vmatmul.mubr.bf16.gmra.mrb[0].mxu0 %v3778
    %v4226 = vpop.f32.mrb[0].mxu0
    %v4227 = vadd.f32 %v4130, %v4226
    %v4228 = vpop.f32.mrb[0].mxu0
    %v4229 = vpop.f32.mrb[0].mxu0
    %v4230 = vadd.f32 %v4133, %v4229
    %v4231 = vpop.f32.mrb[0].mxu0
    %4232 = vmatprep.mubr.bf16.mxu0 %v3783
    %4233 = vmatmul.mubr.bf16.gmra.mrb[0].mxu0 %v3782
    %v4234 = vpop.f32.mrb[0].mxu0
    %v4235 = vadd.f32 %v4138, %v4234
    %v4236 = vpop.f32.mrb[0].mxu0
    %v4237 = vpop.f32.mrb[0].mxu0
    %v4238 = vadd.f32 %v4141, %v4237
    %v4239 = vpop.f32.mrb[0].mxu0
    %4240 = vdwg.mxu0
    %v4241 = vpack.c.bf16 %v4182, %v4179
    %v4242 = vpack.c.bf16 %v4190, %v4187
    %v4243 = vpack.c.bf16 %v4198, %v4195
    %v4244 = vpack.c.bf16 %v4206, %v4203
    %v4245 = vpack.c.bf16 %v4214, %v4211
    %v4246 = vpack.c.bf16 %v4222, %v4219
    %v4247 = vpack.c.bf16 %v4230, %v4227
    %v4248 = vpack.c.bf16 %v4238, %v4235
    %v4257 = vunpack.c.l.b16 %v4241
    %v4258 = vunpack.c.h.b16 %v4241
    %v4259 = vunpack.c.l.b16 %v4242
    %v4260 = vunpack.c.h.b16 %v4242
    %v4261 = vunpack.c.l.b16 %v4243
    %v4262 = vunpack.c.h.b16 %v4243
    %v4263 = vunpack.c.l.b16 %v4244
    %v4264 = vunpack.c.h.b16 %v4244
    %v4265 = vunpack.c.l.b16 %v4245
    %v4266 = vunpack.c.h.b16 %v4245
    %v4267 = vunpack.c.l.b16 %v4246
    %v4268 = vunpack.c.h.b16 %v4246
    %v4269 = vunpack.c.l.b16 %v4247
    %v4270 = vunpack.c.h.b16 %v4247
    %v4271 = vunpack.c.l.b16 %v4248
    %v4272 = vunpack.c.h.b16 %v4248
    %v4273 = vpack.c.b16 %v4257, %v4257
    %v4274 = vpack.c.b16 %v4258, %v4258
    %v4275 = vpack.c.b16 %v4259, %v4259
    %v4276 = vpack.c.b16 %v4260, %v4260
    %v4277 = vpack.c.b16 %v4261, %v4261
    %v4278 = vpack.c.b16 %v4262, %v4262
    %v4279 = vpack.c.b16 %v4263, %v4263
    %v4280 = vpack.c.b16 %v4264, %v4264
    %v4281 = vpack.c.b16 %v4265, %v4265
    %v4282 = vpack.c.b16 %v4266, %v4266
    %v4283 = vpack.c.b16 %v4267, %v4267
    %v4284 = vpack.c.b16 %v4268, %v4268
    %v4285 = vpack.c.b16 %v4269, %v4269
    %v4286 = vpack.c.b16 %v4270, %v4270
    %v4287 = vpack.c.b16 %v4271, %v4271
    %v4288 = vpack.c.b16 %v4272, %v4272
    %4305 = vst [vmem:[%s7] sm:$0xf] %v4273
    %4306 = vst [vmem:[%s7 + $0x4] sm:$0xf] %v4274
    %4307 = vst [vmem:[%s7 + $0x8] sm:$0xf] %v4275
    %4308 = vst [vmem:[%s7 + $0xc] sm:$0xf] %v4276
    %4309 = vst [vmem:[%s7 + $0x10] sm:$0xf] %v4277
    %4310 = vst [vmem:[%s7 + $0x14] sm:$0xf] %v4278
    %4311 = vst [vmem:[%s7 + $0x18] sm:$0xf] %v4279
    %4312 = vst [vmem:[%s7 + $0x1c] sm:$0xf] %v4280
    %4313 = vst [vmem:[%s7 + $0x20] sm:$0xf] %v4281
    %4314 = vst [vmem:[%s7 + $0x24] sm:$0xf] %v4282
    %4315 = vst [vmem:[%s7 + $0x28] sm:$0xf] %v4283
    %4316 = vst [vmem:[%s7 + $0x2c] sm:$0xf] %v4284
    %4317 = vst [vmem:[%s7 + $0x30] sm:$0xf] %v4285
    %4318 = vst [vmem:[%s7 + $0x34] sm:$0xf] %v4286
    %4319 = vst [vmem:[%s7 + $0x38] sm:$0xf] %v4287
    %4320 = vst [vmem:[%s7 + $0x3c] sm:$0xf] %v4288
    // Predicated region
    $region38: #{ann_forward.1} parent=1 // pred_check
      _
    $region39: #{ann_forward.1} parent=1 // pred_check_branch
      %4322 = sbr.rel (0) target = $region41
    $region40: #{ann_forward.1} parent=1 // pred_region
      _
    $region41: #{ann_forward.1} parent=1 // pred_fallthru
      _
    // Predicated region
    $region42: #{ann_forward.1} parent=1 // pred_check
      _
    $region43: #{ann_forward.1} parent=1 // pred_check_branch
      %4324 = sbr.rel (0) target = $region45
    $region44: #{ann_forward.1} parent=1 // pred_region
      _
    $region45: #{ann_forward.1} parent=1 // pred_fallthru
      _
    %4325 = vsyncpa [#allocation3], 1
    %4326 = vsyncpa [#allocation5], 1

</llo_original>
